<compile_context>
chip_gen: v7x
topology: tpu7x:2x2x1
jax: 0.10.0
libtpu: 0.0.40
codegen_flags: <defaults>
</compile_context>

<pallas_src>
import math
from functools import partial

import jax
import jax.numpy as jnp
from jax.experimental import pallas as pl
from jax.experimental.pallas import tpu as pltpu

# ----------------------------------------------------------------------------
# Config (small synthetic shapes consistent with the module)
# ----------------------------------------------------------------------------
N_HID = 32                 # args.n_hid (even)
N_PAPER = 8                # number of 'paper' nodes in the batched sub-graph
SEQ_LEN = 8                # text length per section
VOCAB = 50
N_GRAPHENC_LAYERS = 2      # args.n_graphenc_layer
N_PAIRS = 4                # batch_pair rows

SECTIONS = ['general', 'intro', 'method', 'experiment', 'relate']
TEXT_SECTIONS = ['intro', 'method', 'experiment']
EDGE_SECTIONS = ['intro', 'method', 'experiment', 'relate']
SECTION_TYPE2INDEX = {'general': 0, 'intro': 1, 'method': 2,
                      'experiment': 3, 'relate': 4}


def _round_up(x, m):
    return ((x + m - 1) // m) * m


def _sec_layout(n_hid):
    """Column layout of packed per-node state: general|intro|method|exp|relate."""
    dg = n_hid // 2
    dims = {'general': dg, 'intro': dg, 'method': dg,
            'experiment': dg, 'relate': 3 * dg}
    offs, o = {}, 0
    for sec in SECTIONS:
        offs[sec] = o
        o += dims[sec]
    return dims, offs, o          # total = 7 * dg (= 112 for n_hid=32)


# ----------------------------------------------------------------------------
# In-kernel matmul helper: x @ W.T with W in PyTorch [out, in] layout
# ----------------------------------------------------------------------------
def _matmul_nt(x, w):
    return jax.lax.dot_general(x, w, (((1,), (1,)), ((), ())),
                               preferred_element_type=jnp.float32)


# ----------------------------------------------------------------------------
# Kernel 1: packed Linear  y = x @ W.T + b   (used once, for the pair heads)
# ----------------------------------------------------------------------------
def _linear_kernel(x_ref, w_ref, b_ref, o_ref):
    o_ref[...] = _matmul_nt(x_ref[...], w_ref[...]) + b_ref[...]


def pallas_linear(x, w, b2d):
    M, K = x.shape
    O = w.shape[0]
    return pl.pallas_call(
        _linear_kernel,
        grid=(1,),
        out_shape=jax.ShapeDtypeStruct((M, O), jnp.float32),
        in_specs=[pl.BlockSpec((M, K), lambda i: (0, 0)),
                  pl.BlockSpec((O, K), lambda i: (0, 0)),
                  pl.BlockSpec((1, O), lambda i: (0, 0))],
        out_specs=pl.BlockSpec((M, O), lambda i: (0, 0)),
    )(x, w, b2d)


# ----------------------------------------------------------------------------
# Kernel 2: fully-fused shared-weight GRU.
#   x: [T*M, H] time-major rows (row = t*M + m), lens: [M, 1] float.
#   Input-gate matmul for ALL timesteps is one MXU issue inside the kernel,
#   then an unrolled T-step recurrence; per-step outputs are stored as a
#   lane-dense [M, T*H] slab (one 256-wide writeback) + h_last [M, H].
#   Packed-sequence semantics: t >= len outputs zero and does not change h.
# ----------------------------------------------------------------------------
def _gru_fused_kernel(T, M, H,
                      x_ref, len_ref, wih_ref, bih_ref, whh_ref, bhh_ref,
                      oseq_ref, hlast_ref):
    gi_all = _matmul_nt(x_ref[...], wih_ref[...]) + bih_ref[...]   # [T*M, 3H]
    w_hh = whh_ref[...]
    b_hh = bhh_ref[...]
    lens = len_ref[...]                                            # [M, 1]
    h = jnp.zeros((M, H), jnp.float32)
    for t in range(T):                                             # unrolled
        gi = gi_all[t * M:(t + 1) * M]                             # [M, 3H]
        gh = _matmul_nt(h, w_hh) + b_hh                            # [M, 3H]
        r = jax.nn.sigmoid(gi[:, 0:H] + gh[:, 0:H])
        z = jax.nn.sigmoid(gi[:, H:2 * H] + gh[:, H:2 * H])
        n = jnp.tanh(gi[:, 2 * H:3 * H] + r * gh[:, 2 * H:3 * H])
        h_new = (1.0 - z) * n + z * h
        valid = (lens > float(t)).astype(jnp.float32)              # [M, 1]
        h = valid * h_new + (1.0 - valid) * h
        oseq_ref[:, t * H:(t + 1) * H] = valid * h_new   # pad_packed zero-pads
    hlast_ref[...] = h


def pallas_gru_fused(x_tm, lens_f, gru):
    TM, H = x_tm.shape
    M = lens_f.shape[0]
    T = TM // M
    return pl.pallas_call(
        partial(_gru_fused_kernel, T, M, H),
        grid=(1,),
        out_shape=(jax.ShapeDtypeStruct((M, T * H), jnp.float32),
                   jax.ShapeDtypeStruct((M, H), jnp.float32)),
        in_specs=[pl.BlockSpec((TM, H), lambda i: (0, 0)),
                  pl.BlockSpec((M, 1), lambda i: (0, 0)),
                  pl.BlockSpec((3 * H, H), lambda i: (0, 0)),
                  pl.BlockSpec((1, 3 * H), lambda i: (0, 0)),
                  pl.BlockSpec((3 * H, H), lambda i: (0, 0)),
                  pl.BlockSpec((1, 3 * H), lambda i: (0, 0))],
        out_specs=(pl.BlockSpec((M, T * H), lambda i: (0, 0)),
                   pl.BlockSpec((M, H), lambda i: (0, 0))),
    )(x_tm, lens_f, gru['w_ih'], gru['b_ih'], gru['w_hh'], gru['b_hh'])


# ----------------------------------------------------------------------------
# Kernel 3: ONE fused HGTLayer_inter graph layer.
#   S: [2N, 128] packed node states (rows 0:N states, N:2N shuf states,
#   columns general|intro|method|experiment|relate|pad).
#   masks: [4, 2N, 2N] block-diagonal adjacency A[dst,src] per edge type.
#   Does: packed projection -> 4 masked attentions (both variants at once,
#   separated by the block-diag mask) -> cross-reducer mean on the general
#   half -> block-diag a_linear + sigmoid-skip blend.  Everything stays VMEM.
# ----------------------------------------------------------------------------
def _graph_layer_kernel(dg, n_edge, inv_other, inv_relate, spec_dims, spec_offs,
                        s_ref, wp_ref, bp_ref, wa_ref, ba_ref, a_ref, m_ref,
                        o_ref, t_scr):
    S = s_ref[...]                                           # [2N, 128]
    Y = _matmul_nt(S, wp_ref[...]) + bp_ref[...]             # [2N, 768]
    slot = 4 * dg                                            # k/q/v slot width = dg + 3*dg
    rows = S.shape[0]

    t_scr[...] = jnp.zeros_like(t_scr)                       # zeroes incl. pad lanes
    gen_acc = jnp.zeros((rows, dg), jnp.float32)

    for e in range(n_edge):                                  # unrolled over edge types
        base = e * 3 * slot
        k = Y[:, base:base + slot]                           # [k_general | k_specific(pad)]
        q = Y[:, base + slot:base + 2 * slot]
        v = Y[:, base + 2 * slot:base + 3 * slot]
        inv = inv_relate if e == n_edge - 1 else inv_other   # static constant
        sc = _matmul_nt(q, k) * inv                          # [2N, 2N]
        mask = m_ref[e]                                      # block-diag adjacency
        m = jnp.max(sc, axis=-1, keepdims=True)              # global max -> no overflow
        ex = jnp.exp(sc - m) * mask                          # single masking suffices
        denom = jnp.maximum(jnp.sum(ex, axis=-1, keepdims=True), 1e-20)
        p = ex * pl.reciprocal(denom, approx=True)           # divide on EUP slot
        out = jnp.dot(p, v, preferred_element_type=jnp.float32)   # [2N, slot]
        gen_acc = gen_acc + out[:, :dg]
        so, sd = spec_offs[e], spec_dims[e]
        t_scr[:, so:so + sd] = out[:, dg:dg + sd]

    t_scr[:, 0:dg] = gen_acc * (1.0 / n_edge)                # cross_reducer='mean'

    y2 = _matmul_nt(t_scr[...], wa_ref[...]) + ba_ref[...]   # block-diag a_linear
    a = a_ref[...]
    o_ref[...] = y2 * a + S * (1.0 - a)                      # sigmoid-skip blend


def pallas_graph_layer(S, lw, masks_bd, n_hid):
    rows, d_pad = S.shape
    dims, offs, _ = _sec_layout(n_hid)
    dg = n_hid // 2
    n_edge = masks_bd.shape[0]
    o_proj = lw['w_proj'].shape[0]
    spec_dims = tuple(dims[sec] for sec in EDGE_SECTIONS)
    spec_offs = tuple(offs[sec] for sec in EDGE_SECTIONS)
    inv_other = 1.0 / math.sqrt(n_hid)
    inv_relate = 1.0 / math.sqrt(2 * n_hid)
    return pl.pallas_call(
        partial(_graph_layer_kernel, dg, n_edge, inv_other, inv_relate,
                spec_dims, spec_offs),
        grid=(1,),
        out_shape=jax.ShapeDtypeStruct((rows, d_pad), jnp.float32),
        in_specs=[pl.BlockSpec((rows, d_pad), lambda i: (0, 0)),
                  pl.BlockSpec((o_proj, d_pad), lambda i: (0, 0)),
                  pl.BlockSpec((1, o_proj), lambda i: (0, 0)),
                  pl.BlockSpec((d_pad, d_pad), lambda i: (0, 0)),
                  pl.BlockSpec((1, d_pad), lambda i: (0, 0)),
                  pl.BlockSpec((1, d_pad), lambda i: (0, 0)),
                  pl.BlockSpec((n_edge, rows, rows), lambda i: (0, 0, 0))],
        out_specs=pl.BlockSpec((rows, d_pad), lambda i: (0, 0)),
        scratch_shapes=[pltpu.VMEM((rows, d_pad), jnp.float32)],
    )(S, lw['w_proj'], lw['b_proj'], lw['w_a'], lw['b_a'], lw['alpha'], masks_bd)


# ----------------------------------------------------------------------------
# Parameter initialization (deterministic, PyTorch-style uniform fan-in)
# ----------------------------------------------------------------------------
def init_linear(key, in_dim, out_dim):
    kw, kb = jax.random.split(key)
    bound = 1.0 / math.sqrt(in_dim)
    return {'w': jax.random.uniform(kw, (out_dim, in_dim), jnp.float32, -bound, bound),
            'b': jax.random.uniform(kb, (out_dim,), jnp.float32, -bound, bound)}


def init_gru(key, H):
    k = jax.random.split(key, 4)
    bound = 1.0 / math.sqrt(H)
    return {'w_ih': jax.random.uniform(k[0], (3 * H, H), jnp.float32, -bound, bound),
            'w_hh': jax.random.uniform(k[1], (3 * H, H), jnp.float32, -bound, bound),
            'b_ih': jax.random.uniform(k[2], (3 * H,), jnp.float32, -bound, bound),
            'b_hh': jax.random.uniform(k[3], (3 * H,), jnp.float32, -bound, bound)}


def init_hgt_inter(key, n_hid):
    dims, _, _ = _sec_layout(n_hid)
    params = {'k': {}, 'q': {}, 'v': {}, 'a': {},
              'skip': jnp.ones((5,), jnp.float32)}
    for sec in SECTIONS:
        key, k0, k1, k2, k3 = jax.random.split(key, 5)
        d = dims[sec]
        params['k'][sec] = init_linear(k0, d, d)
        params['q'][sec] = init_linear(k1, d, d)
        params['v'][sec] = init_linear(k2, d, d)
        params['a'][sec] = init_linear(k3, d, d)
    return params


# ----------------------------------------------------------------------------
# Weight packing — done ONCE, OUTSIDE the jitted forward (perf-review item).
# Layout: per-edge-type slot [ k_g|k_s(pad48) | q_g|q_s(pad48) | v_g|v_s(pad48) ]
# (width 3*64 = 192 per edge, 768 total); node-state columns padded to 128.
# ----------------------------------------------------------------------------
def pack_inter_layer(p, n_hid):
    dims, offs, d_all = _sec_layout(n_hid)
    dg = n_hid // 2
    slot = 4 * dg                                  # dg general + 3*dg padded specific
    d_pad = _round_up(d_all, 128)
    o_proj = len(EDGE_SECTIONS) * 3 * slot

    w_proj = jnp.zeros((o_proj, d_pad), jnp.float32)
    b_proj = jnp.zeros((o_proj,), jnp.float32)
    for e, sec in enumerate(EDGE_SECTIONS):
        base = e * 3 * slot
        d = dims[sec]
        for j, name in enumerate(('k', 'q', 'v')):
            r0 = base + j * slot
            w_proj = w_proj.at[r0:r0 + dg,
                               offs['general']:offs['general'] + dg].set(
                                   p[name]['general']['w'])
            b_proj = b_proj.at[r0:r0 + dg].set(p[name]['general']['b'])
            w_proj = w_proj.at[r0 + dg:r0 + dg + d,
                               offs[sec]:offs[sec] + d].set(p[name][sec]['w'])
            b_proj = b_proj.at[r0 + dg:r0 + dg + d].set(p[name][sec]['b'])

    w_a = jnp.zeros((d_pad, d_pad), jnp.float32)
    b_a = jnp.zeros((d_pad,), jnp.float32)
    alpha = jnp.ones((d_pad,), jnp.float32)
    for sec in SECTIONS:
        o, d = offs[sec], dims[sec]
        w_a = w_a.at[o:o + d, o:o + d].set(p['a'][sec]['w'])
        b_a = b_a.at[o:o + d].set(p['a'][sec]['b'])
        a = jax.nn.sigmoid(p['skip'][SECTION_TYPE2INDEX[sec]])
        alpha = alpha.at[o:o + d].set(jnp.full((d,), a, jnp.float32))

    return {'w_proj': w_proj, 'b_proj': b_proj.reshape(1, o_proj),
            'w_a': w_a, 'b_a': b_a.reshape(1, d_pad),
            'alpha': alpha.reshape(1, d_pad)}


def pack_section_fc(fc, n_hid):
    """Packed pair heads over the 128-padded state layout: in [*, 2*128] -> out [*, 128]."""
    dims, offs, d_all = _sec_layout(n_hid)
    d_pad = _round_up(d_all, 128)
    W = jnp.zeros((d_pad, 2 * d_pad), jnp.float32)
    b = jnp.zeros((d_pad,), jnp.float32)
    for sec in SECTIONS:
        d, oo = dims[sec], offs[sec]
        w_sec = fc[sec]['w']                       # [d, 2d] = [sec_s | sec_t]
        W = W.at[oo:oo + d, offs[sec]:offs[sec] + d].set(w_sec[:, :d])
        W = W.at[oo:oo + d, d_pad + offs[sec]:d_pad + offs[sec] + d].set(w_sec[:, d:])
        b = b.at[oo:oo + d].set(fc[sec]['b'])
    return {'w': W, 'b': b.reshape(1, d_pad)}


# ----------------------------------------------------------------------------
# DisenPaperEncoder forward (4 pallas_calls total)
# ----------------------------------------------------------------------------
def disen_paper_encoder_forward(packed, text_ids, masks_bd, batch_pair,
                                batch_shuf_paper):
    n_hid = N_HID
    dg = n_hid // 2
    dims, offs, d_all = _sec_layout(n_hid)
    d_pad = _round_up(d_all, 128)
    N, T = text_ids[TEXT_SECTIONS[0]].shape

    # ---- HGTLayer_intra: one fused GRU over all three text sections ----
    ids_all = jnp.concatenate([text_ids[s] for s in TEXT_SECTIONS], axis=0)  # [3N, T]
    M = ids_all.shape[0]
    lens = jnp.sum((ids_all > 0).astype(jnp.int32), axis=1)
    # gather embeddings directly in time-major layout: row = t*M + m
    x_tm = jnp.take(packed['emb_vocab'],
                    jnp.transpose(ids_all).reshape(-1), axis=0)              # [T*M, H]
    lens_f = lens.astype(jnp.float32).reshape(M, 1)
    out_seq, h_last = pallas_gru_fused(x_tm, lens_f, packed['gru'])

    seq_states, general_parts, specific = {}, [], {}
    for i, sec in enumerate(TEXT_SECTIONS):
        h_sec = h_last[i * N:(i + 1) * N]                                    # [N, H]
        seq_states[sec] = out_seq[i * N:(i + 1) * N].reshape(N, T, n_hid)
        general_parts.append(h_sec[:, :dg])        # h_last.chunk(2): general half
        specific[sec] = h_sec[:, dg:]              #                  specific half
    specific['relate'] = jnp.concatenate([specific[s] for s in TEXT_SECTIONS], axis=-1)
    general = general_parts[0] + general_parts[1] + general_parts[2]

    # ---- pack node states (padded to 128 lanes); rows 0:N states, N:2N shuf ----
    states_cat = jnp.concatenate(
        [general] + [specific[s] for s in EDGE_SECTIONS], axis=-1)           # [N, 112]
    states_pad = jnp.concatenate(
        [states_cat, jnp.zeros((N, d_pad - d_all), jnp.float32)], axis=-1)   # [N, 128]
    S = jnp.concatenate([states_pad, states_pad[batch_shuf_paper]], axis=0)  # [2N, 128]

    # ---- HGTLayer_inter graph layers: ONE fused kernel per layer ----
    for lw in packed['layers']:
        S = pallas_graph_layer(S, lw, masks_bd, n_hid)

    states_final = S[:N, :d_all]
    shuf_final = S[N:, :d_all]

    # ---- packed pair heads over the padded layout (one call) ----
    idx_s = batch_pair[:, 0]
    idx_t = batch_pair[:, 1]
    pair_in = jnp.concatenate([S[:N][idx_s], S[:N][idx_t]], axis=-1)         # [P, 256]
    pair_out = pallas_linear(pair_in, packed['pair']['w'], packed['pair']['b'])
    general_pair = pair_out[:, offs['general']:offs['general'] + dims['general']]
    specific_pair = {sec: pair_out[:, offs[sec]:offs[sec] + dims[sec]]
                     for sec in EDGE_SECTIONS}

    mutual_loss = None  # use_mutual = False

    node_data = {}
    for sec in SECTIONS:
        o, d = offs[sec], dims[sec]
        node_data[sec + '_states'] = states_final[:, o:o + d]
        node_data['shuf_' + sec + '_states'] = shuf_final[:, o:o + d]
    for sec in TEXT_SECTIONS:
        node_data[sec + '_seq_states'] = seq_states[sec]
    return node_data, general_pair, specific_pair, mutual_loss


# ----------------------------------------------------------------------------
# Driver
# ----------------------------------------------------------------------------
if __name__ == "__main__":
    key = jax.random.PRNGKey(0)
    keys = jax.random.split(key, 16)
    n_hid = N_HID

    raw = {
        'emb_vocab': jax.random.normal(keys[0], (VOCAB, n_hid), jnp.float32) * 0.1,
        'gru': init_gru(keys[1], n_hid),
        'gcs_inter': [init_hgt_inter(keys[2 + i], n_hid)
                      for i in range(N_GRAPHENC_LAYERS)],
    }
    fc_keys = jax.random.split(keys[5], 5)
    raw['section_fc'] = {
        'general': init_linear(fc_keys[0], n_hid, n_hid // 2),
        'intro': init_linear(fc_keys[1], n_hid, n_hid // 2),
        'method': init_linear(fc_keys[2], n_hid, n_hid // 2),
        'experiment': init_linear(fc_keys[3], n_hid, n_hid // 2),
        'relate': init_linear(fc_keys[4], 3 * n_hid, 3 * n_hid // 2),
    }

    # pack ONCE, outside the jitted forward (review: keep packing off the step)
    packed = {
        'emb_vocab': raw['emb_vocab'],
        'gru': {'w_ih': raw['gru']['w_ih'], 'w_hh': raw['gru']['w_hh'],
                'b_ih': raw['gru']['b_ih'].reshape(1, -1),
                'b_hh': raw['gru']['b_hh'].reshape(1, -1)},
        'layers': [pack_inter_layer(p, n_hid) for p in raw['gcs_inter']],
        'pair': pack_section_fc(raw['section_fc'], n_hid),
    }

    # Section texts: nonzero-token prefix, zero padding; row 0 has full length.
    text_ids = {}
    tkeys = jax.random.split(keys[6], 2 * len(TEXT_SECTIONS))
    for i, sec in enumerate(TEXT_SECTIONS):
        toks = jax.random.randint(tkeys[2 * i], (N_PAPER, SEQ_LEN), 1, VOCAB)
        lens = jax.random.randint(tkeys[2 * i + 1], (N_PAPER,), 1, SEQ_LEN + 1)
        lens = lens.at[0].set(SEQ_LEN)
        mask = jnp.arange(SEQ_LEN)[None, :] < lens[:, None]
        text_ids[sec] = jnp.where(mask, toks, 0).astype(jnp.int32)

    # Dense adjacency per edge type: A[dst, src], every dst has >= 1 in-edge.
    adjs = {}
    akeys = jax.random.split(keys[7], len(EDGE_SECTIONS))
    ring = jnp.roll(jnp.eye(N_PAPER, dtype=jnp.float32), 1, axis=1)
    for ak, sec in zip(akeys, EDGE_SECTIONS):
        rand = (jax.random.uniform(ak, (N_PAPER, N_PAPER)) < 0.4).astype(jnp.float32)
        adjs[sec] = jnp.maximum(rand, ring)

    # block-diagonal masks over the stacked (states | shuf_states) rows
    zero = jnp.zeros((N_PAPER, N_PAPER), jnp.float32)
    masks_bd = jnp.stack(
        [jnp.block([[adjs[sec], zero], [zero, adjs[sec]]]) for sec in EDGE_SECTIONS],
        axis=0)                                                # [4, 2N, 2N]

    batch_pair = jax.random.randint(keys[8], (N_PAIRS, 2), 0, N_PAPER)
    batch_shuf_paper = jax.random.permutation(keys[9], N_PAPER)

    fwd = jax.jit(disen_paper_encoder_forward)
    node_data, general_pair, specific_pair, mutual_loss = fwd(
        packed, text_ids, masks_bd, batch_pair, batch_shuf_paper)
    jax.block_until_ready((node_data, general_pair, specific_pair))
    print("KERNEL_OK")
</pallas_src>

<mosaic_0001>
module attributes {stable_mosaic.version = 11 : i64} {
  func.func @_gru_fused_kernel(%arg0: i32, %arg1: memref<192x32xf32, #tpu.memory_space<vmem>>, %arg2: memref<24x1xf32, #tpu.memory_space<vmem>>, %arg3: memref<96x32xf32, #tpu.memory_space<vmem>>, %arg4: memref<1x96xf32, #tpu.memory_space<vmem>>, %arg5: memref<96x32xf32, #tpu.memory_space<vmem>>, %arg6: memref<1x96xf32, #tpu.memory_space<vmem>>, %arg7: memref<24x256xf32, #tpu.memory_space<vmem>>, %arg8: memref<24x32xf32, #tpu.memory_space<vmem>>) attributes {dimension_semantics = [#tpu.dimension_semantics<arbitrary>], iteration_bounds = array<i64: 1>, scalar_prefetch = 0 : i64, scratch_operands = 0 : i64, tpu.core_type = #tpu.core_type<tc>, window_params = [{pipeline_mode = #tpu.pipeline_mode<synchronous>, transform_indices = @transform_0, window_bounds = array<i64: 192, 32>}, {pipeline_mode = #tpu.pipeline_mode<synchronous>, transform_indices = @transform_1, window_bounds = array<i64: 24, 1>}, {pipeline_mode = #tpu.pipeline_mode<synchronous>, transform_indices = @transform_2, window_bounds = array<i64: 96, 32>}, {pipeline_mode = #tpu.pipeline_mode<synchronous>, transform_indices = @transform_3, window_bounds = array<i64: 1, 96>}, {pipeline_mode = #tpu.pipeline_mode<synchronous>, transform_indices = @transform_4, window_bounds = array<i64: 96, 32>}, {pipeline_mode = #tpu.pipeline_mode<synchronous>, transform_indices = @transform_5, window_bounds = array<i64: 1, 96>}, {pipeline_mode = #tpu.pipeline_mode<synchronous>, transform_indices = @transform_6, window_bounds = array<i64: 24, 256>}, {pipeline_mode = #tpu.pipeline_mode<synchronous>, transform_indices = @transform_7, window_bounds = array<i64: 24, 32>}]} {
    %c0 = arith.constant 0 : index
    %c0_0 = arith.constant 0 : index
    %0 = vector.load %arg1[%c0, %c0_0] : memref<192x32xf32, #tpu.memory_space<vmem>>, vector<192x32xf32>
    %c0_1 = arith.constant 0 : index
    %c0_2 = arith.constant 0 : index
    %1 = vector.load %arg3[%c0_1, %c0_2] : memref<96x32xf32, #tpu.memory_space<vmem>>, vector<96x32xf32>
    %cst = arith.constant dense<0.000000e+00> : vector<192x96xf32>
    %2 = tpu.matmul %0, %1, %cst {dimension_numbers = #tpu.dot_dimension_numbers<[1], [1], [0], [0], [0, 0, 1, 0], [], []>} : vector<192x32xf32>, vector<96x32xf32>, vector<192x96xf32> -> vector<192x96xf32>
    %c0_3 = arith.constant 0 : index
    %c0_4 = arith.constant 0 : index
    %3 = vector.load %arg4[%c0_3, %c0_4] : memref<1x96xf32, #tpu.memory_space<vmem>>, vector<1x96xf32>
    %4 = vector.broadcast %3 : vector<1x96xf32> to vector<192x96xf32>
    %5 = arith.addf %2, %4 : vector<192x96xf32>
    %c0_5 = arith.constant 0 : index
    %c0_6 = arith.constant 0 : index
    %6 = vector.load %arg5[%c0_5, %c0_6] : memref<96x32xf32, #tpu.memory_space<vmem>>, vector<96x32xf32>
    %c0_7 = arith.constant 0 : index
    %c0_8 = arith.constant 0 : index
    %7 = vector.load %arg6[%c0_7, %c0_8] : memref<1x96xf32, #tpu.memory_space<vmem>>, vector<1x96xf32>
    %c0_9 = arith.constant 0 : index
    %c0_10 = arith.constant 0 : index
    %8 = vector.load %arg2[%c0_9, %c0_10] : memref<24x1xf32, #tpu.memory_space<vmem>>, vector<24x1xf32>
    %cst_11 = arith.constant 0.000000e+00 : f32
    %9 = vector.broadcast %cst_11 : f32 to vector<24x32xf32>
    %10 = vector.extract_strided_slice %5 {offsets = [0, 0], sizes = [24, 96], strides = [1, 1]} : vector<192x96xf32> to vector<24x96xf32>
    %cst_12 = arith.constant dense<0.000000e+00> : vector<24x96xf32>
    %11 = tpu.matmul %9, %6, %cst_12 {dimension_numbers = #tpu.dot_dimension_numbers<[1], [1], [0], [0], [0, 0, 1, 0], [], []>} : vector<24x32xf32>, vector<96x32xf32>, vector<24x96xf32> -> vector<24x96xf32>
    %12 = vector.broadcast %7 : vector<1x96xf32> to vector<24x96xf32>
    %13 = arith.addf %11, %12 : vector<24x96xf32>
    %14 = vector.extract_strided_slice %10 {offsets = [0, 0], sizes = [24, 32], strides = [1, 1]} : vector<24x96xf32> to vector<24x32xf32>
    %15 = vector.extract_strided_slice %13 {offsets = [0, 0], sizes = [24, 32], strides = [1, 1]} : vector<24x96xf32> to vector<24x32xf32>
    %16 = arith.addf %14, %15 : vector<24x32xf32>
    %17 = arith.negf %16 : vector<24x32xf32>
    %18 = math.exp %17 : vector<24x32xf32>
    %cst_13 = arith.constant 1.000000e+00 : f32
    %19 = vector.broadcast %cst_13 : f32 to vector<24x32xf32>
    %20 = arith.addf %19, %18 : vector<24x32xf32>
    %21 = arith.divf %19, %20 : vector<24x32xf32>
    %22 = vector.extract_strided_slice %10 {offsets = [0, 32], sizes = [24, 32], strides = [1, 1]} : vector<24x96xf32> to vector<24x32xf32>
    %23 = vector.extract_strided_slice %13 {offsets = [0, 32], sizes = [24, 32], strides = [1, 1]} : vector<24x96xf32> to vector<24x32xf32>
    %24 = arith.addf %22, %23 : vector<24x32xf32>
    %25 = arith.negf %24 : vector<24x32xf32>
    %26 = math.exp %25 : vector<24x32xf32>
    %cst_14 = arith.constant 1.000000e+00 : f32
    %27 = vector.broadcast %cst_14 : f32 to vector<24x32xf32>
    %28 = arith.addf %27, %26 : vector<24x32xf32>
    %29 = arith.divf %27, %28 : vector<24x32xf32>
    %30 = vector.extract_strided_slice %10 {offsets = [0, 64], sizes = [24, 32], strides = [1, 1]} : vector<24x96xf32> to vector<24x32xf32>
    %31 = vector.extract_strided_slice %13 {offsets = [0, 64], sizes = [24, 32], strides = [1, 1]} : vector<24x96xf32> to vector<24x32xf32>
    %32 = arith.mulf %21, %31 : vector<24x32xf32>
    %33 = arith.addf %30, %32 : vector<24x32xf32>
    %34 = math.tanh %33 : vector<24x32xf32>
    %cst_15 = arith.constant 1.000000e+00 : f32
    %35 = vector.broadcast %cst_15 : f32 to vector<24x32xf32>
    %36 = arith.subf %35, %29 : vector<24x32xf32>
    %37 = arith.mulf %36, %34 : vector<24x32xf32>
    %38 = arith.mulf %29, %9 : vector<24x32xf32>
    %39 = arith.addf %37, %38 : vector<24x32xf32>
    %cst_16 = arith.constant 0.000000e+00 : f32
    %40 = vector.broadcast %cst_16 : f32 to vector<24x1xf32>
    %41 = arith.cmpf ogt, %8, %40 : vector<24x1xf32>
    %42 = arith.extui %41 : vector<24x1xi1> to vector<24x1xi32>
    %43 = arith.sitofp %42 : vector<24x1xi32> to vector<24x1xf32>
    %44 = vector.broadcast %43 : vector<24x1xf32> to vector<24x32xf32>
    %45 = arith.mulf %44, %39 : vector<24x32xf32>
    %cst_17 = arith.constant 1.000000e+00 : f32
    %46 = vector.broadcast %cst_17 : f32 to vector<24x1xf32>
    %47 = arith.subf %46, %43 : vector<24x1xf32>
    %48 = vector.broadcast %47 : vector<24x1xf32> to vector<24x32xf32>
    %49 = arith.mulf %48, %9 : vector<24x32xf32>
    %50 = arith.addf %45, %49 : vector<24x32xf32>
    %51 = vector.broadcast %43 : vector<24x1xf32> to vector<24x32xf32>
    %52 = arith.mulf %51, %39 : vector<24x32xf32>
    %c0_18 = arith.constant 0 : index
    %c0_19 = arith.constant 0 : index
    %53 = vector.load %arg7[%c0_18, %c0_19] : memref<24x256xf32, #tpu.memory_space<vmem>>, vector<24x32xf32>
    tpu.vector_store %arg7[%c0_18, %c0_19], %52 {strides = array<i32>} : memref<24x256xf32, #tpu.memory_space<vmem>>, vector<24x32xf32>,
    %54 = vector.extract_strided_slice %5 {offsets = [24, 0], sizes = [24, 96], strides = [1, 1]} : vector<192x96xf32> to vector<24x96xf32>
    %cst_20 = arith.constant dense<0.000000e+00> : vector<24x96xf32>
    %55 = tpu.matmul %50, %6, %cst_20 {dimension_numbers = #tpu.dot_dimension_numbers<[1], [1], [0], [0], [0, 0, 1, 0], [], []>} : vector<24x32xf32>, vector<96x32xf32>, vector<24x96xf32> -> vector<24x96xf32>
    %56 = vector.broadcast %7 : vector<1x96xf32> to vector<24x96xf32>
    %57 = arith.addf %55, %56 : vector<24x96xf32>
    %58 = vector.extract_strided_slice %54 {offsets = [0, 0], sizes = [24, 32], strides = [1, 1]} : vector<24x96xf32> to vector<24x32xf32>
    %59 = vector.extract_strided_slice %57 {offsets = [0, 0], sizes = [24, 32], strides = [1, 1]} : vector<24x96xf32> to vector<24x32xf32>
    %60 = arith.addf %58, %59 : vector<24x32xf32>
    %61 = arith.negf %60 : vector<24x32xf32>
    %62 = math.exp %61 : vector<24x32xf32>
    %cst_21 = arith.constant 1.000000e+00 : f32
    %63 = vector.broadcast %cst_21 : f32 to vector<24x32xf32>
    %64 = arith.addf %63, %62 : vector<24x32xf32>
    %65 = arith.divf %63, %64 : vector<24x32xf32>
    %66 = vector.extract_strided_slice %54 {offsets = [0, 32], sizes = [24, 32], strides = [1, 1]} : vector<24x96xf32> to vector<24x32xf32>
    %67 = vector.extract_strided_slice %57 {offsets = [0, 32], sizes = [24, 32], strides = [1, 1]} : vector<24x96xf32> to vector<24x32xf32>
    %68 = arith.addf %66, %67 : vector<24x32xf32>
    %69 = arith.negf %68 : vector<24x32xf32>
    %70 = math.exp %69 : vector<24x32xf32>
    %cst_22 = arith.constant 1.000000e+00 : f32
    %71 = vector.broadcast %cst_22 : f32 to vector<24x32xf32>
    %72 = arith.addf %71, %70 : vector<24x32xf32>
    %73 = arith.divf %71, %72 : vector<24x32xf32>
    %74 = vector.extract_strided_slice %54 {offsets = [0, 64], sizes = [24, 32], strides = [1, 1]} : vector<24x96xf32> to vector<24x32xf32>
    %75 = vector.extract_strided_slice %57 {offsets = [0, 64], sizes = [24, 32], strides = [1, 1]} : vector<24x96xf32> to vector<24x32xf32>
    %76 = arith.mulf %65, %75 : vector<24x32xf32>
    %77 = arith.addf %74, %76 : vector<24x32xf32>
    %78 = math.tanh %77 : vector<24x32xf32>
    %cst_23 = arith.constant 1.000000e+00 : f32
    %79 = vector.broadcast %cst_23 : f32 to vector<24x32xf32>
    %80 = arith.subf %79, %73 : vector<24x32xf32>
    %81 = arith.mulf %80, %78 : vector<24x32xf32>
    %82 = arith.mulf %73, %50 : vector<24x32xf32>
    %83 = arith.addf %81, %82 : vector<24x32xf32>
    %cst_24 = arith.constant 1.000000e+00 : f32
    %84 = vector.broadcast %cst_24 : f32 to vector<24x1xf32>
    %85 = arith.cmpf ogt, %8, %84 : vector<24x1xf32>
    %86 = arith.extui %85 : vector<24x1xi1> to vector<24x1xi32>
    %87 = arith.sitofp %86 : vector<24x1xi32> to vector<24x1xf32>
    %88 = vector.broadcast %87 : vector<24x1xf32> to vector<24x32xf32>
    %89 = arith.mulf %88, %83 : vector<24x32xf32>
    %cst_25 = arith.constant 1.000000e+00 : f32
    %90 = vector.broadcast %cst_25 : f32 to vector<24x1xf32>
    %91 = arith.subf %90, %87 : vector<24x1xf32>
    %92 = vector.broadcast %91 : vector<24x1xf32> to vector<24x32xf32>
    %93 = arith.mulf %92, %50 : vector<24x32xf32>
    %94 = arith.addf %89, %93 : vector<24x32xf32>
    %95 = vector.broadcast %87 : vector<24x1xf32> to vector<24x32xf32>
    %96 = arith.mulf %95, %83 : vector<24x32xf32>
    %c0_26 = arith.constant 0 : index
    %c32 = arith.constant 32 : index
    %97 = vector.load %arg7[%c0_26, %c32] : memref<24x256xf32, #tpu.memory_space<vmem>>, vector<24x32xf32>
    tpu.vector_store %arg7[%c0_26, %c32], %96 {strides = array<i32>} : memref<24x256xf32, #tpu.memory_space<vmem>>, vector<24x32xf32>,
    %98 = vector.extract_strided_slice %5 {offsets = [48, 0], sizes = [24, 96], strides = [1, 1]} : vector<192x96xf32> to vector<24x96xf32>
    %cst_27 = arith.constant dense<0.000000e+00> : vector<24x96xf32>
    %99 = tpu.matmul %94, %6, %cst_27 {dimension_numbers = #tpu.dot_dimension_numbers<[1], [1], [0], [0], [0, 0, 1, 0], [], []>} : vector<24x32xf32>, vector<96x32xf32>, vector<24x96xf32> -> vector<24x96xf32>
    %100 = vector.broadcast %7 : vector<1x96xf32> to vector<24x96xf32>
    %101 = arith.addf %99, %100 : vector<24x96xf32>
    %102 = vector.extract_strided_slice %98 {offsets = [0, 0], sizes = [24, 32], strides = [1, 1]} : vector<24x96xf32> to vector<24x32xf32>
    %103 = vector.extract_strided_slice %101 {offsets = [0, 0], sizes = [24, 32], strides = [1, 1]} : vector<24x96xf32> to vector<24x32xf32>
    %104 = arith.addf %102, %103 : vector<24x32xf32>
    %105 = arith.negf %104 : vector<24x32xf32>
    %106 = math.exp %105 : vector<24x32xf32>
    %cst_28 = arith.constant 1.000000e+00 : f32
    %107 = vector.broadcast %cst_28 : f32 to vector<24x32xf32>
    %108 = arith.addf %107, %106 : vector<24x32xf32>
    %109 = arith.divf %107, %108 : vector<24x32xf32>
    %110 = vector.extract_strided_slice %98 {offsets = [0, 32], sizes = [24, 32], strides = [1, 1]} : vector<24x96xf32> to vector<24x32xf32>
    %111 = vector.extract_strided_slice %101 {offsets = [0, 32], sizes = [24, 32], strides = [1, 1]} : vector<24x96xf32> to vector<24x32xf32>
    %112 = arith.addf %110, %111 : vector<24x32xf32>
    %113 = arith.negf %112 : vector<24x32xf32>
    %114 = math.exp %113 : vector<24x32xf32>
    %cst_29 = arith.constant 1.000000e+00 : f32
    %115 = vector.broadcast %cst_29 : f32 to vector<24x32xf32>
    %116 = arith.addf %115, %114 : vector<24x32xf32>
    %117 = arith.divf %115, %116 : vector<24x32xf32>
    %118 = vector.extract_strided_slice %98 {offsets = [0, 64], sizes = [24, 32], strides = [1, 1]} : vector<24x96xf32> to vector<24x32xf32>
    %119 = vector.extract_strided_slice %101 {offsets = [0, 64], sizes = [24, 32], strides = [1, 1]} : vector<24x96xf32> to vector<24x32xf32>
    %120 = arith.mulf %109, %119 : vector<24x32xf32>
    %121 = arith.addf %118, %120 : vector<24x32xf32>
    %122 = math.tanh %121 : vector<24x32xf32>
    %cst_30 = arith.constant 1.000000e+00 : f32
    %123 = vector.broadcast %cst_30 : f32 to vector<24x32xf32>
    %124 = arith.subf %123, %117 : vector<24x32xf32>
    %125 = arith.mulf %124, %122 : vector<24x32xf32>
    %126 = arith.mulf %117, %94 : vector<24x32xf32>
    %127 = arith.addf %125, %126 : vector<24x32xf32>
    %cst_31 = arith.constant 2.000000e+00 : f32
    %128 = vector.broadcast %cst_31 : f32 to vector<24x1xf32>
    %129 = arith.cmpf ogt, %8, %128 : vector<24x1xf32>
    %130 = arith.extui %129 : vector<24x1xi1> to vector<24x1xi32>
    %131 = arith.sitofp %130 : vector<24x1xi32> to vector<24x1xf32>
    %132 = vector.broadcast %131 : vector<24x1xf32> to vector<24x32xf32>
    %133 = arith.mulf %132, %127 : vector<24x32xf32>
    %cst_32 = arith.constant 1.000000e+00 : f32
    %134 = vector.broadcast %cst_32 : f32 to vector<24x1xf32>
    %135 = arith.subf %134, %131 : vector<24x1xf32>
    %136 = vector.broadcast %135 : vector<24x1xf32> to vector<24x32xf32>
    %137 = arith.mulf %136, %94 : vector<24x32xf32>
    %138 = arith.addf %133, %137 : vector<24x32xf32>
    %139 = vector.broadcast %131 : vector<24x1xf32> to vector<24x32xf32>
    %140 = arith.mulf %139, %127 : vector<24x32xf32>
    %c0_33 = arith.constant 0 : index
    %c64 = arith.constant 64 : index
    %141 = vector.load %arg7[%c0_33, %c64] : memref<24x256xf32, #tpu.memory_space<vmem>>, vector<24x32xf32>
    tpu.vector_store %arg7[%c0_33, %c64], %140 {strides = array<i32>} : memref<24x256xf32, #tpu.memory_space<vmem>>, vector<24x32xf32>,
    %142 = vector.extract_strided_slice %5 {offsets = [72, 0], sizes = [24, 96], strides = [1, 1]} : vector<192x96xf32> to vector<24x96xf32>
    %cst_34 = arith.constant dense<0.000000e+00> : vector<24x96xf32>
    %143 = tpu.matmul %138, %6, %cst_34 {dimension_numbers = #tpu.dot_dimension_numbers<[1], [1], [0], [0], [0, 0, 1, 0], [], []>} : vector<24x32xf32>, vector<96x32xf32>, vector<24x96xf32> -> vector<24x96xf32>
    %144 = vector.broadcast %7 : vector<1x96xf32> to vector<24x96xf32>
    %145 = arith.addf %143, %144 : vector<24x96xf32>
    %146 = vector.extract_strided_slice %142 {offsets = [0, 0], sizes = [24, 32], strides = [1, 1]} : vector<24x96xf32> to vector<24x32xf32>
    %147 = vector.extract_strided_slice %145 {offsets = [0, 0], sizes = [24, 32], strides = [1, 1]} : vector<24x96xf32> to vector<24x32xf32>
    %148 = arith.addf %146, %147 : vector<24x32xf32>
    %149 = arith.negf %148 : vector<24x32xf32>
    %150 = math.exp %149 : vector<24x32xf32>
    %cst_35 = arith.constant 1.000000e+00 : f32
    %151 = vector.broadcast %cst_35 : f32 to vector<24x32xf32>
    %152 = arith.addf %151, %150 : vector<24x32xf32>
    %153 = arith.divf %151, %152 : vector<24x32xf32>
    %154 = vector.extract_strided_slice %142 {offsets = [0, 32], sizes = [24, 32], strides = [1, 1]} : vector<24x96xf32> to vector<24x32xf32>
    %155 = vector.extract_strided_slice %145 {offsets = [0, 32], sizes = [24, 32], strides = [1, 1]} : vector<24x96xf32> to vector<24x32xf32>
    %156 = arith.addf %154, %155 : vector<24x32xf32>
    %157 = arith.negf %156 : vector<24x32xf32>
    %158 = math.exp %157 : vector<24x32xf32>
    %cst_36 = arith.constant 1.000000e+00 : f32
    %159 = vector.broadcast %cst_36 : f32 to vector<24x32xf32>
    %160 = arith.addf %159, %158 : vector<24x32xf32>
    %161 = arith.divf %159, %160 : vector<24x32xf32>
    %162 = vector.extract_strided_slice %142 {offsets = [0, 64], sizes = [24, 32], strides = [1, 1]} : vector<24x96xf32> to vector<24x32xf32>
    %163 = vector.extract_strided_slice %145 {offsets = [0, 64], sizes = [24, 32], strides = [1, 1]} : vector<24x96xf32> to vector<24x32xf32>
    %164 = arith.mulf %153, %163 : vector<24x32xf32>
    %165 = arith.addf %162, %164 : vector<24x32xf32>
    %166 = math.tanh %165 : vector<24x32xf32>
    %cst_37 = arith.constant 1.000000e+00 : f32
    %167 = vector.broadcast %cst_37 : f32 to vector<24x32xf32>
    %168 = arith.subf %167, %161 : vector<24x32xf32>
    %169 = arith.mulf %168, %166 : vector<24x32xf32>
    %170 = arith.mulf %161, %138 : vector<24x32xf32>
    %171 = arith.addf %169, %170 : vector<24x32xf32>
    %cst_38 = arith.constant 3.000000e+00 : f32
    %172 = vector.broadcast %cst_38 : f32 to vector<24x1xf32>
    %173 = arith.cmpf ogt, %8, %172 : vector<24x1xf32>
    %174 = arith.extui %173 : vector<24x1xi1> to vector<24x1xi32>
    %175 = arith.sitofp %174 : vector<24x1xi32> to vector<24x1xf32>
    %176 = vector.broadcast %175 : vector<24x1xf32> to vector<24x32xf32>
    %177 = arith.mulf %176, %171 : vector<24x32xf32>
    %cst_39 = arith.constant 1.000000e+00 : f32
    %178 = vector.broadcast %cst_39 : f32 to vector<24x1xf32>
    %179 = arith.subf %178, %175 : vector<24x1xf32>
    %180 = vector.broadcast %179 : vector<24x1xf32> to vector<24x32xf32>
    %181 = arith.mulf %180, %138 : vector<24x32xf32>
    %182 = arith.addf %177, %181 : vector<24x32xf32>
    %183 = vector.broadcast %175 : vector<24x1xf32> to vector<24x32xf32>
    %184 = arith.mulf %183, %171 : vector<24x32xf32>
    %c0_40 = arith.constant 0 : index
    %c96 = arith.constant 96 : index
    %185 = vector.load %arg7[%c0_40, %c96] : memref<24x256xf32, #tpu.memory_space<vmem>>, vector<24x32xf32>
    tpu.vector_store %arg7[%c0_40, %c96], %184 {strides = array<i32>} : memref<24x256xf32, #tpu.memory_space<vmem>>, vector<24x32xf32>,
    %186 = vector.extract_strided_slice %5 {offsets = [96, 0], sizes = [24, 96], strides = [1, 1]} : vector<192x96xf32> to vector<24x96xf32>
    %cst_41 = arith.constant dense<0.000000e+00> : vector<24x96xf32>
    %187 = tpu.matmul %182, %6, %cst_41 {dimension_numbers = #tpu.dot_dimension_numbers<[1], [1], [0], [0], [0, 0, 1, 0], [], []>} : vector<24x32xf32>, vector<96x32xf32>, vector<24x96xf32> -> vector<24x96xf32>
    %188 = vector.broadcast %7 : vector<1x96xf32> to vector<24x96xf32>
    %189 = arith.addf %187, %188 : vector<24x96xf32>
    %190 = vector.extract_strided_slice %186 {offsets = [0, 0], sizes = [24, 32], strides = [1, 1]} : vector<24x96xf32> to vector<24x32xf32>
    %191 = vector.extract_strided_slice %189 {offsets = [0, 0], sizes = [24, 32], strides = [1, 1]} : vector<24x96xf32> to vector<24x32xf32>
    %192 = arith.addf %190, %191 : vector<24x32xf32>
    %193 = arith.negf %192 : vector<24x32xf32>
    %194 = math.exp %193 : vector<24x32xf32>
    %cst_42 = arith.constant 1.000000e+00 : f32
    %195 = vector.broadcast %cst_42 : f32 to vector<24x32xf32>
    %196 = arith.addf %195, %194 : vector<24x32xf32>
    %197 = arith.divf %195, %196 : vector<24x32xf32>
    %198 = vector.extract_strided_slice %186 {offsets = [0, 32], sizes = [24, 32], strides = [1, 1]} : vector<24x96xf32> to vector<24x32xf32>
    %199 = vector.extract_strided_slice %189 {offsets = [0, 32], sizes = [24, 32], strides = [1, 1]} : vector<24x96xf32> to vector<24x32xf32>
    %200 = arith.addf %198, %199 : vector<24x32xf32>
    %201 = arith.negf %200 : vector<24x32xf32>
    %202 = math.exp %201 : vector<24x32xf32>
    %cst_43 = arith.constant 1.000000e+00 : f32
    %203 = vector.broadcast %cst_43 : f32 to vector<24x32xf32>
    %204 = arith.addf %203, %202 : vector<24x32xf32>
    %205 = arith.divf %203, %204 : vector<24x32xf32>
    %206 = vector.extract_strided_slice %186 {offsets = [0, 64], sizes = [24, 32], strides = [1, 1]} : vector<24x96xf32> to vector<24x32xf32>
    %207 = vector.extract_strided_slice %189 {offsets = [0, 64], sizes = [24, 32], strides = [1, 1]} : vector<24x96xf32> to vector<24x32xf32>
    %208 = arith.mulf %197, %207 : vector<24x32xf32>
    %209 = arith.addf %206, %208 : vector<24x32xf32>
    %210 = math.tanh %209 : vector<24x32xf32>
    %cst_44 = arith.constant 1.000000e+00 : f32
    %211 = vector.broadcast %cst_44 : f32 to vector<24x32xf32>
    %212 = arith.subf %211, %205 : vector<24x32xf32>
    %213 = arith.mulf %212, %210 : vector<24x32xf32>
    %214 = arith.mulf %205, %182 : vector<24x32xf32>
    %215 = arith.addf %213, %214 : vector<24x32xf32>
    %cst_45 = arith.constant 4.000000e+00 : f32
    %216 = vector.broadcast %cst_45 : f32 to vector<24x1xf32>
    %217 = arith.cmpf ogt, %8, %216 : vector<24x1xf32>
    %218 = arith.extui %217 : vector<24x1xi1> to vector<24x1xi32>
    %219 = arith.sitofp %218 : vector<24x1xi32> to vector<24x1xf32>
    %220 = vector.broadcast %219 : vector<24x1xf32> to vector<24x32xf32>
    %221 = arith.mulf %220, %215 : vector<24x32xf32>
    %cst_46 = arith.constant 1.000000e+00 : f32
    %222 = vector.broadcast %cst_46 : f32 to vector<24x1xf32>
    %223 = arith.subf %222, %219 : vector<24x1xf32>
    %224 = vector.broadcast %223 : vector<24x1xf32> to vector<24x32xf32>
    %225 = arith.mulf %224, %182 : vector<24x32xf32>
    %226 = arith.addf %221, %225 : vector<24x32xf32>
    %227 = vector.broadcast %219 : vector<24x1xf32> to vector<24x32xf32>
    %228 = arith.mulf %227, %215 : vector<24x32xf32>
    %c0_47 = arith.constant 0 : index
    %c128 = arith.constant 128 : index
    %229 = vector.load %arg7[%c0_47, %c128] : memref<24x256xf32, #tpu.memory_space<vmem>>, vector<24x32xf32>
    tpu.vector_store %arg7[%c0_47, %c128], %228 {strides = array<i32>} : memref<24x256xf32, #tpu.memory_space<vmem>>, vector<24x32xf32>,
    %230 = vector.extract_strided_slice %5 {offsets = [120, 0], sizes = [24, 96], strides = [1, 1]} : vector<192x96xf32> to vector<24x96xf32>
    %cst_48 = arith.constant dense<0.000000e+00> : vector<24x96xf32>
    %231 = tpu.matmul %226, %6, %cst_48 {dimension_numbers = #tpu.dot_dimension_numbers<[1], [1], [0], [0], [0, 0, 1, 0], [], []>} : vector<24x32xf32>, vector<96x32xf32>, vector<24x96xf32> -> vector<24x96xf32>
    %232 = vector.broadcast %7 : vector<1x96xf32> to vector<24x96xf32>
    %233 = arith.addf %231, %232 : vector<24x96xf32>
    %234 = vector.extract_strided_slice %230 {offsets = [0, 0], sizes = [24, 32], strides = [1, 1]} : vector<24x96xf32> to vector<24x32xf32>
    %235 = vector.extract_strided_slice %233 {offsets = [0, 0], sizes = [24, 32], strides = [1, 1]} : vector<24x96xf32> to vector<24x32xf32>
    %236 = arith.addf %234, %235 : vector<24x32xf32>
    %237 = arith.negf %236 : vector<24x32xf32>
    %238 = math.exp %237 : vector<24x32xf32>
    %cst_49 = arith.constant 1.000000e+00 : f32
    %239 = vector.broadcast %cst_49 : f32 to vector<24x32xf32>
    %240 = arith.addf %239, %238 : vector<24x32xf32>
    %241 = arith.divf %239, %240 : vector<24x32xf32>
    %242 = vector.extract_strided_slice %230 {offsets = [0, 32], sizes = [24, 32], strides = [1, 1]} : vector<24x96xf32> to vector<24x32xf32>
    %243 = vector.extract_strided_slice %233 {offsets = [0, 32], sizes = [24, 32], strides = [1, 1]} : vector<24x96xf32> to vector<24x32xf32>
    %244 = arith.addf %242, %243 : vector<24x32xf32>
    %245 = arith.negf %244 : vector<24x32xf32>
    %246 = math.exp %245 : vector<24x32xf32>
    %cst_50 = arith.constant 1.000000e+00 : f32
    %247 = vector.broadcast %cst_50 : f32 to vector<24x32xf32>
    %248 = arith.addf %247, %246 : vector<24x32xf32>
    %249 = arith.divf %247, %248 : vector<24x32xf32>
    %250 = vector.extract_strided_slice %230 {offsets = [0, 64], sizes = [24, 32], strides = [1, 1]} : vector<24x96xf32> to vector<24x32xf32>
    %251 = vector.extract_strided_slice %233 {offsets = [0, 64], sizes = [24, 32], strides = [1, 1]} : vector<24x96xf32> to vector<24x32xf32>
    %252 = arith.mulf %241, %251 : vector<24x32xf32>
    %253 = arith.addf %250, %252 : vector<24x32xf32>
    %254 = math.tanh %253 : vector<24x32xf32>
    %cst_51 = arith.constant 1.000000e+00 : f32
    %255 = vector.broadcast %cst_51 : f32 to vector<24x32xf32>
    %256 = arith.subf %255, %249 : vector<24x32xf32>
    %257 = arith.mulf %256, %254 : vector<24x32xf32>
    %258 = arith.mulf %249, %226 : vector<24x32xf32>
    %259 = arith.addf %257, %258 : vector<24x32xf32>
    %cst_52 = arith.constant 5.000000e+00 : f32
    %260 = vector.broadcast %cst_52 : f32 to vector<24x1xf32>
    %261 = arith.cmpf ogt, %8, %260 : vector<24x1xf32>
    %262 = arith.extui %261 : vector<24x1xi1> to vector<24x1xi32>
    %263 = arith.sitofp %262 : vector<24x1xi32> to vector<24x1xf32>
    %264 = vector.broadcast %263 : vector<24x1xf32> to vector<24x32xf32>
    %265 = arith.mulf %264, %259 : vector<24x32xf32>
    %cst_53 = arith.constant 1.000000e+00 : f32
    %266 = vector.broadcast %cst_53 : f32 to vector<24x1xf32>
    %267 = arith.subf %266, %263 : vector<24x1xf32>
    %268 = vector.broadcast %267 : vector<24x1xf32> to vector<24x32xf32>
    %269 = arith.mulf %268, %226 : vector<24x32xf32>
    %270 = arith.addf %265, %269 : vector<24x32xf32>
    %271 = vector.broadcast %263 : vector<24x1xf32> to vector<24x32xf32>
    %272 = arith.mulf %271, %259 : vector<24x32xf32>
    %c0_54 = arith.constant 0 : index
    %c160 = arith.constant 160 : index
    %273 = vector.load %arg7[%c0_54, %c160] : memref<24x256xf32, #tpu.memory_space<vmem>>, vector<24x32xf32>
    tpu.vector_store %arg7[%c0_54, %c160], %272 {strides = array<i32>} : memref<24x256xf32, #tpu.memory_space<vmem>>, vector<24x32xf32>,
    %274 = vector.extract_strided_slice %5 {offsets = [144, 0], sizes = [24, 96], strides = [1, 1]} : vector<192x96xf32> to vector<24x96xf32>
    %cst_55 = arith.constant dense<0.000000e+00> : vector<24x96xf32>
    %275 = tpu.matmul %270, %6, %cst_55 {dimension_numbers = #tpu.dot_dimension_numbers<[1], [1], [0], [0], [0, 0, 1, 0], [], []>} : vector<24x32xf32>, vector<96x32xf32>, vector<24x96xf32> -> vector<24x96xf32>
    %276 = vector.broadcast %7 : vector<1x96xf32> to vector<24x96xf32>
    %277 = arith.addf %275, %276 : vector<24x96xf32>
    %278 = vector.extract_strided_slice %274 {offsets = [0, 0], sizes = [24, 32], strides = [1, 1]} : vector<24x96xf32> to vector<24x32xf32>
    %279 = vector.extract_strided_slice %277 {offsets = [0, 0], sizes = [24, 32], strides = [1, 1]} : vector<24x96xf32> to vector<24x32xf32>
    %280 = arith.addf %278, %279 : vector<24x32xf32>
    %281 = arith.negf %280 : vector<24x32xf32>
    %282 = math.exp %281 : vector<24x32xf32>
    %cst_56 = arith.constant 1.000000e+00 : f32
    %283 = vector.broadcast %cst_56 : f32 to vector<24x32xf32>
    %284 = arith.addf %283, %282 : vector<24x32xf32>
    %285 = arith.divf %283, %284 : vector<24x32xf32>
    %286 = vector.extract_strided_slice %274 {offsets = [0, 32], sizes = [24, 32], strides = [1, 1]} : vector<24x96xf32> to vector<24x32xf32>
    %287 = vector.extract_strided_slice %277 {offsets = [0, 32], sizes = [24, 32], strides = [1, 1]} : vector<24x96xf32> to vector<24x32xf32>
    %288 = arith.addf %286, %287 : vector<24x32xf32>
    %289 = arith.negf %288 : vector<24x32xf32>
    %290 = math.exp %289 : vector<24x32xf32>
    %cst_57 = arith.constant 1.000000e+00 : f32
    %291 = vector.broadcast %cst_57 : f32 to vector<24x32xf32>
    %292 = arith.addf %291, %290 : vector<24x32xf32>
    %293 = arith.divf %291, %292 : vector<24x32xf32>
    %294 = vector.extract_strided_slice %274 {offsets = [0, 64], sizes = [24, 32], strides = [1, 1]} : vector<24x96xf32> to vector<24x32xf32>
    %295 = vector.extract_strided_slice %277 {offsets = [0, 64], sizes = [24, 32], strides = [1, 1]} : vector<24x96xf32> to vector<24x32xf32>
    %296 = arith.mulf %285, %295 : vector<24x32xf32>
    %297 = arith.addf %294, %296 : vector<24x32xf32>
    %298 = math.tanh %297 : vector<24x32xf32>
    %cst_58 = arith.constant 1.000000e+00 : f32
    %299 = vector.broadcast %cst_58 : f32 to vector<24x32xf32>
    %300 = arith.subf %299, %293 : vector<24x32xf32>
    %301 = arith.mulf %300, %298 : vector<24x32xf32>
    %302 = arith.mulf %293, %270 : vector<24x32xf32>
    %303 = arith.addf %301, %302 : vector<24x32xf32>
    %cst_59 = arith.constant 6.000000e+00 : f32
    %304 = vector.broadcast %cst_59 : f32 to vector<24x1xf32>
    %305 = arith.cmpf ogt, %8, %304 : vector<24x1xf32>
    %306 = arith.extui %305 : vector<24x1xi1> to vector<24x1xi32>
    %307 = arith.sitofp %306 : vector<24x1xi32> to vector<24x1xf32>
    %308 = vector.broadcast %307 : vector<24x1xf32> to vector<24x32xf32>
    %309 = arith.mulf %308, %303 : vector<24x32xf32>
    %cst_60 = arith.constant 1.000000e+00 : f32
    %310 = vector.broadcast %cst_60 : f32 to vector<24x1xf32>
    %311 = arith.subf %310, %307 : vector<24x1xf32>
    %312 = vector.broadcast %311 : vector<24x1xf32> to vector<24x32xf32>
    %313 = arith.mulf %312, %270 : vector<24x32xf32>
    %314 = arith.addf %309, %313 : vector<24x32xf32>
    %315 = vector.broadcast %307 : vector<24x1xf32> to vector<24x32xf32>
    %316 = arith.mulf %315, %303 : vector<24x32xf32>
    %c0_61 = arith.constant 0 : index
    %c192 = arith.constant 192 : index
    %317 = vector.load %arg7[%c0_61, %c192] : memref<24x256xf32, #tpu.memory_space<vmem>>, vector<24x32xf32>
    tpu.vector_store %arg7[%c0_61, %c192], %316 {strides = array<i32>} : memref<24x256xf32, #tpu.memory_space<vmem>>, vector<24x32xf32>,
    %318 = vector.extract_strided_slice %5 {offsets = [168, 0], sizes = [24, 96], strides = [1, 1]} : vector<192x96xf32> to vector<24x96xf32>
    %cst_62 = arith.constant dense<0.000000e+00> : vector<24x96xf32>
    %319 = tpu.matmul %314, %6, %cst_62 {dimension_numbers = #tpu.dot_dimension_numbers<[1], [1], [0], [0], [0, 0, 1, 0], [], []>} : vector<24x32xf32>, vector<96x32xf32>, vector<24x96xf32> -> vector<24x96xf32>
    %320 = vector.broadcast %7 : vector<1x96xf32> to vector<24x96xf32>
    %321 = arith.addf %319, %320 : vector<24x96xf32>
    %322 = vector.extract_strided_slice %318 {offsets = [0, 0], sizes = [24, 32], strides = [1, 1]} : vector<24x96xf32> to vector<24x32xf32>
    %323 = vector.extract_strided_slice %321 {offsets = [0, 0], sizes = [24, 32], strides = [1, 1]} : vector<24x96xf32> to vector<24x32xf32>
    %324 = arith.addf %322, %323 : vector<24x32xf32>
    %325 = arith.negf %324 : vector<24x32xf32>
    %326 = math.exp %325 : vector<24x32xf32>
    %cst_63 = arith.constant 1.000000e+00 : f32
    %327 = vector.broadcast %cst_63 : f32 to vector<24x32xf32>
    %328 = arith.addf %327, %326 : vector<24x32xf32>
    %329 = arith.divf %327, %328 : vector<24x32xf32>
    %330 = vector.extract_strided_slice %318 {offsets = [0, 32], sizes = [24, 32], strides = [1, 1]} : vector<24x96xf32> to vector<24x32xf32>
    %331 = vector.extract_strided_slice %321 {offsets = [0, 32], sizes = [24, 32], strides = [1, 1]} : vector<24x96xf32> to vector<24x32xf32>
    %332 = arith.addf %330, %331 : vector<24x32xf32>
    %333 = arith.negf %332 : vector<24x32xf32>
    %334 = math.exp %333 : vector<24x32xf32>
    %cst_64 = arith.constant 1.000000e+00 : f32
    %335 = vector.broadcast %cst_64 : f32 to vector<24x32xf32>
    %336 = arith.addf %335, %334 : vector<24x32xf32>
    %337 = arith.divf %335, %336 : vector<24x32xf32>
    %338 = vector.extract_strided_slice %318 {offsets = [0, 64], sizes = [24, 32], strides = [1, 1]} : vector<24x96xf32> to vector<24x32xf32>
    %339 = vector.extract_strided_slice %321 {offsets = [0, 64], sizes = [24, 32], strides = [1, 1]} : vector<24x96xf32> to vector<24x32xf32>
    %340 = arith.mulf %329, %339 : vector<24x32xf32>
    %341 = arith.addf %338, %340 : vector<24x32xf32>
    %342 = math.tanh %341 : vector<24x32xf32>
    %cst_65 = arith.constant 1.000000e+00 : f32
    %343 = vector.broadcast %cst_65 : f32 to vector<24x32xf32>
    %344 = arith.subf %343, %337 : vector<24x32xf32>
    %345 = arith.mulf %344, %342 : vector<24x32xf32>
    %346 = arith.mulf %337, %314 : vector<24x32xf32>
    %347 = arith.addf %345, %346 : vector<24x32xf32>
    %cst_66 = arith.constant 7.000000e+00 : f32
    %348 = vector.broadcast %cst_66 : f32 to vector<24x1xf32>
    %349 = arith.cmpf ogt, %8, %348 : vector<24x1xf32>
    %350 = arith.extui %349 : vector<24x1xi1> to vector<24x1xi32>
    %351 = arith.sitofp %350 : vector<24x1xi32> to vector<24x1xf32>
    %352 = vector.broadcast %351 : vector<24x1xf32> to vector<24x32xf32>
    %353 = arith.mulf %352, %347 : vector<24x32xf32>
    %cst_67 = arith.constant 1.000000e+00 : f32
    %354 = vector.broadcast %cst_67 : f32 to vector<24x1xf32>
    %355 = arith.subf %354, %351 : vector<24x1xf32>
    %356 = vector.broadcast %355 : vector<24x1xf32> to vector<24x32xf32>
    %357 = arith.mulf %356, %314 : vector<24x32xf32>
    %358 = arith.addf %353, %357 : vector<24x32xf32>
    %359 = vector.broadcast %351 : vector<24x1xf32> to vector<24x32xf32>
    %360 = arith.mulf %359, %347 : vector<24x32xf32>
    %c0_68 = arith.constant 0 : index
    %c224 = arith.constant 224 : index
    %361 = vector.load %arg7[%c0_68, %c224] : memref<24x256xf32, #tpu.memory_space<vmem>>, vector<24x32xf32>
    tpu.vector_store %arg7[%c0_68, %c224], %360 {strides = array<i32>} : memref<24x256xf32, #tpu.memory_space<vmem>>, vector<24x32xf32>,
    %c0_69 = arith.constant 0 : index
    %c0_70 = arith.constant 0 : index
    %362 = vector.load %arg8[%c0_69, %c0_70] : memref<24x32xf32, #tpu.memory_space<vmem>>, vector<24x32xf32>
    tpu.vector_store %arg8[%c0_69, %c0_70], %358 {strides = array<i32>} : memref<24x32xf32, #tpu.memory_space<vmem>>, vector<24x32xf32>,
    return
  }
  func.func @transform_0(%arg0: i32) -> (i32, i32) {
    %c0_i32 = arith.constant 0 : i32
    %c0_i32_0 = arith.constant 0 : i32
    %c0_i32_1 = arith.constant 0 : i32
    return %c0_i32, %c0_i32_0 : i32, i32
  }
  func.func @transform_1(%arg0: i32) -> (i32, i32) {
    %c0_i32 = arith.constant 0 : i32
    %c0_i32_0 = arith.constant 0 : i32
    %c0_i32_1 = arith.constant 0 : i32
    return %c0_i32, %c0_i32_0 : i32, i32
  }
  func.func @transform_2(%arg0: i32) -> (i32, i32) {
    %c0_i32 = arith.constant 0 : i32
    %c0_i32_0 = arith.constant 0 : i32
    %c0_i32_1 = arith.constant 0 : i32
    return %c0_i32, %c0_i32_0 : i32, i32
  }
  func.func @transform_3(%arg0: i32) -> (i32, i32) {
    %c0_i32 = arith.constant 0 : i32
    %c0_i32_0 = arith.constant 0 : i32
    %c0_i32_1 = arith.constant 0 : i32
    return %c0_i32, %c0_i32_0 : i32, i32
  }
  func.func @transform_4(%arg0: i32) -> (i32, i32) {
    %c0_i32 = arith.constant 0 : i32
    %c0_i32_0 = arith.constant 0 : i32
    %c0_i32_1 = arith.constant 0 : i32
    return %c0_i32, %c0_i32_0 : i32, i32
  }
  func.func @transform_5(%arg0: i32) -> (i32, i32) {
    %c0_i32 = arith.constant 0 : i32
    %c0_i32_0 = arith.constant 0 : i32
    %c0_i32_1 = arith.constant 0 : i32
    return %c0_i32, %c0_i32_0 : i32, i32
  }
  func.func @transform_6(%arg0: i32) -> (i32, i32) {
    %c0_i32 = arith.constant 0 : i32
    %c0_i32_0 = arith.constant 0 : i32
    %c0_i32_1 = arith.constant 0 : i32
    return %c0_i32, %c0_i32_0 : i32, i32
  }
  func.func @transform_7(%arg0: i32) -> (i32, i32) {
    %c0_i32 = arith.constant 0 : i32
    %c0_i32_0 = arith.constant 0 : i32
    %c0_i32_1 = arith.constant 0 : i32
    return %c0_i32, %c0_i32_0 : i32, i32
  }
}

module attributes {stable_mosaic.version = 11 : i64} {
  func.func @_graph_layer_kernel(%arg0: i32, %arg1: memref<16x128xf32, #tpu.memory_space<vmem>>, %arg2: memref<768x128xf32, #tpu.memory_space<vmem>>, %arg3: memref<1x768xf32, #tpu.memory_space<vmem>>, %arg4: memref<128x128xf32, #tpu.memory_space<vmem>>, %arg5: memref<1x128xf32, #tpu.memory_space<vmem>>, %arg6: memref<1x128xf32, #tpu.memory_space<vmem>>, %arg7: memref<4x16x16xf32, #tpu.memory_space<vmem>>, %arg8: memref<16x128xf32, #tpu.memory_space<vmem>>, %arg9: memref<16x128xf32, #tpu.memory_space<vmem>>) attributes {dimension_semantics = [#tpu.dimension_semantics<arbitrary>], iteration_bounds = array<i64: 1>, scalar_prefetch = 0 : i64, scratch_operands = 1 : i64, tpu.core_type = #tpu.core_type<tc>, window_params = [{pipeline_mode = #tpu.pipeline_mode<synchronous>, transform_indices = @transform_0, window_bounds = array<i64: 16, 128>}, {pipeline_mode = #tpu.pipeline_mode<synchronous>, transform_indices = @transform_1, window_bounds = array<i64: 768, 128>}, {pipeline_mode = #tpu.pipeline_mode<synchronous>, transform_indices = @transform_2, window_bounds = array<i64: 1, 768>}, {pipeline_mode = #tpu.pipeline_mode<synchronous>, transform_indices = @transform_3, window_bounds = array<i64: 128, 128>}, {pipeline_mode = #tpu.pipeline_mode<synchronous>, transform_indices = @transform_4, window_bounds = array<i64: 1, 128>}, {pipeline_mode = #tpu.pipeline_mode<synchronous>, transform_indices = @transform_5, window_bounds = array<i64: 1, 128>}, {pipeline_mode = #tpu.pipeline_mode<synchronous>, transform_indices = @transform_6, window_bounds = array<i64: 4, 16, 16>}, {pipeline_mode = #tpu.pipeline_mode<synchronous>, transform_indices = @transform_7, window_bounds = array<i64: 16, 128>}]} {
    %c0 = arith.constant 0 : index
    %c0_0 = arith.constant 0 : index
    %0 = vector.load %arg1[%c0, %c0_0] : memref<16x128xf32, #tpu.memory_space<vmem>>, vector<16x128xf32>
    %c0_1 = arith.constant 0 : index
    %c0_2 = arith.constant 0 : index
    %1 = vector.load %arg2[%c0_1, %c0_2] : memref<768x128xf32, #tpu.memory_space<vmem>>, vector<768x128xf32>
    %cst = arith.constant dense<0.000000e+00> : vector<16x768xf32>
    %2 = tpu.matmul %0, %1, %cst {dimension_numbers = #tpu.dot_dimension_numbers<[1], [1], [0], [0], [0, 0, 1, 0], [], []>} : vector<16x128xf32>, vector<768x128xf32>, vector<16x768xf32> -> vector<16x768xf32>
    %c0_3 = arith.constant 0 : index
    %c0_4 = arith.constant 0 : index
    %3 = vector.load %arg3[%c0_3, %c0_4] : memref<1x768xf32, #tpu.memory_space<vmem>>, vector<1x768xf32>
    %4 = vector.broadcast %3 : vector<1x768xf32> to vector<16x768xf32>
    %5 = arith.addf %2, %4 : vector<16x768xf32>
    %cst_5 = arith.constant 0.000000e+00 : f32
    %6 = vector.broadcast %cst_5 : f32 to vector<16x128xf32>
    %c0_6 = arith.constant 0 : index
    %c0_7 = arith.constant 0 : index
    %7 = vector.load %arg9[%c0_6, %c0_7] : memref<16x128xf32, #tpu.memory_space<vmem>>, vector<16x128xf32>
    tpu.vector_store %arg9[%c0_6, %c0_7], %6 {strides = array<i32>} : memref<16x128xf32, #tpu.memory_space<vmem>>, vector<16x128xf32>,
    %cst_8 = arith.constant 0.000000e+00 : f32
    %8 = vector.broadcast %cst_8 : f32 to vector<16x16xf32>
    %9 = vector.extract_strided_slice %5 {offsets = [0, 0], sizes = [16, 64], strides = [1, 1]} : vector<16x768xf32> to vector<16x64xf32>
    %10 = vector.extract_strided_slice %5 {offsets = [0, 64], sizes = [16, 64], strides = [1, 1]} : vector<16x768xf32> to vector<16x64xf32>
    %11 = vector.extract_strided_slice %5 {offsets = [0, 128], sizes = [16, 64], strides = [1, 1]} : vector<16x768xf32> to vector<16x64xf32>
    %cst_9 = arith.constant dense<0.000000e+00> : vector<16x16xf32>
    %12 = tpu.matmul %10, %9, %cst_9 {dimension_numbers = #tpu.dot_dimension_numbers<[1], [1], [0], [0], [0, 0, 1, 0], [], []>} : vector<16x64xf32>, vector<16x64xf32>, vector<16x16xf32> -> vector<16x16xf32>
    %cst_10 = arith.constant 0.176776692 : f32
    %13 = vector.broadcast %cst_10 : f32 to vector<16x16xf32>
    %14 = arith.mulf %12, %13 : vector<16x16xf32>
    %c0_11 = arith.constant 0 : index
    %c0_12 = arith.constant 0 : index
    %c0_13 = arith.constant 0 : index
    %15 = vector.load %arg7[%c0_11, %c0_12, %c0_13] : memref<4x16x16xf32, #tpu.memory_space<vmem>>, vector<1x16x16xf32>
    %16 = vector.shape_cast %15 : vector<1x16x16xf32> to vector<16x16xf32>
    %cst_14 = arith.constant dense<0xFF800000> : vector<16xf32>
    %17 = vector.multi_reduction <maximumf>, %14, %cst_14 [1] : vector<16x16xf32> to vector<16xf32>
    %18 = vector.shape_cast %17 : vector<16xf32> to vector<16x1xf32>
    %19 = vector.broadcast %18 : vector<16x1xf32> to vector<16x16xf32>
    %20 = arith.subf %14, %19 : vector<16x16xf32>
    %21 = math.exp %20 : vector<16x16xf32>
    %22 = arith.mulf %21, %16 : vector<16x16xf32>
    %cst_15 = arith.constant dense<0.000000e+00> : vector<16xf32>
    %23 = vector.multi_reduction <add>, %22, %cst_15 [1] : vector<16x16xf32> to vector<16xf32>
    %24 = vector.shape_cast %23 : vector<16xf32> to vector<16x1xf32>
    %cst_16 = arith.constant 9.99999968E-21 : f32
    %25 = vector.broadcast %cst_16 : f32 to vector<16x1xf32>
    %26 = arith.maximumf %24, %25 : vector<16x1xf32>
    %27 = tpu.reciprocal %26 {approx = true} : vector<16x1xf32> -> vector<16x1xf32>
    %28 = vector.broadcast %27 : vector<16x1xf32> to vector<16x16xf32>
    %29 = arith.mulf %22, %28 : vector<16x16xf32>
    %cst_17 = arith.constant dense<0.000000e+00> : vector<16x64xf32>
    %30 = tpu.matmul %29, %11, %cst_17 {dimension_numbers = #tpu.dot_dimension_numbers<[1], [0], [0], [1], [0, 0, 1, 1], [], []>} : vector<16x16xf32>, vector<16x64xf32>, vector<16x64xf32> -> vector<16x64xf32>
    %31 = vector.extract_strided_slice %30 {offsets = [0, 0], sizes = [16, 16], strides = [1, 1]} : vector<16x64xf32> to vector<16x16xf32>
    %32 = arith.addf %8, %31 : vector<16x16xf32>
    %33 = vector.extract_strided_slice %30 {offsets = [0, 16], sizes = [16, 16], strides = [1, 1]} : vector<16x64xf32> to vector<16x16xf32>
    %c0_18 = arith.constant 0 : index
    %c16 = arith.constant 16 : index
    %34 = vector.load %arg9[%c0_18, %c16] : memref<16x128xf32, #tpu.memory_space<vmem>>, vector<16x16xf32>
    tpu.vector_store %arg9[%c0_18, %c16], %33 {strides = array<i32>} : memref<16x128xf32, #tpu.memory_space<vmem>>, vector<16x16xf32>,
    %35 = vector.extract_strided_slice %5 {offsets = [0, 192], sizes = [16, 64], strides = [1, 1]} : vector<16x768xf32> to vector<16x64xf32>
    %36 = vector.extract_strided_slice %5 {offsets = [0, 256], sizes = [16, 64], strides = [1, 1]} : vector<16x768xf32> to vector<16x64xf32>
    %37 = vector.extract_strided_slice %5 {offsets = [0, 320], sizes = [16, 64], strides = [1, 1]} : vector<16x768xf32> to vector<16x64xf32>
    %cst_19 = arith.constant dense<0.000000e+00> : vector<16x16xf32>
    %38 = tpu.matmul %36, %35, %cst_19 {dimension_numbers = #tpu.dot_dimension_numbers<[1], [1], [0], [0], [0, 0, 1, 0], [], []>} : vector<16x64xf32>, vector<16x64xf32>, vector<16x16xf32> -> vector<16x16xf32>
    %cst_20 = arith.constant 0.176776692 : f32
    %39 = vector.broadcast %cst_20 : f32 to vector<16x16xf32>
    %40 = arith.mulf %38, %39 : vector<16x16xf32>
    %c1 = arith.constant 1 : index
    %c0_21 = arith.constant 0 : index
    %c0_22 = arith.constant 0 : index
    %41 = vector.load %arg7[%c1, %c0_21, %c0_22] : memref<4x16x16xf32, #tpu.memory_space<vmem>>, vector<1x16x16xf32>
    %42 = vector.shape_cast %41 : vector<1x16x16xf32> to vector<16x16xf32>
    %cst_23 = arith.constant dense<0xFF800000> : vector<16xf32>
    %43 = vector.multi_reduction <maximumf>, %40, %cst_23 [1] : vector<16x16xf32> to vector<16xf32>
    %44 = vector.shape_cast %43 : vector<16xf32> to vector<16x1xf32>
    %45 = vector.broadcast %44 : vector<16x1xf32> to vector<16x16xf32>
    %46 = arith.subf %40, %45 : vector<16x16xf32>
    %47 = math.exp %46 : vector<16x16xf32>
    %48 = arith.mulf %47, %42 : vector<16x16xf32>
    %cst_24 = arith.constant dense<0.000000e+00> : vector<16xf32>
    %49 = vector.multi_reduction <add>, %48, %cst_24 [1] : vector<16x16xf32> to vector<16xf32>
    %50 = vector.shape_cast %49 : vector<16xf32> to vector<16x1xf32>
    %cst_25 = arith.constant 9.99999968E-21 : f32
    %51 = vector.broadcast %cst_25 : f32 to vector<16x1xf32>
    %52 = arith.maximumf %50, %51 : vector<16x1xf32>
    %53 = tpu.reciprocal %52 {approx = true} : vector<16x1xf32> -> vector<16x1xf32>
    %54 = vector.broadcast %53 : vector<16x1xf32> to vector<16x16xf32>
    %55 = arith.mulf %48, %54 : vector<16x16xf32>
    %cst_26 = arith.constant dense<0.000000e+00> : vector<16x64xf32>
    %56 = tpu.matmul %55, %37, %cst_26 {dimension_numbers = #tpu.dot_dimension_numbers<[1], [0], [0], [1], [0, 0, 1, 1], [], []>} : vector<16x16xf32>, vector<16x64xf32>, vector<16x64xf32> -> vector<16x64xf32>
    %57 = vector.extract_strided_slice %56 {offsets = [0, 0], sizes = [16, 16], strides = [1, 1]} : vector<16x64xf32> to vector<16x16xf32>
    %58 = arith.addf %32, %57 : vector<16x16xf32>
    %59 = vector.extract_strided_slice %56 {offsets = [0, 16], sizes = [16, 16], strides = [1, 1]} : vector<16x64xf32> to vector<16x16xf32>
    %c0_27 = arith.constant 0 : index
    %c32 = arith.constant 32 : index
    %60 = vector.load %arg9[%c0_27, %c32] : memref<16x128xf32, #tpu.memory_space<vmem>>, vector<16x16xf32>
    tpu.vector_store %arg9[%c0_27, %c32], %59 {strides = array<i32>} : memref<16x128xf32, #tpu.memory_space<vmem>>, vector<16x16xf32>,
    %61 = vector.extract_strided_slice %5 {offsets = [0, 384], sizes = [16, 64], strides = [1, 1]} : vector<16x768xf32> to vector<16x64xf32>
    %62 = vector.extract_strided_slice %5 {offsets = [0, 448], sizes = [16, 64], strides = [1, 1]} : vector<16x768xf32> to vector<16x64xf32>
    %63 = vector.extract_strided_slice %5 {offsets = [0, 512], sizes = [16, 64], strides = [1, 1]} : vector<16x768xf32> to vector<16x64xf32>
    %cst_28 = arith.constant dense<0.000000e+00> : vector<16x16xf32>
    %64 = tpu.matmul %62, %61, %cst_28 {dimension_numbers = #tpu.dot_dimension_numbers<[1], [1], [0], [0], [0, 0, 1, 0], [], []>} : vector<16x64xf32>, vector<16x64xf32>, vector<16x16xf32> -> vector<16x16xf32>
    %cst_29 = arith.constant 0.176776692 : f32
    %65 = vector.broadcast %cst_29 : f32 to vector<16x16xf32>
    %66 = arith.mulf %64, %65 : vector<16x16xf32>
    %c2 = arith.constant 2 : index
    %c0_30 = arith.constant 0 : index
    %c0_31 = arith.constant 0 : index
    %67 = vector.load %arg7[%c2, %c0_30, %c0_31] : memref<4x16x16xf32, #tpu.memory_space<vmem>>, vector<1x16x16xf32>
    %68 = vector.shape_cast %67 : vector<1x16x16xf32> to vector<16x16xf32>
    %cst_32 = arith.constant dense<0xFF800000> : vector<16xf32>
    %69 = vector.multi_reduction <maximumf>, %66, %cst_32 [1] : vector<16x16xf32> to vector<16xf32>
    %70 = vector.shape_cast %69 : vector<16xf32> to vector<16x1xf32>
    %71 = vector.broadcast %70 : vector<16x1xf32> to vector<16x16xf32>
    %72 = arith.subf %66, %71 : vector<16x16xf32>
    %73 = math.exp %72 : vector<16x16xf32>
    %74 = arith.mulf %73, %68 : vector<16x16xf32>
    %cst_33 = arith.constant dense<0.000000e+00> : vector<16xf32>
    %75 = vector.multi_reduction <add>, %74, %cst_33 [1] : vector<16x16xf32> to vector<16xf32>
    %76 = vector.shape_cast %75 : vector<16xf32> to vector<16x1xf32>
    %cst_34 = arith.constant 9.99999968E-21 : f32
    %77 = vector.broadcast %cst_34 : f32 to vector<16x1xf32>
    %78 = arith.maximumf %76, %77 : vector<16x1xf32>
    %79 = tpu.reciprocal %78 {approx = true} : vector<16x1xf32> -> vector<16x1xf32>
    %80 = vector.broadcast %79 : vector<16x1xf32> to vector<16x16xf32>
    %81 = arith.mulf %74, %80 : vector<16x16xf32>
    %cst_35 = arith.constant dense<0.000000e+00> : vector<16x64xf32>
    %82 = tpu.matmul %81, %63, %cst_35 {dimension_numbers = #tpu.dot_dimension_numbers<[1], [0], [0], [1], [0, 0, 1, 1], [], []>} : vector<16x16xf32>, vector<16x64xf32>, vector<16x64xf32> -> vector<16x64xf32>
    %83 = vector.extract_strided_slice %82 {offsets = [0, 0], sizes = [16, 16], strides = [1, 1]} : vector<16x64xf32> to vector<16x16xf32>
    %84 = arith.addf %58, %83 : vector<16x16xf32>
    %85 = vector.extract_strided_slice %82 {offsets = [0, 16], sizes = [16, 16], strides = [1, 1]} : vector<16x64xf32> to vector<16x16xf32>
    %c0_36 = arith.constant 0 : index
    %c48 = arith.constant 48 : index
    %86 = vector.load %arg9[%c0_36, %c48] : memref<16x128xf32, #tpu.memory_space<vmem>>, vector<16x16xf32>
    tpu.vector_store %arg9[%c0_36, %c48], %85 {strides = array<i32>} : memref<16x128xf32, #tpu.memory_space<vmem>>, vector<16x16xf32>,
    %87 = vector.extract_strided_slice %5 {offsets = [0, 576], sizes = [16, 64], strides = [1, 1]} : vector<16x768xf32> to vector<16x64xf32>
    %88 = vector.extract_strided_slice %5 {offsets = [0, 640], sizes = [16, 64], strides = [1, 1]} : vector<16x768xf32> to vector<16x64xf32>
    %89 = vector.extract_strided_slice %5 {offsets = [0, 704], sizes = [16, 64], strides = [1, 1]} : vector<16x768xf32> to vector<16x64xf32>
    %cst_37 = arith.constant dense<0.000000e+00> : vector<16x16xf32>
    %90 = tpu.matmul %88, %87, %cst_37 {dimension_numbers = #tpu.dot_dimension_numbers<[1], [1], [0], [0], [0, 0, 1, 0], [], []>} : vector<16x64xf32>, vector<16x64xf32>, vector<16x16xf32> -> vector<16x16xf32>
    %cst_38 = arith.constant 1.250000e-01 : f32
    %91 = vector.broadcast %cst_38 : f32 to vector<16x16xf32>
    %92 = arith.mulf %90, %91 : vector<16x16xf32>
    %c3 = arith.constant 3 : index
    %c0_39 = arith.constant 0 : index
    %c0_40 = arith.constant 0 : index
    %93 = vector.load %arg7[%c3, %c0_39, %c0_40] : memref<4x16x16xf32, #tpu.memory_space<vmem>>, vector<1x16x16xf32>
    %94 = vector.shape_cast %93 : vector<1x16x16xf32> to vector<16x16xf32>
    %cst_41 = arith.constant dense<0xFF800000> : vector<16xf32>
    %95 = vector.multi_reduction <maximumf>, %92, %cst_41 [1] : vector<16x16xf32> to vector<16xf32>
    %96 = vector.shape_cast %95 : vector<16xf32> to vector<16x1xf32>
    %97 = vector.broadcast %96 : vector<16x1xf32> to vector<16x16xf32>
    %98 = arith.subf %92, %97 : vector<16x16xf32>
    %99 = math.exp %98 : vector<16x16xf32>
    %100 = arith.mulf %99, %94 : vector<16x16xf32>
    %cst_42 = arith.constant dense<0.000000e+00> : vector<16xf32>
    %101 = vector.multi_reduction <add>, %100, %cst_42 [1] : vector<16x16xf32> to vector<16xf32>
    %102 = vector.shape_cast %101 : vector<16xf32> to vector<16x1xf32>
    %cst_43 = arith.constant 9.99999968E-21 : f32
    %103 = vector.broadcast %cst_43 : f32 to vector<16x1xf32>
    %104 = arith.maximumf %102, %103 : vector<16x1xf32>
    %105 = tpu.reciprocal %104 {approx = true} : vector<16x1xf32> -> vector<16x1xf32>
    %106 = vector.broadcast %105 : vector<16x1xf32> to vector<16x16xf32>
    %107 = arith.mulf %100, %106 : vector<16x16xf32>
    %cst_44 = arith.constant dense<0.000000e+00> : vector<16x64xf32>
    %108 = tpu.matmul %107, %89, %cst_44 {dimension_numbers = #tpu.dot_dimension_numbers<[1], [0], [0], [1], [0, 0, 1, 1], [], []>} : vector<16x16xf32>, vector<16x64xf32>, vector<16x64xf32> -> vector<16x64xf32>
    %109 = vector.extract_strided_slice %108 {offsets = [0, 0], sizes = [16, 16], strides = [1, 1]} : vector<16x64xf32> to vector<16x16xf32>
    %110 = arith.addf %84, %109 : vector<16x16xf32>
    %111 = vector.extract_strided_slice %108 {offsets = [0, 16], sizes = [16, 48], strides = [1, 1]} : vector<16x64xf32> to vector<16x48xf32>
    %c0_45 = arith.constant 0 : index
    %c64 = arith.constant 64 : index
    %112 = vector.load %arg9[%c0_45, %c64] : memref<16x128xf32, #tpu.memory_space<vmem>>, vector<16x48xf32>
    tpu.vector_store %arg9[%c0_45, %c64], %111 {strides = array<i32>} : memref<16x128xf32, #tpu.memory_space<vmem>>, vector<16x48xf32>,
    %cst_46 = arith.constant 2.500000e-01 : f32
    %113 = vector.broadcast %cst_46 : f32 to vector<16x16xf32>
    %114 = arith.mulf %110, %113 : vector<16x16xf32>
    %c0_47 = arith.constant 0 : index
    %c0_48 = arith.constant 0 : index
    %115 = vector.load %arg9[%c0_47, %c0_48] : memref<16x128xf32, #tpu.memory_space<vmem>>, vector<16x16xf32>
    tpu.vector_store %arg9[%c0_47, %c0_48], %114 {strides = array<i32>} : memref<16x128xf32, #tpu.memory_space<vmem>>, vector<16x16xf32>,
    %c0_49 = arith.constant 0 : index
    %c0_50 = arith.constant 0 : index
    %116 = vector.load %arg9[%c0_49, %c0_50] : memref<16x128xf32, #tpu.memory_space<vmem>>, vector<16x128xf32>
    %c0_51 = arith.constant 0 : index
    %c0_52 = arith.constant 0 : index
    %117 = vector.load %arg4[%c0_51, %c0_52] : memref<128x128xf32, #tpu.memory_space<vmem>>, vector<128x128xf32>
    %cst_53 = arith.constant dense<0.000000e+00> : vector<16x128xf32>
    %118 = tpu.matmul %116, %117, %cst_53 {dimension_numbers = #tpu.dot_dimension_numbers<[1], [1], [0], [0], [0, 0, 1, 0], [], []>} : vector<16x128xf32>, vector<128x128xf32>, vector<16x128xf32> -> vector<16x128xf32>
    %c0_54 = arith.constant 0 : index
    %c0_55 = arith.constant 0 : index
    %119 = vector.load %arg5[%c0_54, %c0_55] : memref<1x128xf32, #tpu.memory_space<vmem>>, vector<1x128xf32>
    %120 = vector.broadcast %119 : vector<1x128xf32> to vector<16x128xf32>
    %121 = arith.addf %118, %120 : vector<16x128xf32>
    %c0_56 = arith.constant 0 : index
    %c0_57 = arith.constant 0 : index
    %122 = vector.load %arg6[%c0_56, %c0_57] : memref<1x128xf32, #tpu.memory_space<vmem>>, vector<1x128xf32>
    %123 = vector.broadcast %122 : vector<1x128xf32> to vector<16x128xf32>
    %124 = arith.mulf %121, %123 : vector<16x128xf32>
    %cst_58 = arith.constant 1.000000e+00 : f32
    %125 = vector.broadcast %cst_58 : f32 to vector<1x128xf32>
    %126 = arith.subf %125, %122 : vector<1x128xf32>
    %127 = vector.broadcast %126 : vector<1x128xf32> to vector<16x128xf32>
    %128 = arith.mulf %0, %127 : vector<16x128xf32>
    %129 = arith.addf %124, %128 : vector<16x128xf32>
    %c0_59 = arith.constant 0 : index
    %c0_60 = arith.constant 0 : index
    %130 = vector.load %arg8[%c0_59, %c0_60] : memref<16x128xf32, #tpu.memory_space<vmem>>, vector<16x128xf32>
    tpu.vector_store %arg8[%c0_59, %c0_60], %129 {strides = array<i32>} : memref<16x128xf32, #tpu.memory_space<vmem>>, vector<16x128xf32>,
    return
  }
  func.func @transform_0(%arg0: i32) -> (i32, i32) {
    %c0_i32 = arith.constant 0 : i32
    %c0_i32_0 = arith.constant 0 : i32
    %c0_i32_1 = arith.constant 0 : i32
    return %c0_i32, %c0_i32_0 : i32, i32
  }
  func.func @transform_1(%arg0: i32) -> (i32, i32) {
    %c0_i32 = arith.constant 0 : i32
    %c0_i32_0 = arith.constant 0 : i32
    %c0_i32_1 = arith.constant 0 : i32
    return %c0_i32, %c0_i32_0 : i32, i32
  }
  func.func @transform_2(%arg0: i32) -> (i32, i32) {
    %c0_i32 = arith.constant 0 : i32
    %c0_i32_0 = arith.constant 0 : i32
    %c0_i32_1 = arith.constant 0 : i32
    return %c0_i32, %c0_i32_0 : i32, i32
  }
  func.func @transform_3(%arg0: i32) -> (i32, i32) {
    %c0_i32 = arith.constant 0 : i32
    %c0_i32_0 = arith.constant 0 : i32
    %c0_i32_1 = arith.constant 0 : i32
    return %c0_i32, %c0_i32_0 : i32, i32
  }
  func.func @transform_4(%arg0: i32) -> (i32, i32) {
    %c0_i32 = arith.constant 0 : i32
    %c0_i32_0 = arith.constant 0 : i32
    %c0_i32_1 = arith.constant 0 : i32
    return %c0_i32, %c0_i32_0 : i32, i32
  }
  func.func @transform_5(%arg0: i32) -> (i32, i32) {
    %c0_i32 = arith.constant 0 : i32
    %c0_i32_0 = arith.constant 0 : i32
    %c0_i32_1 = arith.constant 0 : i32
    return %c0_i32, %c0_i32_0 : i32, i32
  }
  func.func @transform_6(%arg0: i32) -> (i32, i32, i32) {
    %c0_i32 = arith.constant 0 : i32
    %c0_i32_0 = arith.constant 0 : i32
    %c0_i32_1 = arith.constant 0 : i32
    %c0_i32_2 = arith.constant 0 : i32
    return %c0_i32, %c0_i32_0, %c0_i32_1 : i32, i32, i32
  }
  func.func @transform_7(%arg0: i32) -> (i32, i32) {
    %c0_i32 = arith.constant 0 : i32
    %c0_i32_0 = arith.constant 0 : i32
    %c0_i32_1 = arith.constant 0 : i32
    return %c0_i32, %c0_i32_0 : i32, i32
  }
}

module attributes {stable_mosaic.version = 11 : i64} {
  func.func @_linear_kernel(%arg0: i32, %arg1: memref<4x256xf32, #tpu.memory_space<vmem>>, %arg2: memref<128x256xf32, #tpu.memory_space<vmem>>, %arg3: memref<1x128xf32, #tpu.memory_space<vmem>>, %arg4: memref<4x128xf32, #tpu.memory_space<vmem>>) attributes {dimension_semantics = [#tpu.dimension_semantics<arbitrary>], iteration_bounds = array<i64: 1>, scalar_prefetch = 0 : i64, scratch_operands = 0 : i64, tpu.core_type = #tpu.core_type<tc>, window_params = [{pipeline_mode = #tpu.pipeline_mode<synchronous>, transform_indices = @transform_0, window_bounds = array<i64: 4, 256>}, {pipeline_mode = #tpu.pipeline_mode<synchronous>, transform_indices = @transform_1, window_bounds = array<i64: 128, 256>}, {pipeline_mode = #tpu.pipeline_mode<synchronous>, transform_indices = @transform_2, window_bounds = array<i64: 1, 128>}, {pipeline_mode = #tpu.pipeline_mode<synchronous>, transform_indices = @transform_3, window_bounds = array<i64: 4, 128>}]} {
    %c0 = arith.constant 0 : index
    %c0_0 = arith.constant 0 : index
    %0 = vector.load %arg1[%c0, %c0_0] : memref<4x256xf32, #tpu.memory_space<vmem>>, vector<4x256xf32>
    %c0_1 = arith.constant 0 : index
    %c0_2 = arith.constant 0 : index
    %1 = vector.load %arg2[%c0_1, %c0_2] : memref<128x256xf32, #tpu.memory_space<vmem>>, vector<128x256xf32>
    %cst = arith.constant dense<0.000000e+00> : vector<4x128xf32>
    %2 = tpu.matmul %0, %1, %cst {dimension_numbers = #tpu.dot_dimension_numbers<[1], [1], [0], [0], [0, 0, 1, 0], [], []>} : vector<4x256xf32>, vector<128x256xf32>, vector<4x128xf32> -> vector<4x128xf32>
    %c0_3 = arith.constant 0 : index
    %c0_4 = arith.constant 0 : index
    %3 = vector.load %arg3[%c0_3, %c0_4] : memref<1x128xf32, #tpu.memory_space<vmem>>, vector<1x128xf32>
    %4 = vector.broadcast %3 : vector<1x128xf32> to vector<4x128xf32>
    %5 = arith.addf %2, %4 : vector<4x128xf32>
    %c0_5 = arith.constant 0 : index
    %c0_6 = arith.constant 0 : index
    %6 = vector.load %arg4[%c0_5, %c0_6] : memref<4x128xf32, #tpu.memory_space<vmem>>, vector<4x128xf32>
    tpu.vector_store %arg4[%c0_5, %c0_6], %5 {strides = array<i32>} : memref<4x128xf32, #tpu.memory_space<vmem>>, vector<4x128xf32>,
    return
  }
  func.func @transform_0(%arg0: i32) -> (i32, i32) {
    %c0_i32 = arith.constant 0 : i32
    %c0_i32_0 = arith.constant 0 : i32
    %c0_i32_1 = arith.constant 0 : i32
    return %c0_i32, %c0_i32_0 : i32, i32
  }
  func.func @transform_1(%arg0: i32) -> (i32, i32) {
    %c0_i32 = arith.constant 0 : i32
    %c0_i32_0 = arith.constant 0 : i32
    %c0_i32_1 = arith.constant 0 : i32
    return %c0_i32, %c0_i32_0 : i32, i32
  }
  func.func @transform_2(%arg0: i32) -> (i32, i32) {
    %c0_i32 = arith.constant 0 : i32
    %c0_i32_0 = arith.constant 0 : i32
    %c0_i32_1 = arith.constant 0 : i32
    return %c0_i32, %c0_i32_0 : i32, i32
  }
  func.func @transform_3(%arg0: i32) -> (i32, i32) {
    %c0_i32 = arith.constant 0 : i32
    %c0_i32_0 = arith.constant 0 : i32
    %c0_i32_1 = arith.constant 0 : i32
    return %c0_i32, %c0_i32_0 : i32, i32
  }
}

</mosaic_0001>

<llo_original>
// kernel: disen_paper_encoder_forward.7
$region0: #{disen_paper_encoder_forward.7}
  #allocation0 [shape = 'u32[]', space=smem, size = 0x4, offset = 0x4, fixed_abs, tag = 'smem constant byte address 0x4 - core index']
  #allocation1 [shape = 'u32[144,128]{1,0:T(1,128)}', space=vmem, size = 0x12000, scoped, tag = 'internal scratch']
  %s0 = inlined_call_operand.vmem [shape: f32[4,256], index: 0, kind: input, shape index: {}]
  %s1 = inlined_call_operand.vmem [shape: f32[128,256], index: 1, kind: input, shape index: {}]
  %s2 = inlined_call_operand.vmem [shape: f32[1,128], index: 2, kind: input, shape index: {}]
  %s3 = inlined_call_operand.vmem [shape: f32[4,128], index: 3, kind: output, shape index: {}]
  %s4 = sld [smem:[#allocation0]]
  $region22: #{disen_paper_encoder_forward.7} parent=0
    _
  %s6 = ssub.s32 1, %s4
  %s7 = scalar_select 0, %s6, %s4
  // Predicated region
  $region2: #{disen_paper_encoder_forward.7} parent=0 // pred_check
    _
  $region3: #{disen_paper_encoder_forward.7} parent=0 // pred_check_branch
    %9 = sbr.rel (0) target = $region5
  $region4: #{disen_paper_encoder_forward.7} parent=0 // pred_region
    _
  $region5: #{disen_paper_encoder_forward.7} parent=0 // pred_fallthru
    _
  // Predicated region
  $region6: #{disen_paper_encoder_forward.7} parent=0 // pred_check
    _
  $region7: #{disen_paper_encoder_forward.7} parent=0 // pred_check_branch
    %11 = sbr.rel (0) target = $region9
  $region8: #{disen_paper_encoder_forward.7} parent=0 // pred_region
    _
  $region9: #{disen_paper_encoder_forward.7} parent=0 // pred_fallthru
    _
  // Predicated region
  $region10: #{disen_paper_encoder_forward.7} parent=0 // pred_check
    _
  $region11: #{disen_paper_encoder_forward.7} parent=0 // pred_check_branch
    %13 = sbr.rel (0) target = $region13
  $region12: #{disen_paper_encoder_forward.7} parent=0 // pred_region
    _
  $region13: #{disen_paper_encoder_forward.7} parent=0 // pred_fallthru
    _
  %v14 = vld [vmem:[%s0] sm:$0xff]
  %v15 = vld [vmem:[%s1] sm:$0xff]
  %v16 = vld [vmem:[%s1 + $0x8] sm:$0xff]
  %v17 = vld [vmem:[%s1 + $0x10] sm:$0xff]
  %v18 = vld [vmem:[%s1 + $0x18] sm:$0xff]
  %v19 = vld [vmem:[%s1 + $0x20] sm:$0xff]
  %v20 = vld [vmem:[%s1 + $0x28] sm:$0xff]
  %v21 = vld [vmem:[%s1 + $0x30] sm:$0xff]
  %v22 = vld [vmem:[%s1 + $0x38] sm:$0xff]
  %v23 = vld [vmem:[%s1 + $0x40] sm:$0xff]
  %v24 = vld [vmem:[%s1 + $0x48] sm:$0xff]
  %v25 = vld [vmem:[%s1 + $0x50] sm:$0xff]
  %v26 = vld [vmem:[%s1 + $0x58] sm:$0xff]
  %v27 = vld [vmem:[%s1 + $0x60] sm:$0xff]
  %v28 = vld [vmem:[%s1 + $0x68] sm:$0xff]
  %v29 = vld [vmem:[%s1 + $0x70] sm:$0xff]
  %v30 = vld [vmem:[%s1 + $0x78] sm:$0xff]
  %v31 = vld [vmem:[%s1 + $0x80] sm:$0xff]
  %v32 = vld [vmem:[%s1 + $0x88] sm:$0xff]
  %v33 = vld [vmem:[%s1 + $0x90] sm:$0xff]
  %v34 = vld [vmem:[%s1 + $0x98] sm:$0xff]
  %v35 = vld [vmem:[%s1 + $0xa0] sm:$0xff]
  %v36 = vld [vmem:[%s1 + $0xa8] sm:$0xff]
  %v37 = vld [vmem:[%s1 + $0xb0] sm:$0xff]
  %v38 = vld [vmem:[%s1 + $0xb8] sm:$0xff]
  %v39 = vld [vmem:[%s1 + $0xc0] sm:$0xff]
  %v40 = vld [vmem:[%s1 + $0xc8] sm:$0xff]
  %v41 = vld [vmem:[%s1 + $0xd0] sm:$0xff]
  %v42 = vld [vmem:[%s1 + $0xd8] sm:$0xff]
  %v43 = vld [vmem:[%s1 + $0xe0] sm:$0xff]
  %v44 = vld [vmem:[%s1 + $0xe8] sm:$0xff]
  %v45 = vld [vmem:[%s1 + $0xf0] sm:$0xff]
  %v46 = vld [vmem:[%s1 + $0xf8] sm:$0xff]
  %v47 = vld [vmem:[%s2] sm:$0x1]
  %v49 = vlaneseq
  %v50 = vshrl.u32 %v49, 7
  %v51 = vsub.s32 0, %v50
  %v52 = vrot.slane %v47, %v51
  %v55 = vcombine.high %v14, %v14
  %57 = vmatprep.subr.mxu0 %v16
  %58 = vmatpush1.xpose.msra.mxu0 %v15
  %59 = vmatprep.subr.mxu0 %v18
  %60 = vmatpush1.xpose.msra.mxu0 %v17
  %61 = vmatprep.subr.mxu0 %v20
  %62 = vmatpush1.xpose.msra.mxu0 %v19
  %63 = vmatprep.subr.mxu0 %v22
  %64 = vmatpush1.xpose.msra.mxu0 %v21
  %65 = vmatprep.subr.mxu0 %v24
  %66 = vmatpush1.xpose.msra.mxu0 %v23
  %67 = vmatprep.subr.mxu0 %v26
  %68 = vmatpush1.xpose.msra.mxu0 %v25
  %69 = vmatprep.subr.mxu0 %v28
  %70 = vmatpush1.xpose.msra.mxu0 %v27
  %71 = vmatprep.subr.mxu0 %v30
  %72 = vmatpush1.xpose.msra.mxu0 %v29
  %73 = vmatprep.subr.mxu0 %v32
  %74 = vmatpush1.xpose.msra.mxu0 %v31
  %75 = vmatprep.subr.mxu0 %v34
  %76 = vmatpush1.xpose.msra.mxu0 %v33
  %77 = vmatprep.subr.mxu0 %v36
  %78 = vmatpush1.xpose.msra.mxu0 %v35
  %79 = vmatprep.subr.mxu0 %v38
  %80 = vmatpush1.xpose.msra.mxu0 %v37
  %81 = vmatprep.subr.mxu0 %v40
  %82 = vmatpush1.xpose.msra.mxu0 %v39
  %83 = vmatprep.subr.mxu0 %v42
  %84 = vmatpush1.xpose.msra.mxu0 %v41
  %85 = vmatprep.subr.mxu0 %v44
  %86 = vmatpush1.xpose.msra.mxu0 %v43
  %87 = vmatprep.subr.mxu0 %v46
  %88 = vmatpush1.xpose.msra.mxu0 %v45
  %89 = vmatprep.subr.mxu0 0.0
  %90 = vmatpush1.xpose.msra.mxu0 0.0
  %91 = vmatprep.subr.mxu0 0.0
  %92 = vmatpush1.xpose.msra.mxu0 0.0
  %93 = vmatprep.subr.mxu0 0.0
  %94 = vmatpush1.xpose.msra.mxu0 0.0
  %95 = vmatprep.subr.mxu0 0.0
  %96 = vmatpush1.xpose.msra.mxu0 0.0
  %97 = vmatprep.subr.mxu0 0.0
  %98 = vmatpush1.xpose.msra.mxu0 0.0
  %99 = vmatprep.subr.mxu0 0.0
  %100 = vmatpush1.xpose.msra.mxu0 0.0
  %101 = vmatprep.subr.mxu0 0.0
  %102 = vmatpush1.xpose.msra.mxu0 0.0
  %103 = vmatprep.subr.mxu0 0.0
  %104 = vmatpush1.xpose.msra.mxu0 0.0
  %105 = vmatprep.subr.mxu0 0.0
  %106 = vmatpush1.xpose.msra.mxu0 0.0
  %107 = vmatprep.subr.mxu0 0.0
  %108 = vmatpush1.xpose.msra.mxu0 0.0
  %109 = vmatprep.subr.mxu0 0.0
  %110 = vmatpush1.xpose.msra.mxu0 0.0
  %111 = vmatprep.subr.mxu0 0.0
  %112 = vmatpush1.xpose.msra.mxu0 0.0
  %113 = vmatprep.subr.mxu0 0.0
  %114 = vmatpush1.xpose.msra.mxu0 0.0
  %115 = vmatprep.subr.mxu0 0.0
  %116 = vmatpush1.xpose.msra.mxu0 0.0
  %117 = vmatprep.subr.mxu0 0.0
  %118 = vmatpush1.xpose.msra.mxu0 0.0
  %119 = vmatprep.subr.mxu0 0.0
  %120 = vmatpush1.xpose.msra.mxu0 0.0
  %121 = vmatprep.mubr.f32.mxu0 %v55
  %122 = vmatmul.mubr.f32.gmra.mrb[0].mxu0 %v14
  %v123 = vpop.f32.mrb[0].mxu0
  %v124 = vadd.f32 %v52, %v123
  %v125 = vpop.f32.mrb[0].mxu0
  %126 = vdwg.mxu0
  %127 = vst [vmem:[%s3] sm:$0xf] %v124
  // Predicated region
  $region14: #{disen_paper_encoder_forward.7} parent=0 // pred_check
    _
  $region15: #{disen_paper_encoder_forward.7} parent=0 // pred_check_branch
    %129 = sbr.rel (0) target = $region17
  $region16: #{disen_paper_encoder_forward.7} parent=0 // pred_region
    _
  $region17: #{disen_paper_encoder_forward.7} parent=0 // pred_fallthru
    _
  // Predicated region
  $region18: #{disen_paper_encoder_forward.7} parent=0 // pred_check
    _
  $region19: #{disen_paper_encoder_forward.7} parent=0 // pred_check_branch
    %131 = sbr.rel (0) target = $region21
  $region20: #{disen_paper_encoder_forward.7} parent=0 // pred_region
    _
  $region21: #{disen_paper_encoder_forward.7} parent=0 // pred_fallthru
    _

// kernel: disen_paper_encoder_forward.5
$region0: #{disen_paper_encoder_forward.5}
  #allocation0 [shape = 'u32[]', space=smem, size = 0x4, offset = 0x4, fixed_abs, tag = 'smem constant byte address 0x4 - core index']
  #allocation1 [shape = 'u32[144,128]{1,0:T(1,128)}', space=vmem, size = 0x12000, scoped, tag = 'internal scratch']
  #allocation2 [shape = 'f32[16,128]{1,0:T(8,128)}', space=vmem, size = 0x2000, scoped, tag = 'scratch operand']
  %s0 = inlined_call_operand.vmem [shape: f32[16,128], index: 0, kind: input, shape index: {}]
  %s1 = inlined_call_operand.vmem [shape: f32[768,128], index: 1, kind: input, shape index: {}]
  %s2 = inlined_call_operand.vmem [shape: f32[1,768], index: 2, kind: input, shape index: {}]
  %s3 = inlined_call_operand.vmem [shape: f32[128,128], index: 3, kind: input, shape index: {}]
  %s4 = inlined_call_operand.vmem [shape: f32[1,128], index: 4, kind: input, shape index: {}]
  %s5 = inlined_call_operand.vmem [shape: f32[1,128], index: 5, kind: input, shape index: {}]
  %s6 = inlined_call_operand.vmem [shape: f32[4,16,16], index: 6, kind: input, shape index: {}]
  %s7 = inlined_call_operand.vmem [shape: f32[16,128], index: 7, kind: output, shape index: {}]
  %s8 = sld [smem:[#allocation0]]
  $region38: #{disen_paper_encoder_forward.5} parent=0
    _
  %s10 = ssub.s32 1, %s8
  %s11 = scalar_select 0, %s10, %s8
  // Predicated region
  $region2: #{disen_paper_encoder_forward.5} parent=0 // pred_check
    _
  $region3: #{disen_paper_encoder_forward.5} parent=0 // pred_check_branch
    %13 = sbr.rel (0) target = $region5
  $region4: #{disen_paper_encoder_forward.5} parent=0 // pred_region
    _
  $region5: #{disen_paper_encoder_forward.5} parent=0 // pred_fallthru
    _
  // Predicated region
  $region6: #{disen_paper_encoder_forward.5} parent=0 // pred_check
    _
  $region7: #{disen_paper_encoder_forward.5} parent=0 // pred_check_branch
    %15 = sbr.rel (0) target = $region9
  $region8: #{disen_paper_encoder_forward.5} parent=0 // pred_region
    _
  $region9: #{disen_paper_encoder_forward.5} parent=0 // pred_fallthru
    _
  // Predicated region
  $region10: #{disen_paper_encoder_forward.5} parent=0 // pred_check
    _
  $region11: #{disen_paper_encoder_forward.5} parent=0 // pred_check_branch
    %17 = sbr.rel (0) target = $region13
  $region12: #{disen_paper_encoder_forward.5} parent=0 // pred_region
    _
  $region13: #{disen_paper_encoder_forward.5} parent=0 // pred_fallthru
    _
  // Predicated region
  $region14: #{disen_paper_encoder_forward.5} parent=0 // pred_check
    _
  $region15: #{disen_paper_encoder_forward.5} parent=0 // pred_check_branch
    %19 = sbr.rel (0) target = $region17
  $region16: #{disen_paper_encoder_forward.5} parent=0 // pred_region
    _
  $region17: #{disen_paper_encoder_forward.5} parent=0 // pred_fallthru
    _
  // Predicated region
  $region18: #{disen_paper_encoder_forward.5} parent=0 // pred_check
    _
  $region19: #{disen_paper_encoder_forward.5} parent=0 // pred_check_branch
    %21 = sbr.rel (0) target = $region21
  $region20: #{disen_paper_encoder_forward.5} parent=0 // pred_region
    _
  $region21: #{disen_paper_encoder_forward.5} parent=0 // pred_fallthru
    _
  // Predicated region
  $region22: #{disen_paper_encoder_forward.5} parent=0 // pred_check
    _
  $region23: #{disen_paper_encoder_forward.5} parent=0 // pred_check_branch
    %23 = sbr.rel (0) target = $region25
  $region24: #{disen_paper_encoder_forward.5} parent=0 // pred_region
    _
  $region25: #{disen_paper_encoder_forward.5} parent=0 // pred_fallthru
    _
  // Predicated region
  $region26: #{disen_paper_encoder_forward.5} parent=0 // pred_check
    _
  $region27: #{disen_paper_encoder_forward.5} parent=0 // pred_check_branch
    %25 = sbr.rel (0) target = $region29
  $region28: #{disen_paper_encoder_forward.5} parent=0 // pred_region
    _
  $region29: #{disen_paper_encoder_forward.5} parent=0 // pred_fallthru
    _
  %v26 = vld [vmem:[%s0] sm:$0xff]
  %v27 = vld [vmem:[%s0 + $0x8] sm:$0xff]
  %v28 = vld [vmem:[%s1] sm:$0xff]
  %v29 = vld [vmem:[%s1 + $0x8] sm:$0xff]
  %v30 = vld [vmem:[%s1 + $0x10] sm:$0xff]
  %v31 = vld [vmem:[%s1 + $0x18] sm:$0xff]
  %v32 = vld [vmem:[%s1 + $0x20] sm:$0xff]
  %v33 = vld [vmem:[%s1 + $0x28] sm:$0xff]
  %v34 = vld [vmem:[%s1 + $0x30] sm:$0xff]
  %v35 = vld [vmem:[%s1 + $0x38] sm:$0xff]
  %v36 = vld [vmem:[%s1 + $0x40] sm:$0xff]
  %v37 = vld [vmem:[%s1 + $0x48] sm:$0xff]
  %v38 = vld [vmem:[%s1 + $0x50] sm:$0xff]
  %v39 = vld [vmem:[%s1 + $0x58] sm:$0xff]
  %v40 = vld [vmem:[%s1 + $0x60] sm:$0xff]
  %v41 = vld [vmem:[%s1 + $0x68] sm:$0xff]
  %v42 = vld [vmem:[%s1 + $0x70] sm:$0xff]
  %v43 = vld [vmem:[%s1 + $0x78] sm:$0xff]
  %v44 = vld [vmem:[%s1 + $0x80] sm:$0xff]
  %v45 = vld [vmem:[%s1 + $0x88] sm:$0xff]
  %v46 = vld [vmem:[%s1 + $0x90] sm:$0xff]
  %v47 = vld [vmem:[%s1 + $0x98] sm:$0xff]
  %v48 = vld [vmem:[%s1 + $0xa0] sm:$0xff]
  %v49 = vld [vmem:[%s1 + $0xa8] sm:$0xff]
  %v50 = vld [vmem:[%s1 + $0xb0] sm:$0xff]
  %v51 = vld [vmem:[%s1 + $0xb8] sm:$0xff]
  %v52 = vld [vmem:[%s1 + $0xc0] sm:$0xff]
  %v53 = vld [vmem:[%s1 + $0xc8] sm:$0xff]
  %v54 = vld [vmem:[%s1 + $0xd0] sm:$0xff]
  %v55 = vld [vmem:[%s1 + $0xd8] sm:$0xff]
  %v56 = vld [vmem:[%s1 + $0xe0] sm:$0xff]
  %v57 = vld [vmem:[%s1 + $0xe8] sm:$0xff]
  %v58 = vld [vmem:[%s1 + $0xf0] sm:$0xff]
  %v59 = vld [vmem:[%s1 + $0xf8] sm:$0xff]
  %v60 = vld [vmem:[%s1 + $0x100] sm:$0xff]
  %v61 = vld [vmem:[%s1 + $0x108] sm:$0xff]
  %v62 = vld [vmem:[%s1 + $0x110] sm:$0xff]
  %v63 = vld [vmem:[%s1 + $0x118] sm:$0xff]
  %v64 = vld [vmem:[%s1 + $0x120] sm:$0xff]
  %v65 = vld [vmem:[%s1 + $0x128] sm:$0xff]
  %v66 = vld [vmem:[%s1 + $0x130] sm:$0xff]
  %v67 = vld [vmem:[%s1 + $0x138] sm:$0xff]
  %v68 = vld [vmem:[%s1 + $0x140] sm:$0xff]
  %v69 = vld [vmem:[%s1 + $0x148] sm:$0xff]
  %v70 = vld [vmem:[%s1 + $0x150] sm:$0xff]
  %v71 = vld [vmem:[%s1 + $0x158] sm:$0xff]
  %v72 = vld [vmem:[%s1 + $0x160] sm:$0xff]
  %v73 = vld [vmem:[%s1 + $0x168] sm:$0xff]
  %v74 = vld [vmem:[%s1 + $0x170] sm:$0xff]
  %v75 = vld [vmem:[%s1 + $0x178] sm:$0xff]
  %v76 = vld [vmem:[%s1 + $0x180] sm:$0xff]
  %v77 = vld [vmem:[%s1 + $0x188] sm:$0xff]
  %v78 = vld [vmem:[%s1 + $0x190] sm:$0xff]
  %v79 = vld [vmem:[%s1 + $0x198] sm:$0xff]
  %v80 = vld [vmem:[%s1 + $0x1a0] sm:$0xff]
  %v81 = vld [vmem:[%s1 + $0x1a8] sm:$0xff]
  %v82 = vld [vmem:[%s1 + $0x1b0] sm:$0xff]
  %v83 = vld [vmem:[%s1 + $0x1b8] sm:$0xff]
  %v84 = vld [vmem:[%s1 + $0x1c0] sm:$0xff]
  %v85 = vld [vmem:[%s1 + $0x1c8] sm:$0xff]
  %v86 = vld [vmem:[%s1 + $0x1d0] sm:$0xff]
  %v87 = vld [vmem:[%s1 + $0x1d8] sm:$0xff]
  %v88 = vld [vmem:[%s1 + $0x1e0] sm:$0xff]
  %v89 = vld [vmem:[%s1 + $0x1e8] sm:$0xff]
  %v90 = vld [vmem:[%s1 + $0x1f0] sm:$0xff]
  %v91 = vld [vmem:[%s1 + $0x1f8] sm:$0xff]
  %v92 = vld [vmem:[%s1 + $0x200] sm:$0xff]
  %v93 = vld [vmem:[%s1 + $0x208] sm:$0xff]
  %v94 = vld [vmem:[%s1 + $0x210] sm:$0xff]
  %v95 = vld [vmem:[%s1 + $0x218] sm:$0xff]
  %v96 = vld [vmem:[%s1 + $0x220] sm:$0xff]
  %v97 = vld [vmem:[%s1 + $0x228] sm:$0xff]
  %v98 = vld [vmem:[%s1 + $0x230] sm:$0xff]
  %v99 = vld [vmem:[%s1 + $0x238] sm:$0xff]
  %v100 = vld [vmem:[%s1 + $0x240] sm:$0xff]
  %v101 = vld [vmem:[%s1 + $0x248] sm:$0xff]
  %v102 = vld [vmem:[%s1 + $0x250] sm:$0xff]
  %v103 = vld [vmem:[%s1 + $0x258] sm:$0xff]
  %v104 = vld [vmem:[%s1 + $0x260] sm:$0xff]
  %v105 = vld [vmem:[%s1 + $0x268] sm:$0xff]
  %v106 = vld [vmem:[%s1 + $0x270] sm:$0xff]
  %v107 = vld [vmem:[%s1 + $0x278] sm:$0xff]
  %v108 = vld [vmem:[%s1 + $0x280] sm:$0xff]
  %v109 = vld [vmem:[%s1 + $0x288] sm:$0xff]
  %v110 = vld [vmem:[%s1 + $0x290] sm:$0xff]
  %v111 = vld [vmem:[%s1 + $0x298] sm:$0xff]
  %v112 = vld [vmem:[%s1 + $0x2a0] sm:$0xff]
  %v113 = vld [vmem:[%s1 + $0x2a8] sm:$0xff]
  %v114 = vld [vmem:[%s1 + $0x2b0] sm:$0xff]
  %v115 = vld [vmem:[%s1 + $0x2b8] sm:$0xff]
  %v116 = vld [vmem:[%s1 + $0x2c0] sm:$0xff]
  %v117 = vld [vmem:[%s1 + $0x2c8] sm:$0xff]
  %v118 = vld [vmem:[%s1 + $0x2d0] sm:$0xff]
  %v119 = vld [vmem:[%s1 + $0x2d8] sm:$0xff]
  %v120 = vld [vmem:[%s1 + $0x2e0] sm:$0xff]
  %v121 = vld [vmem:[%s1 + $0x2e8] sm:$0xff]
  %v122 = vld [vmem:[%s1 + $0x2f0] sm:$0xff]
  %v123 = vld [vmem:[%s1 + $0x2f8] sm:$0xff]
  %v124 = vld [vmem:[%s2] sm:$0x3f]
  %v126 = vlaneseq
  %v127 = vshrl.u32 %v126, 7
  %v128 = vsub.s32 0, %v127
  %v129 = vrot.slane %v124, %v128
  %v130 = vlaneseq
  %v131 = vshrl.u32 %v130, 7
  %v132 = vsub.s32 1, %v131
  %v133 = vrot.slane %v124, %v132
  %v134 = vlaneseq
  %v135 = vshrl.u32 %v134, 7
  %v136 = vsub.s32 2, %v135
  %v137 = vrot.slane %v124, %v136
  %v138 = vlaneseq
  %v139 = vshrl.u32 %v138, 7
  %v140 = vsub.s32 3, %v139
  %v141 = vrot.slane %v124, %v140
  %v142 = vlaneseq
  %v143 = vshrl.u32 %v142, 7
  %v144 = vsub.s32 4, %v143
  %v145 = vrot.slane %v124, %v144
  %v146 = vlaneseq
  %v147 = vshrl.u32 %v146, 7
  %v148 = vsub.s32 5, %v147
  %v149 = vrot.slane %v124, %v148
  %156 = vmatprep.subr.mxu0 0.0
  %157 = vmatpush1.xpose.msra.mxu0 %v28
  %158 = vmatprep.subr.mxu0 0.0
  %159 = vmatpush1.xpose.msra.mxu0 %v29
  %160 = vmatprep.subr.mxu0 0.0
  %161 = vmatpush1.xpose.msra.mxu0 %v30
  %162 = vmatprep.subr.mxu0 0.0
  %163 = vmatpush1.xpose.msra.mxu0 %v31
  %164 = vmatprep.subr.mxu0 0.0
  %165 = vmatpush1.xpose.msra.mxu0 %v32
  %166 = vmatprep.subr.mxu0 0.0
  %167 = vmatpush1.xpose.msra.mxu0 %v33
  %168 = vmatprep.subr.mxu0 0.0
  %169 = vmatpush1.xpose.msra.mxu0 %v34
  %170 = vmatprep.subr.mxu0 0.0
  %171 = vmatpush1.xpose.msra.mxu0 %v35
  %172 = vmatprep.subr.mxu0 0.0
  %173 = vmatpush1.xpose.msra.mxu0 %v36
  %174 = vmatprep.subr.mxu0 0.0
  %175 = vmatpush1.xpose.msra.mxu0 %v37
  %176 = vmatprep.subr.mxu0 0.0
  %177 = vmatpush1.xpose.msra.mxu0 %v38
  %178 = vmatprep.subr.mxu0 0.0
  %179 = vmatpush1.xpose.msra.mxu0 %v39
  %180 = vmatprep.subr.mxu0 0.0
  %181 = vmatpush1.xpose.msra.mxu0 %v40
  %182 = vmatprep.subr.mxu0 0.0
  %183 = vmatpush1.xpose.msra.mxu0 %v41
  %184 = vmatprep.subr.mxu0 0.0
  %185 = vmatpush1.xpose.msra.mxu0 %v42
  %186 = vmatprep.subr.mxu0 0.0
  %187 = vmatpush1.xpose.msra.mxu0 %v43
  %188 = vmatprep.subr.mxu0 0.0
  %189 = vmatpush1.xpose.msra.mxu0 %v44
  %190 = vmatprep.subr.mxu0 0.0
  %191 = vmatpush1.xpose.msra.mxu0 %v45
  %192 = vmatprep.subr.mxu0 0.0
  %193 = vmatpush1.xpose.msra.mxu0 %v46
  %194 = vmatprep.subr.mxu0 0.0
  %195 = vmatpush1.xpose.msra.mxu0 %v47
  %196 = vmatprep.subr.mxu0 0.0
  %197 = vmatpush1.xpose.msra.mxu0 %v48
  %198 = vmatprep.subr.mxu0 0.0
  %199 = vmatpush1.xpose.msra.mxu0 %v49
  %200 = vmatprep.subr.mxu0 0.0
  %201 = vmatpush1.xpose.msra.mxu0 %v50
  %202 = vmatprep.subr.mxu0 0.0
  %203 = vmatpush1.xpose.msra.mxu0 %v51
  %204 = vmatprep.subr.mxu0 0.0
  %205 = vmatpush1.xpose.msra.mxu0 %v52
  %206 = vmatprep.subr.mxu0 0.0
  %207 = vmatpush1.xpose.msra.mxu0 %v53
  %208 = vmatprep.subr.mxu0 0.0
  %209 = vmatpush1.xpose.msra.mxu0 %v54
  %210 = vmatprep.subr.mxu0 0.0
  %211 = vmatpush1.xpose.msra.mxu0 %v55
  %212 = vmatprep.subr.mxu0 0.0
  %213 = vmatpush1.xpose.msra.mxu0 %v56
  %214 = vmatprep.subr.mxu0 0.0
  %215 = vmatpush1.xpose.msra.mxu0 %v57
  %216 = vmatprep.subr.mxu0 0.0
  %217 = vmatpush1.xpose.msra.mxu0 %v58
  %218 = vmatprep.subr.mxu0 0.0
  %219 = vmatpush1.xpose.msra.mxu0 %v59
  %220 = vmatprep.mubr.f32.mxu0 0.0
  %221 = vmatmul.mubr.f32.gmra.mrb[0].mxu0 %v26
  %v222 = vpop.f32.mrb[0].mxu0
  %v223 = vadd.f32 %v129, %v222
  %v224 = vpop.f32.mrb[0].mxu0
  %v225 = vadd.f32 %v133, %v224
  %226 = vmatprep.mubr.f32.mxu0 0.0
  %227 = vmatmul.mubr.f32.gmra.mrb[0].mxu0 %v27
  %v228 = vpop.f32.mrb[0].mxu0
  %v229 = vadd.f32 %v129, %v228
  %v230 = vpop.f32.mrb[0].mxu0
  %v231 = vadd.f32 %v133, %v230
  %232 = vdwg.mxu0
  %233 = vmatprep.subr.mxu0 0.0
  %234 = vmatpush1.xpose.msra.mxu0 %v60
  %235 = vmatprep.subr.mxu0 0.0
  %236 = vmatpush1.xpose.msra.mxu0 %v61
  %237 = vmatprep.subr.mxu0 0.0
  %238 = vmatpush1.xpose.msra.mxu0 %v62
  %239 = vmatprep.subr.mxu0 0.0
  %240 = vmatpush1.xpose.msra.mxu0 %v63
  %241 = vmatprep.subr.mxu0 0.0
  %242 = vmatpush1.xpose.msra.mxu0 %v64
  %243 = vmatprep.subr.mxu0 0.0
  %244 = vmatpush1.xpose.msra.mxu0 %v65
  %245 = vmatprep.subr.mxu0 0.0
  %246 = vmatpush1.xpose.msra.mxu0 %v66
  %247 = vmatprep.subr.mxu0 0.0
  %248 = vmatpush1.xpose.msra.mxu0 %v67
  %249 = vmatprep.subr.mxu0 0.0
  %250 = vmatpush1.xpose.msra.mxu0 %v68
  %251 = vmatprep.subr.mxu0 0.0
  %252 = vmatpush1.xpose.msra.mxu0 %v69
  %253 = vmatprep.subr.mxu0 0.0
  %254 = vmatpush1.xpose.msra.mxu0 %v70
  %255 = vmatprep.subr.mxu0 0.0
  %256 = vmatpush1.xpose.msra.mxu0 %v71
  %257 = vmatprep.subr.mxu0 0.0
  %258 = vmatpush1.xpose.msra.mxu0 %v72
  %259 = vmatprep.subr.mxu0 0.0
  %260 = vmatpush1.xpose.msra.mxu0 %v73
  %261 = vmatprep.subr.mxu0 0.0
  %262 = vmatpush1.xpose.msra.mxu0 %v74
  %263 = vmatprep.subr.mxu0 0.0
  %264 = vmatpush1.xpose.msra.mxu0 %v75
  %265 = vmatprep.subr.mxu0 0.0
  %266 = vmatpush1.xpose.msra.mxu0 %v76
  %267 = vmatprep.subr.mxu0 0.0
  %268 = vmatpush1.xpose.msra.mxu0 %v77
  %269 = vmatprep.subr.mxu0 0.0
  %270 = vmatpush1.xpose.msra.mxu0 %v78
  %271 = vmatprep.subr.mxu0 0.0
  %272 = vmatpush1.xpose.msra.mxu0 %v79
  %273 = vmatprep.subr.mxu0 0.0
  %274 = vmatpush1.xpose.msra.mxu0 %v80
  %275 = vmatprep.subr.mxu0 0.0
  %276 = vmatpush1.xpose.msra.mxu0 %v81
  %277 = vmatprep.subr.mxu0 0.0
  %278 = vmatpush1.xpose.msra.mxu0 %v82
  %279 = vmatprep.subr.mxu0 0.0
  %280 = vmatpush1.xpose.msra.mxu0 %v83
  %281 = vmatprep.subr.mxu0 0.0
  %282 = vmatpush1.xpose.msra.mxu0 %v84
  %283 = vmatprep.subr.mxu0 0.0
  %284 = vmatpush1.xpose.msra.mxu0 %v85
  %285 = vmatprep.subr.mxu0 0.0
  %286 = vmatpush1.xpose.msra.mxu0 %v86
  %287 = vmatprep.subr.mxu0 0.0
  %288 = vmatpush1.xpose.msra.mxu0 %v87
  %289 = vmatprep.subr.mxu0 0.0
  %290 = vmatpush1.xpose.msra.mxu0 %v88
  %291 = vmatprep.subr.mxu0 0.0
  %292 = vmatpush1.xpose.msra.mxu0 %v89
  %293 = vmatprep.subr.mxu0 0.0
  %294 = vmatpush1.xpose.msra.mxu0 %v90
  %295 = vmatprep.subr.mxu0 0.0
  %296 = vmatpush1.xpose.msra.mxu0 %v91
  %297 = vmatprep.mubr.f32.mxu0 0.0
  %298 = vmatmul.mubr.f32.gmra.mrb[0].mxu0 %v26
  %v299 = vpop.f32.mrb[0].mxu0
  %v300 = vadd.f32 %v137, %v299
  %v301 = vpop.f32.mrb[0].mxu0
  %v302 = vadd.f32 %v141, %v301
  %303 = vmatprep.mubr.f32.mxu0 0.0
  %304 = vmatmul.mubr.f32.gmra.mrb[0].mxu0 %v27
  %v305 = vpop.f32.mrb[0].mxu0
  %v306 = vadd.f32 %v137, %v305
  %v307 = vpop.f32.mrb[0].mxu0
  %v308 = vadd.f32 %v141, %v307
  %309 = vdwg.mxu0
  %310 = vmatprep.subr.mxu0 0.0
  %311 = vmatpush1.xpose.msra.mxu0 %v92
  %312 = vmatprep.subr.mxu0 0.0
  %313 = vmatpush1.xpose.msra.mxu0 %v93
  %314 = vmatprep.subr.mxu0 0.0
  %315 = vmatpush1.xpose.msra.mxu0 %v94
  %316 = vmatprep.subr.mxu0 0.0
  %317 = vmatpush1.xpose.msra.mxu0 %v95
  %318 = vmatprep.subr.mxu0 0.0
  %319 = vmatpush1.xpose.msra.mxu0 %v96
  %320 = vmatprep.subr.mxu0 0.0
  %321 = vmatpush1.xpose.msra.mxu0 %v97
  %322 = vmatprep.subr.mxu0 0.0
  %323 = vmatpush1.xpose.msra.mxu0 %v98
  %324 = vmatprep.subr.mxu0 0.0
  %325 = vmatpush1.xpose.msra.mxu0 %v99
  %326 = vmatprep.subr.mxu0 0.0
  %327 = vmatpush1.xpose.msra.mxu0 %v100
  %328 = vmatprep.subr.mxu0 0.0
  %329 = vmatpush1.xpose.msra.mxu0 %v101
  %330 = vmatprep.subr.mxu0 0.0
  %331 = vmatpush1.xpose.msra.mxu0 %v102
  %332 = vmatprep.subr.mxu0 0.0
  %333 = vmatpush1.xpose.msra.mxu0 %v103
  %334 = vmatprep.subr.mxu0 0.0
  %335 = vmatpush1.xpose.msra.mxu0 %v104
  %336 = vmatprep.subr.mxu0 0.0
  %337 = vmatpush1.xpose.msra.mxu0 %v105
  %338 = vmatprep.subr.mxu0 0.0
  %339 = vmatpush1.xpose.msra.mxu0 %v106
  %340 = vmatprep.subr.mxu0 0.0
  %341 = vmatpush1.xpose.msra.mxu0 %v107
  %342 = vmatprep.subr.mxu0 0.0
  %343 = vmatpush1.xpose.msra.mxu0 %v108
  %344 = vmatprep.subr.mxu0 0.0
  %345 = vmatpush1.xpose.msra.mxu0 %v109
  %346 = vmatprep.subr.mxu0 0.0
  %347 = vmatpush1.xpose.msra.mxu0 %v110
  %348 = vmatprep.subr.mxu0 0.0
  %349 = vmatpush1.xpose.msra.mxu0 %v111
  %350 = vmatprep.subr.mxu0 0.0
  %351 = vmatpush1.xpose.msra.mxu0 %v112
  %352 = vmatprep.subr.mxu0 0.0
  %353 = vmatpush1.xpose.msra.mxu0 %v113
  %354 = vmatprep.subr.mxu0 0.0
  %355 = vmatpush1.xpose.msra.mxu0 %v114
  %356 = vmatprep.subr.mxu0 0.0
  %357 = vmatpush1.xpose.msra.mxu0 %v115
  %358 = vmatprep.subr.mxu0 0.0
  %359 = vmatpush1.xpose.msra.mxu0 %v116
  %360 = vmatprep.subr.mxu0 0.0
  %361 = vmatpush1.xpose.msra.mxu0 %v117
  %362 = vmatprep.subr.mxu0 0.0
  %363 = vmatpush1.xpose.msra.mxu0 %v118
  %364 = vmatprep.subr.mxu0 0.0
  %365 = vmatpush1.xpose.msra.mxu0 %v119
  %366 = vmatprep.subr.mxu0 0.0
  %367 = vmatpush1.xpose.msra.mxu0 %v120
  %368 = vmatprep.subr.mxu0 0.0
  %369 = vmatpush1.xpose.msra.mxu0 %v121
  %370 = vmatprep.subr.mxu0 0.0
  %371 = vmatpush1.xpose.msra.mxu0 %v122
  %372 = vmatprep.subr.mxu0 0.0
  %373 = vmatpush1.xpose.msra.mxu0 %v123
  %374 = vmatprep.mubr.f32.mxu0 0.0
  %375 = vmatmul.mubr.f32.gmra.mrb[0].mxu0 %v26
  %v376 = vpop.f32.mrb[0].mxu0
  %v377 = vadd.f32 %v145, %v376
  %v378 = vpop.f32.mrb[0].mxu0
  %v379 = vadd.f32 %v149, %v378
  %380 = vmatprep.mubr.f32.mxu0 0.0
  %381 = vmatmul.mubr.f32.gmra.mrb[0].mxu0 %v27
  %v382 = vpop.f32.mrb[0].mxu0
  %v383 = vadd.f32 %v145, %v382
  %v384 = vpop.f32.mrb[0].mxu0
  %v385 = vadd.f32 %v149, %v384
  %386 = vdwg.mxu0
  %387 = vst [vmem:[#allocation2] sm:$0xff] 0.0
  %388 = vst [vmem:[#allocation2 + $0x8] sm:$0xff] 0.0
  %391 = vrot.lane.b32.xlu0 %v223, 64
  %v392 = vpop.permute.xlu0 %391
  %393 = vrot.lane.b32.xlu0 %v229, 64
  %v394 = vpop.permute.xlu0 %393
  %vm395 = vcmask 523264
  %v396 = vsel %vm395, %v392, 0
  %v398 = vsel %vm395, %v394, 0
  %v400 = vsel %vm395, %v223, 0
  %v402 = vsel %vm395, %v229, 0
  %404 = vmatprep.subr.mxu0 0.0
  %405 = vmatpush1.xpose.msra.mxu0 %v400
  %406 = vmatprep.subr.mxu0 0.0
  %407 = vmatpush1.xpose.msra.mxu0 %v402
  %408 = vmatprep.subr.mxu0 0.0
  %409 = vmatpush1.xpose.msra.mxu0 0.0
  %410 = vmatprep.subr.mxu0 0.0
  %411 = vmatpush1.xpose.msra.mxu0 0.0
  %412 = vmatprep.subr.mxu0 0.0
  %413 = vmatpush1.xpose.msra.mxu0 0.0
  %414 = vmatprep.subr.mxu0 0.0
  %415 = vmatpush1.xpose.msra.mxu0 0.0
  %416 = vmatprep.subr.mxu0 0.0
  %417 = vmatpush1.xpose.msra.mxu0 0.0
  %418 = vmatprep.subr.mxu0 0.0
  %419 = vmatpush1.xpose.msra.mxu0 0.0
  %420 = vmatprep.subr.mxu0 0.0
  %421 = vmatpush1.xpose.msra.mxu0 0.0
  %422 = vmatprep.subr.mxu0 0.0
  %423 = vmatpush1.xpose.msra.mxu0 0.0
  %424 = vmatprep.subr.mxu0 0.0
  %425 = vmatpush1.xpose.msra.mxu0 0.0
  %426 = vmatprep.subr.mxu0 0.0
  %427 = vmatpush1.xpose.msra.mxu0 0.0
  %428 = vmatprep.subr.mxu0 0.0
  %429 = vmatpush1.xpose.msra.mxu0 0.0
  %430 = vmatprep.subr.mxu0 0.0
  %431 = vmatpush1.xpose.msra.mxu0 0.0
  %432 = vmatprep.subr.mxu0 0.0
  %433 = vmatpush1.xpose.msra.mxu0 0.0
  %434 = vmatprep.subr.mxu0 0.0
  %435 = vmatpush1.xpose.msra.mxu0 0.0
  %436 = vmatprep.subr.mxu0 0.0
  %437 = vmatpush1.xpose.msra.mxu0 0.0
  %438 = vmatprep.subr.mxu0 0.0
  %439 = vmatpush1.xpose.msra.mxu0 0.0
  %440 = vmatprep.subr.mxu0 0.0
  %441 = vmatpush1.xpose.msra.mxu0 0.0
  %442 = vmatprep.subr.mxu0 0.0
  %443 = vmatpush1.xpose.msra.mxu0 0.0
  %444 = vmatprep.subr.mxu0 0.0
  %445 = vmatpush1.xpose.msra.mxu0 0.0
  %446 = vmatprep.subr.mxu0 0.0
  %447 = vmatpush1.xpose.msra.mxu0 0.0
  %448 = vmatprep.subr.mxu0 0.0
  %449 = vmatpush1.xpose.msra.mxu0 0.0
  %450 = vmatprep.subr.mxu0 0.0
  %451 = vmatpush1.xpose.msra.mxu0 0.0
  %452 = vmatprep.subr.mxu0 0.0
  %453 = vmatpush1.xpose.msra.mxu0 0.0
  %454 = vmatprep.subr.mxu0 0.0
  %455 = vmatpush1.xpose.msra.mxu0 0.0
  %456 = vmatprep.subr.mxu0 0.0
  %457 = vmatpush1.xpose.msra.mxu0 0.0
  %458 = vmatprep.subr.mxu0 0.0
  %459 = vmatpush1.xpose.msra.mxu0 0.0
  %460 = vmatprep.subr.mxu0 0.0
  %461 = vmatpush1.xpose.msra.mxu0 0.0
  %462 = vmatprep.subr.mxu0 0.0
  %463 = vmatpush1.xpose.msra.mxu0 0.0
  %464 = vmatprep.subr.mxu0 0.0
  %465 = vmatpush1.xpose.msra.mxu0 0.0
  %466 = vmatprep.subr.mxu0 0.0
  %467 = vmatpush1.xpose.msra.mxu0 0.0
  %468 = vmatprep.mubr.f32.mxu0 0.0
  %469 = vmatmul.mubr.f32.gmra.mrb[0].mxu0 %v396
  %v470 = vpop.f32.mrb[0].mxu0
  %v471 = vadd.f32 0.0, %v470
  %v472 = vpop.f32.mrb[0].mxu0
  %473 = vmatprep.mubr.f32.mxu0 0.0
  %474 = vmatmul.mubr.f32.gmra.mrb[0].mxu0 %v398
  %v475 = vpop.f32.mrb[0].mxu0
  %v476 = vadd.f32 0.0, %v475
  %v477 = vpop.f32.mrb[0].mxu0
  %478 = vdwg.mxu0
  %v479 = vmul.f32 %v471, 0.17677669
  %v480 = vmul.f32 %v476, 0.17677669
  %v481 = vld [vmem:[%s6] sm:$0xff]
  %v482 = vld [vmem:[%s6 + $0x8] sm:$0xff]
  %vm483 = vcmask 130048
  %v484 = vsel %vm483, %v479, -inf
  %485 = vmax.xlane.f32.xlu0 %v484
  %v486 = vpop.xlane.xlu0 %485
  %v487 = vsel %vm483, %v480, -inf
  %488 = vmax.xlane.f32.xlu0 %v487
  %v489 = vpop.xlane.xlu0 %488
  %v490 = vsub.f32 %v479, %v486
  %v491 = vsub.f32 %v480, %v489
  %v492 = vmul.f32 %v490, 1.442695
  %v493 = vpow.pop %v492
  %v494 = vmul.f32 %v491, 1.442695
  %v495 = vpow.pop %v494
  %v496 = vmul.f32 %v493, %v481
  %v497 = vmul.f32 %v495, %v482
  %v498 = vsel %vm483, %v496, 0.0
  %499 = vadd.xlane.f32.xlu0 %v498
  %v500 = vpop.xlane.xlu0 %499
  %v501 = vsel %vm483, %v497, 0.0
  %502 = vadd.xlane.f32.xlu0 %v501
  %v503 = vpop.xlane.xlu0 %502
  %v504 = vmax.f32 %v500, 1e-20
  %v505 = vmax.f32 %v503, 1e-20
  %v506 = vrcp.pop %v504
  %v507 = vrcp.pop %v505
  %v508 = vmul.f32 %v496, %v506
  %v509 = vmul.f32 %v497, %v507
  %v511 = vsel %vm483, %v508, 0
  %v514 = vsel %vm483, %v509, 0
  %516 = vmatprep.subr.mxu0 0.0
  %517 = vmatpush1.msra.mxu0 %v225
  %518 = vmatprep.subr.mxu0 0.0
  %519 = vmatpush1.msra.mxu0 %v231
  %520 = vmatprep.subr.mxu0 0.0
  %521 = vmatpush1.msra.mxu0 0.0
  %522 = vmatprep.subr.mxu0 0.0
  %523 = vmatpush1.msra.mxu0 0.0
  %524 = vmatprep.subr.mxu0 0.0
  %525 = vmatpush1.msra.mxu0 0.0
  %526 = vmatprep.subr.mxu0 0.0
  %527 = vmatpush1.msra.mxu0 0.0
  %528 = vmatprep.subr.mxu0 0.0
  %529 = vmatpush1.msra.mxu0 0.0
  %530 = vmatprep.subr.mxu0 0.0
  %531 = vmatpush1.msra.mxu0 0.0
  %532 = vmatprep.subr.mxu0 0.0
  %533 = vmatpush1.msra.mxu0 0.0
  %534 = vmatprep.subr.mxu0 0.0
  %535 = vmatpush1.msra.mxu0 0.0
  %536 = vmatprep.subr.mxu0 0.0
  %537 = vmatpush1.msra.mxu0 0.0
  %538 = vmatprep.subr.mxu0 0.0
  %539 = vmatpush1.msra.mxu0 0.0
  %540 = vmatprep.subr.mxu0 0.0
  %541 = vmatpush1.msra.mxu0 0.0
  %542 = vmatprep.subr.mxu0 0.0
  %543 = vmatpush1.msra.mxu0 0.0
  %544 = vmatprep.subr.mxu0 0.0
  %545 = vmatpush1.msra.mxu0 0.0
  %546 = vmatprep.subr.mxu0 0.0
  %547 = vmatpush1.msra.mxu0 0.0
  %548 = vmatprep.subr.mxu0 0.0
  %549 = vmatpush1.msra.mxu0 0.0
  %550 = vmatprep.subr.mxu0 0.0
  %551 = vmatpush1.msra.mxu0 0.0
  %552 = vmatprep.subr.mxu0 0.0
  %553 = vmatpush1.msra.mxu0 0.0
  %554 = vmatprep.subr.mxu0 0.0
  %555 = vmatpush1.msra.mxu0 0.0
  %556 = vmatprep.subr.mxu0 0.0
  %557 = vmatpush1.msra.mxu0 0.0
  %558 = vmatprep.subr.mxu0 0.0
  %559 = vmatpush1.msra.mxu0 0.0
  %560 = vmatprep.subr.mxu0 0.0
  %561 = vmatpush1.msra.mxu0 0.0
  %562 = vmatprep.subr.mxu0 0.0
  %563 = vmatpush1.msra.mxu0 0.0
  %564 = vmatprep.subr.mxu0 0.0
  %565 = vmatpush1.msra.mxu0 0.0
  %566 = vmatprep.subr.mxu0 0.0
  %567 = vmatpush1.msra.mxu0 0.0
  %568 = vmatprep.subr.mxu0 0.0
  %569 = vmatpush1.msra.mxu0 0.0
  %570 = vmatprep.subr.mxu0 0.0
  %571 = vmatpush1.msra.mxu0 0.0
  %572 = vmatprep.subr.mxu0 0.0
  %573 = vmatpush1.msra.mxu0 0.0
  %574 = vmatprep.subr.mxu0 0.0
  %575 = vmatpush1.msra.mxu0 0.0
  %576 = vmatprep.subr.mxu0 0.0
  %577 = vmatpush1.msra.mxu0 0.0
  %578 = vmatprep.subr.mxu0 0.0
  %579 = vmatpush1.msra.mxu0 0.0
  %580 = vmatprep.mubr.f32.mxu0 0.0
  %581 = vmatmul.mubr.f32.gmra.mrb[0].mxu0 %v511
  %v582 = vpop.f32.mrb[0].mxu0
  %v583 = vadd.f32 0.0, %v582
  %v584 = vpop.f32.mrb[0].mxu0
  %585 = vmatprep.mubr.f32.mxu0 0.0
  %586 = vmatmul.mubr.f32.gmra.mrb[0].mxu0 %v514
  %v587 = vpop.f32.mrb[0].mxu0
  %v588 = vadd.f32 0.0, %v587
  %v589 = vpop.f32.mrb[0].mxu0
  %590 = vdwg.mxu0
  %v591 = vadd.f32 %v583, 0.0
  %v592 = vadd.f32 %v588, 0.0
  %vm593 = vcmask 261248
  %594 = vst.msk [vmem:[#allocation2] sm:$0xff] %vm593, %v583
  %595 = vst.msk [vmem:[#allocation2 + $0x8] sm:$0xff] %vm593, %v588
  %598 = vrot.lane.b32.xlu0 %v225, 64
  %v599 = vpop.permute.xlu0 %598
  %600 = vrot.lane.b32.xlu0 %v231, 64
  %v601 = vpop.permute.xlu0 %600
  %v603 = vsel %vm395, %v300, 0
  %v606 = vsel %vm395, %v306, 0
  %v608 = vsel %vm395, %v599, 0
  %v610 = vsel %vm395, %v601, 0
  %612 = vmatprep.subr.mxu0 0.0
  %613 = vmatpush1.xpose.msra.mxu0 %v608
  %614 = vmatprep.subr.mxu0 0.0
  %615 = vmatpush1.xpose.msra.mxu0 %v610
  %616 = vmatprep.subr.mxu0 0.0
  %617 = vmatpush1.xpose.msra.mxu0 0.0
  %618 = vmatprep.subr.mxu0 0.0
  %619 = vmatpush1.xpose.msra.mxu0 0.0
  %620 = vmatprep.subr.mxu0 0.0
  %621 = vmatpush1.xpose.msra.mxu0 0.0
  %622 = vmatprep.subr.mxu0 0.0
  %623 = vmatpush1.xpose.msra.mxu0 0.0
  %624 = vmatprep.subr.mxu0 0.0
  %625 = vmatpush1.xpose.msra.mxu0 0.0
  %626 = vmatprep.subr.mxu0 0.0
  %627 = vmatpush1.xpose.msra.mxu0 0.0
  %628 = vmatprep.subr.mxu0 0.0
  %629 = vmatpush1.xpose.msra.mxu0 0.0
  %630 = vmatprep.subr.mxu0 0.0
  %631 = vmatpush1.xpose.msra.mxu0 0.0
  %632 = vmatprep.subr.mxu0 0.0
  %633 = vmatpush1.xpose.msra.mxu0 0.0
  %634 = vmatprep.subr.mxu0 0.0
  %635 = vmatpush1.xpose.msra.mxu0 0.0
  %636 = vmatprep.subr.mxu0 0.0
  %637 = vmatpush1.xpose.msra.mxu0 0.0
  %638 = vmatprep.subr.mxu0 0.0
  %639 = vmatpush1.xpose.msra.mxu0 0.0
  %640 = vmatprep.subr.mxu0 0.0
  %641 = vmatpush1.xpose.msra.mxu0 0.0
  %642 = vmatprep.subr.mxu0 0.0
  %643 = vmatpush1.xpose.msra.mxu0 0.0
  %644 = vmatprep.subr.mxu0 0.0
  %645 = vmatpush1.xpose.msra.mxu0 0.0
  %646 = vmatprep.subr.mxu0 0.0
  %647 = vmatpush1.xpose.msra.mxu0 0.0
  %648 = vmatprep.subr.mxu0 0.0
  %649 = vmatpush1.xpose.msra.mxu0 0.0
  %650 = vmatprep.subr.mxu0 0.0
  %651 = vmatpush1.xpose.msra.mxu0 0.0
  %652 = vmatprep.subr.mxu0 0.0
  %653 = vmatpush1.xpose.msra.mxu0 0.0
  %654 = vmatprep.subr.mxu0 0.0
  %655 = vmatpush1.xpose.msra.mxu0 0.0
  %656 = vmatprep.subr.mxu0 0.0
  %657 = vmatpush1.xpose.msra.mxu0 0.0
  %658 = vmatprep.subr.mxu0 0.0
  %659 = vmatpush1.xpose.msra.mxu0 0.0
  %660 = vmatprep.subr.mxu0 0.0
  %661 = vmatpush1.xpose.msra.mxu0 0.0
  %662 = vmatprep.subr.mxu0 0.0
  %663 = vmatpush1.xpose.msra.mxu0 0.0
  %664 = vmatprep.subr.mxu0 0.0
  %665 = vmatpush1.xpose.msra.mxu0 0.0
  %666 = vmatprep.subr.mxu0 0.0
  %667 = vmatpush1.xpose.msra.mxu0 0.0
  %668 = vmatprep.subr.mxu0 0.0
  %669 = vmatpush1.xpose.msra.mxu0 0.0
  %670 = vmatprep.subr.mxu0 0.0
  %671 = vmatpush1.xpose.msra.mxu0 0.0
  %672 = vmatprep.subr.mxu0 0.0
  %673 = vmatpush1.xpose.msra.mxu0 0.0
  %674 = vmatprep.subr.mxu0 0.0
  %675 = vmatpush1.xpose.msra.mxu0 0.0
  %676 = vmatprep.mubr.f32.mxu0 0.0
  %677 = vmatmul.mubr.f32.gmra.mrb[0].mxu0 %v603
  %v678 = vpop.f32.mrb[0].mxu0
  %v679 = vadd.f32 0.0, %v678
  %v680 = vpop.f32.mrb[0].mxu0
  %681 = vmatprep.mubr.f32.mxu0 0.0
  %682 = vmatmul.mubr.f32.gmra.mrb[0].mxu0 %v606
  %v683 = vpop.f32.mrb[0].mxu0
  %v684 = vadd.f32 0.0, %v683
  %v685 = vpop.f32.mrb[0].mxu0
  %686 = vdwg.mxu0
  %v687 = vmul.f32 %v679, 0.17677669
  %v688 = vmul.f32 %v684, 0.17677669
  %s689 = scalar_lea.vmem %s6, 16
  %v690 = vld [vmem:[%s689] sm:$0xff]
  %v691 = vld [vmem:[%s689 + $0x8] sm:$0xff]
  %v692 = vsel %vm483, %v687, -inf
  %693 = vmax.xlane.f32.xlu0 %v692
  %v694 = vpop.xlane.xlu0 %693
  %v695 = vsel %vm483, %v688, -inf
  %696 = vmax.xlane.f32.xlu0 %v695
  %v697 = vpop.xlane.xlu0 %696
  %v698 = vsub.f32 %v687, %v694
  %v699 = vsub.f32 %v688, %v697
  %v700 = vmul.f32 %v698, 1.442695
  %v701 = vpow.pop %v700
  %v702 = vmul.f32 %v699, 1.442695
  %v703 = vpow.pop %v702
  %v704 = vmul.f32 %v701, %v690
  %v705 = vmul.f32 %v703, %v691
  %v706 = vsel %vm483, %v704, 0.0
  %707 = vadd.xlane.f32.xlu0 %v706
  %v708 = vpop.xlane.xlu0 %707
  %v709 = vsel %vm483, %v705, 0.0
  %710 = vadd.xlane.f32.xlu0 %v709
  %v711 = vpop.xlane.xlu0 %710
  %v712 = vmax.f32 %v708, 1e-20
  %v713 = vmax.f32 %v711, 1e-20
  %v714 = vrcp.pop %v712
  %v715 = vrcp.pop %v713
  %v716 = vmul.f32 %v704, %v714
  %v717 = vmul.f32 %v705, %v715
  %718 = vrot.lane.b32.xlu0 %v300, 64
  %v719 = vpop.permute.xlu0 %718
  %720 = vrot.lane.b32.xlu0 %v306, 64
  %v721 = vpop.permute.xlu0 %720
  %v725 = vsel %vm483, %v716, 0
  %v728 = vsel %vm483, %v717, 0
  %730 = vmatprep.subr.mxu0 0.0
  %731 = vmatpush1.msra.mxu0 %v719
  %732 = vmatprep.subr.mxu0 0.0
  %733 = vmatpush1.msra.mxu0 %v721
  %734 = vmatprep.subr.mxu0 0.0
  %735 = vmatpush1.msra.mxu0 0.0
  %736 = vmatprep.subr.mxu0 0.0
  %737 = vmatpush1.msra.mxu0 0.0
  %738 = vmatprep.subr.mxu0 0.0
  %739 = vmatpush1.msra.mxu0 0.0
  %740 = vmatprep.subr.mxu0 0.0
  %741 = vmatpush1.msra.mxu0 0.0
  %742 = vmatprep.subr.mxu0 0.0
  %743 = vmatpush1.msra.mxu0 0.0
  %744 = vmatprep.subr.mxu0 0.0
  %745 = vmatpush1.msra.mxu0 0.0
  %746 = vmatprep.subr.mxu0 0.0
  %747 = vmatpush1.msra.mxu0 0.0
  %748 = vmatprep.subr.mxu0 0.0
  %749 = vmatpush1.msra.mxu0 0.0
  %750 = vmatprep.subr.mxu0 0.0
  %751 = vmatpush1.msra.mxu0 0.0
  %752 = vmatprep.subr.mxu0 0.0
  %753 = vmatpush1.msra.mxu0 0.0
  %754 = vmatprep.subr.mxu0 0.0
  %755 = vmatpush1.msra.mxu0 0.0
  %756 = vmatprep.subr.mxu0 0.0
  %757 = vmatpush1.msra.mxu0 0.0
  %758 = vmatprep.subr.mxu0 0.0
  %759 = vmatpush1.msra.mxu0 0.0
  %760 = vmatprep.subr.mxu0 0.0
  %761 = vmatpush1.msra.mxu0 0.0
  %762 = vmatprep.subr.mxu0 0.0
  %763 = vmatpush1.msra.mxu0 0.0
  %764 = vmatprep.subr.mxu0 0.0
  %765 = vmatpush1.msra.mxu0 0.0
  %766 = vmatprep.subr.mxu0 0.0
  %767 = vmatpush1.msra.mxu0 0.0
  %768 = vmatprep.subr.mxu0 0.0
  %769 = vmatpush1.msra.mxu0 0.0
  %770 = vmatprep.subr.mxu0 0.0
  %771 = vmatpush1.msra.mxu0 0.0
  %772 = vmatprep.subr.mxu0 0.0
  %773 = vmatpush1.msra.mxu0 0.0
  %774 = vmatprep.subr.mxu0 0.0
  %775 = vmatpush1.msra.mxu0 0.0
  %776 = vmatprep.subr.mxu0 0.0
  %777 = vmatpush1.msra.mxu0 0.0
  %778 = vmatprep.subr.mxu0 0.0
  %779 = vmatpush1.msra.mxu0 0.0
  %780 = vmatprep.subr.mxu0 0.0
  %781 = vmatpush1.msra.mxu0 0.0
  %782 = vmatprep.subr.mxu0 0.0
  %783 = vmatpush1.msra.mxu0 0.0
  %784 = vmatprep.subr.mxu0 0.0
  %785 = vmatpush1.msra.mxu0 0.0
  %786 = vmatprep.subr.mxu0 0.0
  %787 = vmatpush1.msra.mxu0 0.0
  %788 = vmatprep.subr.mxu0 0.0
  %789 = vmatpush1.msra.mxu0 0.0
  %790 = vmatprep.subr.mxu0 0.0
  %791 = vmatpush1.msra.mxu0 0.0
  %792 = vmatprep.subr.mxu0 0.0
  %793 = vmatpush1.msra.mxu0 0.0
  %794 = vmatprep.mubr.f32.mxu0 0.0
  %795 = vmatmul.mubr.f32.gmra.mrb[0].mxu0 %v725
  %v796 = vpop.f32.mrb[0].mxu0
  %v797 = vadd.f32 0.0, %v796
  %v798 = vpop.f32.mrb[0].mxu0
  %799 = vmatprep.mubr.f32.mxu0 0.0
  %800 = vmatmul.mubr.f32.gmra.mrb[0].mxu0 %v728
  %v801 = vpop.f32.mrb[0].mxu0
  %v802 = vadd.f32 0.0, %v801
  %v803 = vpop.f32.mrb[0].mxu0
  %804 = vdwg.mxu0
  %v805 = vadd.f32 %v591, %v797
  %v806 = vadd.f32 %v592, %v802
  %809 = vrot.lane.b32.xlu0 %v797, 16
  %v810 = vpop.permute.xlu0 %809
  %811 = vrot.lane.b32.xlu0 %v802, 16
  %v812 = vpop.permute.xlu0 %811
  %vm815 = vcmask 392448
  %816 = vst.msk [vmem:[#allocation2] sm:$0xff] %vm815, %v810
  %817 = vst.msk [vmem:[#allocation2 + $0x8] sm:$0xff] %vm815, %v812
  %820 = vrot.lane.b32.xlu0 %v302, 64
  %v821 = vpop.permute.xlu0 %820
  %822 = vrot.lane.b32.xlu0 %v308, 64
  %v823 = vpop.permute.xlu0 %822
  %v824 = vsel %vm395, %v821, 0
  %v826 = vsel %vm395, %v823, 0
  %v828 = vsel %vm395, %v302, 0
  %v830 = vsel %vm395, %v308, 0
  %832 = vmatprep.subr.mxu0 0.0
  %833 = vmatpush1.xpose.msra.mxu0 %v828
  %834 = vmatprep.subr.mxu0 0.0
  %835 = vmatpush1.xpose.msra.mxu0 %v830
  %836 = vmatprep.subr.mxu0 0.0
  %837 = vmatpush1.xpose.msra.mxu0 0.0
  %838 = vmatprep.subr.mxu0 0.0
  %839 = vmatpush1.xpose.msra.mxu0 0.0
  %840 = vmatprep.subr.mxu0 0.0
  %841 = vmatpush1.xpose.msra.mxu0 0.0
  %842 = vmatprep.subr.mxu0 0.0
  %843 = vmatpush1.xpose.msra.mxu0 0.0
  %844 = vmatprep.subr.mxu0 0.0
  %845 = vmatpush1.xpose.msra.mxu0 0.0
  %846 = vmatprep.subr.mxu0 0.0
  %847 = vmatpush1.xpose.msra.mxu0 0.0
  %848 = vmatprep.subr.mxu0 0.0
  %849 = vmatpush1.xpose.msra.mxu0 0.0
  %850 = vmatprep.subr.mxu0 0.0
  %851 = vmatpush1.xpose.msra.mxu0 0.0
  %852 = vmatprep.subr.mxu0 0.0
  %853 = vmatpush1.xpose.msra.mxu0 0.0
  %854 = vmatprep.subr.mxu0 0.0
  %855 = vmatpush1.xpose.msra.mxu0 0.0
  %856 = vmatprep.subr.mxu0 0.0
  %857 = vmatpush1.xpose.msra.mxu0 0.0
  %858 = vmatprep.subr.mxu0 0.0
  %859 = vmatpush1.xpose.msra.mxu0 0.0
  %860 = vmatprep.subr.mxu0 0.0
  %861 = vmatpush1.xpose.msra.mxu0 0.0
  %862 = vmatprep.subr.mxu0 0.0
  %863 = vmatpush1.xpose.msra.mxu0 0.0
  %864 = vmatprep.subr.mxu0 0.0
  %865 = vmatpush1.xpose.msra.mxu0 0.0
  %866 = vmatprep.subr.mxu0 0.0
  %867 = vmatpush1.xpose.msra.mxu0 0.0
  %868 = vmatprep.subr.mxu0 0.0
  %869 = vmatpush1.xpose.msra.mxu0 0.0
  %870 = vmatprep.subr.mxu0 0.0
  %871 = vmatpush1.xpose.msra.mxu0 0.0
  %872 = vmatprep.subr.mxu0 0.0
  %873 = vmatpush1.xpose.msra.mxu0 0.0
  %874 = vmatprep.subr.mxu0 0.0
  %875 = vmatpush1.xpose.msra.mxu0 0.0
  %876 = vmatprep.subr.mxu0 0.0
  %877 = vmatpush1.xpose.msra.mxu0 0.0
  %878 = vmatprep.subr.mxu0 0.0
  %879 = vmatpush1.xpose.msra.mxu0 0.0
  %880 = vmatprep.subr.mxu0 0.0
  %881 = vmatpush1.xpose.msra.mxu0 0.0
  %882 = vmatprep.subr.mxu0 0.0
  %883 = vmatpush1.xpose.msra.mxu0 0.0
  %884 = vmatprep.subr.mxu0 0.0
  %885 = vmatpush1.xpose.msra.mxu0 0.0
  %886 = vmatprep.subr.mxu0 0.0
  %887 = vmatpush1.xpose.msra.mxu0 0.0
  %888 = vmatprep.subr.mxu0 0.0
  %889 = vmatpush1.xpose.msra.mxu0 0.0
  %890 = vmatprep.subr.mxu0 0.0
  %891 = vmatpush1.xpose.msra.mxu0 0.0
  %892 = vmatprep.subr.mxu0 0.0
  %893 = vmatpush1.xpose.msra.mxu0 0.0
  %894 = vmatprep.subr.mxu0 0.0
  %895 = vmatpush1.xpose.msra.mxu0 0.0
  %896 = vmatprep.mubr.f32.mxu0 0.0
  %897 = vmatmul.mubr.f32.gmra.mrb[0].mxu0 %v824
  %v898 = vpop.f32.mrb[0].mxu0
  %v899 = vadd.f32 0.0, %v898
  %v900 = vpop.f32.mrb[0].mxu0
  %901 = vmatprep.mubr.f32.mxu0 0.0
  %902 = vmatmul.mubr.f32.gmra.mrb[0].mxu0 %v826
  %v903 = vpop.f32.mrb[0].mxu0
  %v904 = vadd.f32 0.0, %v903
  %v905 = vpop.f32.mrb[0].mxu0
  %906 = vdwg.mxu0
  %v907 = vmul.f32 %v899, 0.17677669
  %v908 = vmul.f32 %v904, 0.17677669
  %s909 = scalar_lea.vmem %s6, 32
  %v910 = vld [vmem:[%s909] sm:$0xff]
  %v911 = vld [vmem:[%s909 + $0x8] sm:$0xff]
  %v912 = vsel %vm483, %v907, -inf
  %913 = vmax.xlane.f32.xlu0 %v912
  %v914 = vpop.xlane.xlu0 %913
  %v915 = vsel %vm483, %v908, -inf
  %916 = vmax.xlane.f32.xlu0 %v915
  %v917 = vpop.xlane.xlu0 %916
  %v918 = vsub.f32 %v907, %v914
  %v919 = vsub.f32 %v908, %v917
  %v920 = vmul.f32 %v918, 1.442695
  %v921 = vpow.pop %v920
  %v922 = vmul.f32 %v919, 1.442695
  %v923 = vpow.pop %v922
  %v924 = vmul.f32 %v921, %v910
  %v925 = vmul.f32 %v923, %v911
  %v926 = vsel %vm483, %v924, 0.0
  %927 = vadd.xlane.f32.xlu0 %v926
  %v928 = vpop.xlane.xlu0 %927
  %v929 = vsel %vm483, %v925, 0.0
  %930 = vadd.xlane.f32.xlu0 %v929
  %v931 = vpop.xlane.xlu0 %930
  %v932 = vmax.f32 %v928, 1e-20
  %v933 = vmax.f32 %v931, 1e-20
  %v934 = vrcp.pop %v932
  %v935 = vrcp.pop %v933
  %v936 = vmul.f32 %v924, %v934
  %v937 = vmul.f32 %v925, %v935
  %v939 = vsel %vm483, %v936, 0
  %v942 = vsel %vm483, %v937, 0
  %944 = vmatprep.subr.mxu0 0.0
  %945 = vmatpush1.msra.mxu0 %v377
  %946 = vmatprep.subr.mxu0 0.0
  %947 = vmatpush1.msra.mxu0 %v383
  %948 = vmatprep.subr.mxu0 0.0
  %949 = vmatpush1.msra.mxu0 0.0
  %950 = vmatprep.subr.mxu0 0.0
  %951 = vmatpush1.msra.mxu0 0.0
  %952 = vmatprep.subr.mxu0 0.0
  %953 = vmatpush1.msra.mxu0 0.0
  %954 = vmatprep.subr.mxu0 0.0
  %955 = vmatpush1.msra.mxu0 0.0
  %956 = vmatprep.subr.mxu0 0.0
  %957 = vmatpush1.msra.mxu0 0.0
  %958 = vmatprep.subr.mxu0 0.0
  %959 = vmatpush1.msra.mxu0 0.0
  %960 = vmatprep.subr.mxu0 0.0
  %961 = vmatpush1.msra.mxu0 0.0
  %962 = vmatprep.subr.mxu0 0.0
  %963 = vmatpush1.msra.mxu0 0.0
  %964 = vmatprep.subr.mxu0 0.0
  %965 = vmatpush1.msra.mxu0 0.0
  %966 = vmatprep.subr.mxu0 0.0
  %967 = vmatpush1.msra.mxu0 0.0
  %968 = vmatprep.subr.mxu0 0.0
  %969 = vmatpush1.msra.mxu0 0.0
  %970 = vmatprep.subr.mxu0 0.0
  %971 = vmatpush1.msra.mxu0 0.0
  %972 = vmatprep.subr.mxu0 0.0
  %973 = vmatpush1.msra.mxu0 0.0
  %974 = vmatprep.subr.mxu0 0.0
  %975 = vmatpush1.msra.mxu0 0.0
  %976 = vmatprep.subr.mxu0 0.0
  %977 = vmatpush1.msra.mxu0 0.0
  %978 = vmatprep.subr.mxu0 0.0
  %979 = vmatpush1.msra.mxu0 0.0
  %980 = vmatprep.subr.mxu0 0.0
  %981 = vmatpush1.msra.mxu0 0.0
  %982 = vmatprep.subr.mxu0 0.0
  %983 = vmatpush1.msra.mxu0 0.0
  %984 = vmatprep.subr.mxu0 0.0
  %985 = vmatpush1.msra.mxu0 0.0
  %986 = vmatprep.subr.mxu0 0.0
  %987 = vmatpush1.msra.mxu0 0.0
  %988 = vmatprep.subr.mxu0 0.0
  %989 = vmatpush1.msra.mxu0 0.0
  %990 = vmatprep.subr.mxu0 0.0
  %991 = vmatpush1.msra.mxu0 0.0
  %992 = vmatprep.subr.mxu0 0.0
  %993 = vmatpush1.msra.mxu0 0.0
  %994 = vmatprep.subr.mxu0 0.0
  %995 = vmatpush1.msra.mxu0 0.0
  %996 = vmatprep.subr.mxu0 0.0
  %997 = vmatpush1.msra.mxu0 0.0
  %998 = vmatprep.subr.mxu0 0.0
  %999 = vmatpush1.msra.mxu0 0.0
  %1000 = vmatprep.subr.mxu0 0.0
  %1001 = vmatpush1.msra.mxu0 0.0
  %1002 = vmatprep.subr.mxu0 0.0
  %1003 = vmatpush1.msra.mxu0 0.0
  %1004 = vmatprep.subr.mxu0 0.0
  %1005 = vmatpush1.msra.mxu0 0.0
  %1006 = vmatprep.subr.mxu0 0.0
  %1007 = vmatpush1.msra.mxu0 0.0
  %1008 = vmatprep.mubr.f32.mxu0 0.0
  %1009 = vmatmul.mubr.f32.gmra.mrb[0].mxu0 %v939
  %v1010 = vpop.f32.mrb[0].mxu0
  %v1011 = vadd.f32 0.0, %v1010
  %v1012 = vpop.f32.mrb[0].mxu0
  %1013 = vmatprep.mubr.f32.mxu0 0.0
  %1014 = vmatmul.mubr.f32.gmra.mrb[0].mxu0 %v942
  %v1015 = vpop.f32.mrb[0].mxu0
  %v1016 = vadd.f32 0.0, %v1015
  %v1017 = vpop.f32.mrb[0].mxu0
  %1018 = vdwg.mxu0
  %v1019 = vadd.f32 %v805, %v1011
  %v1020 = vadd.f32 %v806, %v1016
  %1023 = vrot.lane.b32.xlu0 %v1011, 32
  %v1024 = vpop.permute.xlu0 %1023
  %1025 = vrot.lane.b32.xlu0 %v1016, 32
  %v1026 = vpop.permute.xlu0 %1025
  %vm1029 = vcmask 523648
  %1030 = vst.msk [vmem:[#allocation2] sm:$0xff] %vm1029, %v1024
  %1031 = vst.msk [vmem:[#allocation2 + $0x8] sm:$0xff] %vm1029, %v1026
  %1034 = vrot.lane.b32.xlu0 %v377, 64
  %v1035 = vpop.permute.xlu0 %1034
  %1036 = vrot.lane.b32.xlu0 %v383, 64
  %v1037 = vpop.permute.xlu0 %1036
  %v1039 = vsel %vm395, %v379, 0
  %v1042 = vsel %vm395, %v385, 0
  %v1044 = vsel %vm395, %v1035, 0
  %v1046 = vsel %vm395, %v1037, 0
  %1048 = vmatprep.subr.mxu0 0.0
  %1049 = vmatpush1.xpose.msra.mxu0 %v1044
  %1050 = vmatprep.subr.mxu0 0.0
  %1051 = vmatpush1.xpose.msra.mxu0 %v1046
  %1052 = vmatprep.subr.mxu0 0.0
  %1053 = vmatpush1.xpose.msra.mxu0 0.0
  %1054 = vmatprep.subr.mxu0 0.0
  %1055 = vmatpush1.xpose.msra.mxu0 0.0
  %1056 = vmatprep.subr.mxu0 0.0
  %1057 = vmatpush1.xpose.msra.mxu0 0.0
  %1058 = vmatprep.subr.mxu0 0.0
  %1059 = vmatpush1.xpose.msra.mxu0 0.0
  %1060 = vmatprep.subr.mxu0 0.0
  %1061 = vmatpush1.xpose.msra.mxu0 0.0
  %1062 = vmatprep.subr.mxu0 0.0
  %1063 = vmatpush1.xpose.msra.mxu0 0.0
  %1064 = vmatprep.subr.mxu0 0.0
  %1065 = vmatpush1.xpose.msra.mxu0 0.0
  %1066 = vmatprep.subr.mxu0 0.0
  %1067 = vmatpush1.xpose.msra.mxu0 0.0
  %1068 = vmatprep.subr.mxu0 0.0
  %1069 = vmatpush1.xpose.msra.mxu0 0.0
  %1070 = vmatprep.subr.mxu0 0.0
  %1071 = vmatpush1.xpose.msra.mxu0 0.0
  %1072 = vmatprep.subr.mxu0 0.0
  %1073 = vmatpush1.xpose.msra.mxu0 0.0
  %1074 = vmatprep.subr.mxu0 0.0
  %1075 = vmatpush1.xpose.msra.mxu0 0.0
  %1076 = vmatprep.subr.mxu0 0.0
  %1077 = vmatpush1.xpose.msra.mxu0 0.0
  %1078 = vmatprep.subr.mxu0 0.0
  %1079 = vmatpush1.xpose.msra.mxu0 0.0
  %1080 = vmatprep.subr.mxu0 0.0
  %1081 = vmatpush1.xpose.msra.mxu0 0.0
  %1082 = vmatprep.subr.mxu0 0.0
  %1083 = vmatpush1.xpose.msra.mxu0 0.0
  %1084 = vmatprep.subr.mxu0 0.0
  %1085 = vmatpush1.xpose.msra.mxu0 0.0
  %1086 = vmatprep.subr.mxu0 0.0
  %1087 = vmatpush1.xpose.msra.mxu0 0.0
  %1088 = vmatprep.subr.mxu0 0.0
  %1089 = vmatpush1.xpose.msra.mxu0 0.0
  %1090 = vmatprep.subr.mxu0 0.0
  %1091 = vmatpush1.xpose.msra.mxu0 0.0
  %1092 = vmatprep.subr.mxu0 0.0
  %1093 = vmatpush1.xpose.msra.mxu0 0.0
  %1094 = vmatprep.subr.mxu0 0.0
  %1095 = vmatpush1.xpose.msra.mxu0 0.0
  %1096 = vmatprep.subr.mxu0 0.0
  %1097 = vmatpush1.xpose.msra.mxu0 0.0
  %1098 = vmatprep.subr.mxu0 0.0
  %1099 = vmatpush1.xpose.msra.mxu0 0.0
  %1100 = vmatprep.subr.mxu0 0.0
  %1101 = vmatpush1.xpose.msra.mxu0 0.0
  %1102 = vmatprep.subr.mxu0 0.0
  %1103 = vmatpush1.xpose.msra.mxu0 0.0
  %1104 = vmatprep.subr.mxu0 0.0
  %1105 = vmatpush1.xpose.msra.mxu0 0.0
  %1106 = vmatprep.subr.mxu0 0.0
  %1107 = vmatpush1.xpose.msra.mxu0 0.0
  %1108 = vmatprep.subr.mxu0 0.0
  %1109 = vmatpush1.xpose.msra.mxu0 0.0
  %1110 = vmatprep.subr.mxu0 0.0
  %1111 = vmatpush1.xpose.msra.mxu0 0.0
  %1112 = vmatprep.mubr.f32.mxu0 0.0
  %1113 = vmatmul.mubr.f32.gmra.mrb[0].mxu0 %v1039
  %v1114 = vpop.f32.mrb[0].mxu0
  %v1115 = vadd.f32 0.0, %v1114
  %v1116 = vpop.f32.mrb[0].mxu0
  %1117 = vmatprep.mubr.f32.mxu0 0.0
  %1118 = vmatmul.mubr.f32.gmra.mrb[0].mxu0 %v1042
  %v1119 = vpop.f32.mrb[0].mxu0
  %v1120 = vadd.f32 0.0, %v1119
  %v1121 = vpop.f32.mrb[0].mxu0
  %1122 = vdwg.mxu0
  %v1123 = vmul.f32 %v1115, 0.125
  %v1124 = vmul.f32 %v1120, 0.125
  %s1125 = scalar_lea.vmem %s6, 48
  %v1126 = vld [vmem:[%s1125] sm:$0xff]
  %v1127 = vld [vmem:[%s1125 + $0x8] sm:$0xff]
  %v1128 = vsel %vm483, %v1123, -inf
  %1129 = vmax.xlane.f32.xlu0 %v1128
  %v1130 = vpop.xlane.xlu0 %1129
  %v1131 = vsel %vm483, %v1124, -inf
  %1132 = vmax.xlane.f32.xlu0 %v1131
  %v1133 = vpop.xlane.xlu0 %1132
  %v1134 = vsub.f32 %v1123, %v1130
  %v1135 = vsub.f32 %v1124, %v1133
  %v1136 = vmul.f32 %v1134, 1.442695
  %v1137 = vpow.pop %v1136
  %v1138 = vmul.f32 %v1135, 1.442695
  %v1139 = vpow.pop %v1138
  %v1140 = vmul.f32 %v1137, %v1126
  %v1141 = vmul.f32 %v1139, %v1127
  %v1142 = vsel %vm483, %v1140, 0.0
  %1143 = vadd.xlane.f32.xlu0 %v1142
  %v1144 = vpop.xlane.xlu0 %1143
  %v1145 = vsel %vm483, %v1141, 0.0
  %1146 = vadd.xlane.f32.xlu0 %v1145
  %v1147 = vpop.xlane.xlu0 %1146
  %v1148 = vmax.f32 %v1144, 1e-20
  %v1149 = vmax.f32 %v1147, 1e-20
  %v1150 = vrcp.pop %v1148
  %v1151 = vrcp.pop %v1149
  %v1152 = vmul.f32 %v1140, %v1150
  %v1153 = vmul.f32 %v1141, %v1151
  %1154 = vrot.lane.b32.xlu0 %v379, 64
  %v1155 = vpop.permute.xlu0 %1154
  %1156 = vrot.lane.b32.xlu0 %v385, 64
  %v1157 = vpop.permute.xlu0 %1156
  %v1161 = vsel %vm483, %v1152, 0
  %v1164 = vsel %vm483, %v1153, 0
  %1166 = vmatprep.subr.mxu0 0.0
  %1167 = vmatpush1.msra.mxu0 %v1155
  %1168 = vmatprep.subr.mxu0 0.0
  %1169 = vmatpush1.msra.mxu0 %v1157
  %1170 = vmatprep.subr.mxu0 0.0
  %1171 = vmatpush1.msra.mxu0 0.0
  %1172 = vmatprep.subr.mxu0 0.0
  %1173 = vmatpush1.msra.mxu0 0.0
  %1174 = vmatprep.subr.mxu0 0.0
  %1175 = vmatpush1.msra.mxu0 0.0
  %1176 = vmatprep.subr.mxu0 0.0
  %1177 = vmatpush1.msra.mxu0 0.0
  %1178 = vmatprep.subr.mxu0 0.0
  %1179 = vmatpush1.msra.mxu0 0.0
  %1180 = vmatprep.subr.mxu0 0.0
  %1181 = vmatpush1.msra.mxu0 0.0
  %1182 = vmatprep.subr.mxu0 0.0
  %1183 = vmatpush1.msra.mxu0 0.0
  %1184 = vmatprep.subr.mxu0 0.0
  %1185 = vmatpush1.msra.mxu0 0.0
  %1186 = vmatprep.subr.mxu0 0.0
  %1187 = vmatpush1.msra.mxu0 0.0
  %1188 = vmatprep.subr.mxu0 0.0
  %1189 = vmatpush1.msra.mxu0 0.0
  %1190 = vmatprep.subr.mxu0 0.0
  %1191 = vmatpush1.msra.mxu0 0.0
  %1192 = vmatprep.subr.mxu0 0.0
  %1193 = vmatpush1.msra.mxu0 0.0
  %1194 = vmatprep.subr.mxu0 0.0
  %1195 = vmatpush1.msra.mxu0 0.0
  %1196 = vmatprep.subr.mxu0 0.0
  %1197 = vmatpush1.msra.mxu0 0.0
  %1198 = vmatprep.subr.mxu0 0.0
  %1199 = vmatpush1.msra.mxu0 0.0
  %1200 = vmatprep.subr.mxu0 0.0
  %1201 = vmatpush1.msra.mxu0 0.0
  %1202 = vmatprep.subr.mxu0 0.0
  %1203 = vmatpush1.msra.mxu0 0.0
  %1204 = vmatprep.subr.mxu0 0.0
  %1205 = vmatpush1.msra.mxu0 0.0
  %1206 = vmatprep.subr.mxu0 0.0
  %1207 = vmatpush1.msra.mxu0 0.0
  %1208 = vmatprep.subr.mxu0 0.0
  %1209 = vmatpush1.msra.mxu0 0.0
  %1210 = vmatprep.subr.mxu0 0.0
  %1211 = vmatpush1.msra.mxu0 0.0
  %1212 = vmatprep.subr.mxu0 0.0
  %1213 = vmatpush1.msra.mxu0 0.0
  %1214 = vmatprep.subr.mxu0 0.0
  %1215 = vmatpush1.msra.mxu0 0.0
  %1216 = vmatprep.subr.mxu0 0.0
  %1217 = vmatpush1.msra.mxu0 0.0
  %1218 = vmatprep.subr.mxu0 0.0
  %1219 = vmatpush1.msra.mxu0 0.0
  %1220 = vmatprep.subr.mxu0 0.0
  %1221 = vmatpush1.msra.mxu0 0.0
  %1222 = vmatprep.subr.mxu0 0.0
  %1223 = vmatpush1.msra.mxu0 0.0
  %1224 = vmatprep.subr.mxu0 0.0
  %1225 = vmatpush1.msra.mxu0 0.0
  %1226 = vmatprep.subr.mxu0 0.0
  %1227 = vmatpush1.msra.mxu0 0.0
  %1228 = vmatprep.subr.mxu0 0.0
  %1229 = vmatpush1.msra.mxu0 0.0
  %1230 = vmatprep.mubr.f32.mxu0 0.0
  %1231 = vmatmul.mubr.f32.gmra.mrb[0].mxu0 %v1161
  %v1232 = vpop.f32.mrb[0].mxu0
  %v1233 = vadd.f32 0.0, %v1232
  %v1234 = vpop.f32.mrb[0].mxu0
  %1235 = vmatprep.mubr.f32.mxu0 0.0
  %1236 = vmatmul.mubr.f32.gmra.mrb[0].mxu0 %v1164
  %v1237 = vpop.f32.mrb[0].mxu0
  %v1238 = vadd.f32 0.0, %v1237
  %v1239 = vpop.f32.mrb[0].mxu0
  %1240 = vdwg.mxu0
  %v1241 = vadd.f32 %v1019, %v1233
  %v1242 = vadd.f32 %v1020, %v1238
  %1245 = vrot.lane.b32.xlu0 %v1233, 48
  %v1246 = vpop.permute.xlu0 %1245
  %1247 = vrot.lane.b32.xlu0 %v1238, 48
  %v1248 = vpop.permute.xlu0 %1247
  %vm1251 = vcmask 916992
  %1252 = vst.msk [vmem:[#allocation2] sm:$0xff] %vm1251, %v1246
  %1253 = vst.msk [vmem:[#allocation2 + $0x8] sm:$0xff] %vm1251, %v1248
  %v1254 = vmul.f32 %v1241, 0.25
  %v1255 = vmul.f32 %v1242, 0.25
  %1256 = vst.msk [vmem:[#allocation2] sm:$0xff] %vm483, %v1254
  %1257 = vst.msk [vmem:[#allocation2 + $0x8] sm:$0xff] %vm483, %v1255
  %v1258 = vld [vmem:[#allocation2] sm:$0xff]
  %v1259 = vld [vmem:[#allocation2 + $0x8] sm:$0xff]
  %v1260 = vld [vmem:[%s3] sm:$0xff]
  %v1261 = vld [vmem:[%s3 + $0x8] sm:$0xff]
  %v1262 = vld [vmem:[%s3 + $0x10] sm:$0xff]
  %v1263 = vld [vmem:[%s3 + $0x18] sm:$0xff]
  %v1264 = vld [vmem:[%s3 + $0x20] sm:$0xff]
  %v1265 = vld [vmem:[%s3 + $0x28] sm:$0xff]
  %v1266 = vld [vmem:[%s3 + $0x30] sm:$0xff]
  %v1267 = vld [vmem:[%s3 + $0x38] sm:$0xff]
  %v1268 = vld [vmem:[%s3 + $0x40] sm:$0xff]
  %v1269 = vld [vmem:[%s3 + $0x48] sm:$0xff]
  %v1270 = vld [vmem:[%s3 + $0x50] sm:$0xff]
  %v1271 = vld [vmem:[%s3 + $0x58] sm:$0xff]
  %v1272 = vld [vmem:[%s3 + $0x60] sm:$0xff]
  %v1273 = vld [vmem:[%s3 + $0x68] sm:$0xff]
  %v1274 = vld [vmem:[%s3 + $0x70] sm:$0xff]
  %v1275 = vld [vmem:[%s3 + $0x78] sm:$0xff]
  %v1276 = vld [vmem:[%s4] sm:$0x1]
  %v1278 = vlaneseq
  %v1279 = vshrl.u32 %v1278, 7
  %v1280 = vsub.s32 0, %v1279
  %v1281 = vrot.slane %v1276, %v1280
  %1283 = vmatprep.subr.mxu0 0.0
  %1284 = vmatpush1.xpose.msra.mxu0 %v1260
  %1285 = vmatprep.subr.mxu0 0.0
  %1286 = vmatpush1.xpose.msra.mxu0 %v1261
  %1287 = vmatprep.subr.mxu0 0.0
  %1288 = vmatpush1.xpose.msra.mxu0 %v1262
  %1289 = vmatprep.subr.mxu0 0.0
  %1290 = vmatpush1.xpose.msra.mxu0 %v1263
  %1291 = vmatprep.subr.mxu0 0.0
  %1292 = vmatpush1.xpose.msra.mxu0 %v1264
  %1293 = vmatprep.subr.mxu0 0.0
  %1294 = vmatpush1.xpose.msra.mxu0 %v1265
  %1295 = vmatprep.subr.mxu0 0.0
  %1296 = vmatpush1.xpose.msra.mxu0 %v1266
  %1297 = vmatprep.subr.mxu0 0.0
  %1298 = vmatpush1.xpose.msra.mxu0 %v1267
  %1299 = vmatprep.subr.mxu0 0.0
  %1300 = vmatpush1.xpose.msra.mxu0 %v1268
  %1301 = vmatprep.subr.mxu0 0.0
  %1302 = vmatpush1.xpose.msra.mxu0 %v1269
  %1303 = vmatprep.subr.mxu0 0.0
  %1304 = vmatpush1.xpose.msra.mxu0 %v1270
  %1305 = vmatprep.subr.mxu0 0.0
  %1306 = vmatpush1.xpose.msra.mxu0 %v1271
  %1307 = vmatprep.subr.mxu0 0.0
  %1308 = vmatpush1.xpose.msra.mxu0 %v1272
  %1309 = vmatprep.subr.mxu0 0.0
  %1310 = vmatpush1.xpose.msra.mxu0 %v1273
  %1311 = vmatprep.subr.mxu0 0.0
  %1312 = vmatpush1.xpose.msra.mxu0 %v1274
  %1313 = vmatprep.subr.mxu0 0.0
  %1314 = vmatpush1.xpose.msra.mxu0 %v1275
  %1315 = vmatprep.subr.mxu0 0.0
  %1316 = vmatpush1.xpose.msra.mxu0 0.0
  %1317 = vmatprep.subr.mxu0 0.0
  %1318 = vmatpush1.xpose.msra.mxu0 0.0
  %1319 = vmatprep.subr.mxu0 0.0
  %1320 = vmatpush1.xpose.msra.mxu0 0.0
  %1321 = vmatprep.subr.mxu0 0.0
  %1322 = vmatpush1.xpose.msra.mxu0 0.0
  %1323 = vmatprep.subr.mxu0 0.0
  %1324 = vmatpush1.xpose.msra.mxu0 0.0
  %1325 = vmatprep.subr.mxu0 0.0
  %1326 = vmatpush1.xpose.msra.mxu0 0.0
  %1327 = vmatprep.subr.mxu0 0.0
  %1328 = vmatpush1.xpose.msra.mxu0 0.0
  %1329 = vmatprep.subr.mxu0 0.0
  %1330 = vmatpush1.xpose.msra.mxu0 0.0
  %1331 = vmatprep.subr.mxu0 0.0
  %1332 = vmatpush1.xpose.msra.mxu0 0.0
  %1333 = vmatprep.subr.mxu0 0.0
  %1334 = vmatpush1.xpose.msra.mxu0 0.0
  %1335 = vmatprep.subr.mxu0 0.0
  %1336 = vmatpush1.xpose.msra.mxu0 0.0
  %1337 = vmatprep.subr.mxu0 0.0
  %1338 = vmatpush1.xpose.msra.mxu0 0.0
  %1339 = vmatprep.subr.mxu0 0.0
  %1340 = vmatpush1.xpose.msra.mxu0 0.0
  %1341 = vmatprep.subr.mxu0 0.0
  %1342 = vmatpush1.xpose.msra.mxu0 0.0
  %1343 = vmatprep.subr.mxu0 0.0
  %1344 = vmatpush1.xpose.msra.mxu0 0.0
  %1345 = vmatprep.subr.mxu0 0.0
  %1346 = vmatpush1.xpose.msra.mxu0 0.0
  %1347 = vmatprep.mubr.f32.mxu0 0.0
  %1348 = vmatmul.mubr.f32.gmra.mrb[0].mxu0 %v1258
  %v1349 = vpop.f32.mrb[0].mxu0
  %v1350 = vadd.f32 %v1281, %v1349
  %v1351 = vpop.f32.mrb[0].mxu0
  %1352 = vmatprep.mubr.f32.mxu0 0.0
  %1353 = vmatmul.mubr.f32.gmra.mrb[0].mxu0 %v1259
  %v1354 = vpop.f32.mrb[0].mxu0
  %v1355 = vadd.f32 %v1281, %v1354
  %v1356 = vpop.f32.mrb[0].mxu0
  %1357 = vdwg.mxu0
  %v1358 = vld [vmem:[%s5] sm:$0x1]
  %v1360 = vlaneseq
  %v1361 = vshrl.u32 %v1360, 7
  %v1362 = vsub.s32 0, %v1361
  %v1363 = vrot.slane %v1358, %v1362
  %v1365 = vmul.f32 %v1350, %v1363
  %v1366 = vmul.f32 %v1355, %v1363
  %v1367 = vsub.f32 1.0, %v1358
  %v1369 = vlaneseq
  %v1370 = vshrl.u32 %v1369, 7
  %v1371 = vsub.s32 0, %v1370
  %v1372 = vrot.slane %v1367, %v1371
  %v1374 = vmul.f32 %v26, %v1372
  %v1375 = vmul.f32 %v27, %v1372
  %v1376 = vadd.f32 %v1365, %v1374
  %v1377 = vadd.f32 %v1366, %v1375
  %1378 = vst [vmem:[%s7] sm:$0xff] %v1376
  %1379 = vst [vmem:[%s7 + $0x8] sm:$0xff] %v1377
  // Predicated region
  $region30: #{disen_paper_encoder_forward.5} parent=0 // pred_check
    _
  $region31: #{disen_paper_encoder_forward.5} parent=0 // pred_check_branch
    %1381 = sbr.rel (0) target = $region33
  $region32: #{disen_paper_encoder_forward.5} parent=0 // pred_region
    _
  $region33: #{disen_paper_encoder_forward.5} parent=0 // pred_fallthru
    _
  // Predicated region
  $region34: #{disen_paper_encoder_forward.5} parent=0 // pred_check
    _
  $region35: #{disen_paper_encoder_forward.5} parent=0 // pred_check_branch
    %1383 = sbr.rel (0) target = $region37
  $region36: #{disen_paper_encoder_forward.5} parent=0 // pred_region
    _
  $region37: #{disen_paper_encoder_forward.5} parent=0 // pred_fallthru
    _

// kernel: disen_paper_encoder_forward.4
$region0: #{disen_paper_encoder_forward.4}
  #allocation0 [shape = 'u32[]', space=smem, size = 0x4, offset = 0x4, fixed_abs, tag = 'smem constant byte address 0x4 - core index']
  #allocation1 [shape = 'u32[144,128]{1,0:T(1,128)}', space=vmem, size = 0x12000, scoped, tag = 'internal scratch']
  %s0 = inlined_call_operand.vmem [shape: f32[192,32], index: 0, kind: input, shape index: {}]
  %s1 = inlined_call_operand.vmem [shape: f32[24,1], index: 1, kind: input, shape index: {}]
  %s2 = inlined_call_operand.vmem [shape: f32[96,32], index: 2, kind: input, shape index: {}]
  %s3 = inlined_call_operand.vmem [shape: f32[1,96], index: 3, kind: input, shape index: {}]
  %s4 = inlined_call_operand.vmem [shape: f32[96,32], index: 4, kind: input, shape index: {}]
  %s5 = inlined_call_operand.vmem [shape: f32[1,96], index: 5, kind: input, shape index: {}]
  %s6 = inlined_call_operand.vmem [shape: f32[24,256], index: 6, kind: output, shape index: {0}]
  %s7 = inlined_call_operand.vmem [shape: f32[24,32], index: 7, kind: output, shape index: {1}]
  %8 = xla_tuple %s6, %s7
  %s9 = sld [smem:[#allocation0]]
  $region42: #{disen_paper_encoder_forward.4} parent=0
    _
  %s11 = ssub.s32 1, %s9
  %s12 = scalar_select 0, %s11, %s9
  // Predicated region
  $region2: #{disen_paper_encoder_forward.4} parent=0 // pred_check
    _
  $region3: #{disen_paper_encoder_forward.4} parent=0 // pred_check_branch
    %14 = sbr.rel (0) target = $region5
  $region4: #{disen_paper_encoder_forward.4} parent=0 // pred_region
    _
  $region5: #{disen_paper_encoder_forward.4} parent=0 // pred_fallthru
    _
  // Predicated region
  $region6: #{disen_paper_encoder_forward.4} parent=0 // pred_check
    _
  $region7: #{disen_paper_encoder_forward.4} parent=0 // pred_check_branch
    %16 = sbr.rel (0) target = $region9
  $region8: #{disen_paper_encoder_forward.4} parent=0 // pred_region
    _
  $region9: #{disen_paper_encoder_forward.4} parent=0 // pred_fallthru
    _
  // Predicated region
  $region10: #{disen_paper_encoder_forward.4} parent=0 // pred_check
    _
  $region11: #{disen_paper_encoder_forward.4} parent=0 // pred_check_branch
    %18 = sbr.rel (0) target = $region13
  $region12: #{disen_paper_encoder_forward.4} parent=0 // pred_region
    _
  $region13: #{disen_paper_encoder_forward.4} parent=0 // pred_fallthru
    _
  // Predicated region
  $region14: #{disen_paper_encoder_forward.4} parent=0 // pred_check
    _
  $region15: #{disen_paper_encoder_forward.4} parent=0 // pred_check_branch
    %20 = sbr.rel (0) target = $region17
  $region16: #{disen_paper_encoder_forward.4} parent=0 // pred_region
    _
  $region17: #{disen_paper_encoder_forward.4} parent=0 // pred_fallthru
    _
  // Predicated region
  $region18: #{disen_paper_encoder_forward.4} parent=0 // pred_check
    _
  $region19: #{disen_paper_encoder_forward.4} parent=0 // pred_check_branch
    %22 = sbr.rel (0) target = $region21
  $region20: #{disen_paper_encoder_forward.4} parent=0 // pred_region
    _
  $region21: #{disen_paper_encoder_forward.4} parent=0 // pred_fallthru
    _
  // Predicated region
  $region22: #{disen_paper_encoder_forward.4} parent=0 // pred_check
    _
  $region23: #{disen_paper_encoder_forward.4} parent=0 // pred_check_branch
    %24 = sbr.rel (0) target = $region25
  $region24: #{disen_paper_encoder_forward.4} parent=0 // pred_region
    _
  $region25: #{disen_paper_encoder_forward.4} parent=0 // pred_fallthru
    _
  %v25 = vld [vmem:[%s0] sm:$0xff]
  %v26 = vld [vmem:[%s0 + $0x8] sm:$0xff]
  %v27 = vld [vmem:[%s0 + $0x10] sm:$0xff]
  %v28 = vld [vmem:[%s0 + $0x18] sm:$0xff]
  %v29 = vld [vmem:[%s0 + $0x20] sm:$0xff]
  %v30 = vld [vmem:[%s0 + $0x28] sm:$0xff]
  %v31 = vld [vmem:[%s0 + $0x30] sm:$0xff]
  %v32 = vld [vmem:[%s0 + $0x38] sm:$0xff]
  %v33 = vld [vmem:[%s0 + $0x40] sm:$0xff]
  %v34 = vld [vmem:[%s0 + $0x48] sm:$0xff]
  %v35 = vld [vmem:[%s0 + $0x50] sm:$0xff]
  %v36 = vld [vmem:[%s0 + $0x58] sm:$0xff]
  %v37 = vld [vmem:[%s0 + $0x60] sm:$0xff]
  %v38 = vld [vmem:[%s0 + $0x68] sm:$0xff]
  %v39 = vld [vmem:[%s0 + $0x70] sm:$0xff]
  %v40 = vld [vmem:[%s0 + $0x78] sm:$0xff]
  %v41 = vld [vmem:[%s0 + $0x80] sm:$0xff]
  %v42 = vld [vmem:[%s0 + $0x88] sm:$0xff]
  %v43 = vld [vmem:[%s0 + $0x90] sm:$0xff]
  %v44 = vld [vmem:[%s0 + $0x98] sm:$0xff]
  %v45 = vld [vmem:[%s0 + $0xa0] sm:$0xff]
  %v46 = vld [vmem:[%s0 + $0xa8] sm:$0xff]
  %v47 = vld [vmem:[%s0 + $0xb0] sm:$0xff]
  %v48 = vld [vmem:[%s0 + $0xb8] sm:$0xff]
  %v49 = vld [vmem:[%s2] sm:$0xff]
  %v50 = vld [vmem:[%s2 + $0x8] sm:$0xff]
  %v51 = vld [vmem:[%s2 + $0x10] sm:$0xff]
  %v52 = vld [vmem:[%s2 + $0x18] sm:$0xff]
  %v53 = vld [vmem:[%s2 + $0x20] sm:$0xff]
  %v54 = vld [vmem:[%s2 + $0x28] sm:$0xff]
  %v55 = vld [vmem:[%s2 + $0x30] sm:$0xff]
  %v56 = vld [vmem:[%s2 + $0x38] sm:$0xff]
  %v57 = vld [vmem:[%s2 + $0x40] sm:$0xff]
  %v58 = vld [vmem:[%s2 + $0x48] sm:$0xff]
  %v59 = vld [vmem:[%s2 + $0x50] sm:$0xff]
  %v60 = vld [vmem:[%s2 + $0x58] sm:$0xff]
  %v61 = vld [vmem:[%s3] sm:$0x1]
  %v63 = vlaneseq
  %v64 = vshrl.u32 %v63, 7
  %v65 = vsub.s32 0, %v64
  %v66 = vrot.slane %v61, %v65
  %vm68 = vcmask 261120
  %v70 = vsel %vm68, %v25, 0
  %v73 = vsel %vm68, %v26, 0
  %v76 = vsel %vm68, %v27, 0
  %v79 = vsel %vm68, %v28, 0
  %v82 = vsel %vm68, %v29, 0
  %v85 = vsel %vm68, %v30, 0
  %v88 = vsel %vm68, %v31, 0
  %v91 = vsel %vm68, %v32, 0
  %v94 = vsel %vm68, %v33, 0
  %v97 = vsel %vm68, %v34, 0
  %v100 = vsel %vm68, %v35, 0
  %v103 = vsel %vm68, %v36, 0
  %v106 = vsel %vm68, %v37, 0
  %v109 = vsel %vm68, %v38, 0
  %v112 = vsel %vm68, %v39, 0
  %v115 = vsel %vm68, %v40, 0
  %v118 = vsel %vm68, %v41, 0
  %v121 = vsel %vm68, %v42, 0
  %v124 = vsel %vm68, %v43, 0
  %v127 = vsel %vm68, %v44, 0
  %v130 = vsel %vm68, %v45, 0
  %v133 = vsel %vm68, %v46, 0
  %v136 = vsel %vm68, %v47, 0
  %v139 = vsel %vm68, %v48, 0
  %v142 = vsel %vm68, %v49, 0
  %v145 = vsel %vm68, %v50, 0
  %v148 = vsel %vm68, %v51, 0
  %v151 = vsel %vm68, %v52, 0
  %v154 = vsel %vm68, %v53, 0
  %v157 = vsel %vm68, %v54, 0
  %v160 = vsel %vm68, %v55, 0
  %v163 = vsel %vm68, %v56, 0
  %v166 = vsel %vm68, %v57, 0
  %v169 = vsel %vm68, %v58, 0
  %v172 = vsel %vm68, %v59, 0
  %v175 = vsel %vm68, %v60, 0
  %177 = vmatprep.subr.mxu0 0.0
  %178 = vmatpush1.xpose.msra.mxu0 %v142
  %179 = vmatprep.subr.mxu0 0.0
  %180 = vmatpush1.xpose.msra.mxu0 %v145
  %181 = vmatprep.subr.mxu0 0.0
  %182 = vmatpush1.xpose.msra.mxu0 %v148
  %183 = vmatprep.subr.mxu0 0.0
  %184 = vmatpush1.xpose.msra.mxu0 %v151
  %185 = vmatprep.subr.mxu0 0.0
  %186 = vmatpush1.xpose.msra.mxu0 %v154
  %187 = vmatprep.subr.mxu0 0.0
  %188 = vmatpush1.xpose.msra.mxu0 %v157
  %189 = vmatprep.subr.mxu0 0.0
  %190 = vmatpush1.xpose.msra.mxu0 %v160
  %191 = vmatprep.subr.mxu0 0.0
  %192 = vmatpush1.xpose.msra.mxu0 %v163
  %193 = vmatprep.subr.mxu0 0.0
  %194 = vmatpush1.xpose.msra.mxu0 %v166
  %195 = vmatprep.subr.mxu0 0.0
  %196 = vmatpush1.xpose.msra.mxu0 %v169
  %197 = vmatprep.subr.mxu0 0.0
  %198 = vmatpush1.xpose.msra.mxu0 %v172
  %199 = vmatprep.subr.mxu0 0.0
  %200 = vmatpush1.xpose.msra.mxu0 %v175
  %201 = vmatprep.subr.mxu0 0.0
  %202 = vmatpush1.xpose.msra.mxu0 0.0
  %203 = vmatprep.subr.mxu0 0.0
  %204 = vmatpush1.xpose.msra.mxu0 0.0
  %205 = vmatprep.subr.mxu0 0.0
  %206 = vmatpush1.xpose.msra.mxu0 0.0
  %207 = vmatprep.subr.mxu0 0.0
  %208 = vmatpush1.xpose.msra.mxu0 0.0
  %209 = vmatprep.subr.mxu0 0.0
  %210 = vmatpush1.xpose.msra.mxu0 0.0
  %211 = vmatprep.subr.mxu0 0.0
  %212 = vmatpush1.xpose.msra.mxu0 0.0
  %213 = vmatprep.subr.mxu0 0.0
  %214 = vmatpush1.xpose.msra.mxu0 0.0
  %215 = vmatprep.subr.mxu0 0.0
  %216 = vmatpush1.xpose.msra.mxu0 0.0
  %217 = vmatprep.subr.mxu0 0.0
  %218 = vmatpush1.xpose.msra.mxu0 0.0
  %219 = vmatprep.subr.mxu0 0.0
  %220 = vmatpush1.xpose.msra.mxu0 0.0
  %221 = vmatprep.subr.mxu0 0.0
  %222 = vmatpush1.xpose.msra.mxu0 0.0
  %223 = vmatprep.subr.mxu0 0.0
  %224 = vmatpush1.xpose.msra.mxu0 0.0
  %225 = vmatprep.subr.mxu0 0.0
  %226 = vmatpush1.xpose.msra.mxu0 0.0
  %227 = vmatprep.subr.mxu0 0.0
  %228 = vmatpush1.xpose.msra.mxu0 0.0
  %229 = vmatprep.subr.mxu0 0.0
  %230 = vmatpush1.xpose.msra.mxu0 0.0
  %231 = vmatprep.subr.mxu0 0.0
  %232 = vmatpush1.xpose.msra.mxu0 0.0
  %233 = vmatprep.subr.mxu0 0.0
  %234 = vmatpush1.xpose.msra.mxu0 0.0
  %235 = vmatprep.subr.mxu0 0.0
  %236 = vmatpush1.xpose.msra.mxu0 0.0
  %237 = vmatprep.subr.mxu0 0.0
  %238 = vmatpush1.xpose.msra.mxu0 0.0
  %239 = vmatprep.subr.mxu0 0.0
  %240 = vmatpush1.xpose.msra.mxu0 0.0
  %241 = vmatprep.mubr.f32.mxu0 0.0
  %242 = vmatmul.mubr.f32.gmra.mrb[0].mxu0 %v70
  %v243 = vpop.f32.mrb[0].mxu0
  %v244 = vadd.f32 %v66, %v243
  %v245 = vpop.f32.mrb[0].mxu0
  %246 = vmatprep.mubr.f32.mxu0 0.0
  %247 = vmatmul.mubr.f32.gmra.mrb[0].mxu0 %v73
  %v248 = vpop.f32.mrb[0].mxu0
  %v249 = vadd.f32 %v66, %v248
  %v250 = vpop.f32.mrb[0].mxu0
  %251 = vmatprep.mubr.f32.mxu0 0.0
  %252 = vmatmul.mubr.f32.gmra.mrb[0].mxu0 %v76
  %v253 = vpop.f32.mrb[0].mxu0
  %v254 = vadd.f32 %v66, %v253
  %v255 = vpop.f32.mrb[0].mxu0
  %256 = vmatprep.mubr.f32.mxu0 0.0
  %257 = vmatmul.mubr.f32.gmra.mrb[0].mxu0 %v79
  %v258 = vpop.f32.mrb[0].mxu0
  %v259 = vadd.f32 %v66, %v258
  %v260 = vpop.f32.mrb[0].mxu0
  %261 = vmatprep.mubr.f32.mxu0 0.0
  %262 = vmatmul.mubr.f32.gmra.mrb[0].mxu0 %v82
  %v263 = vpop.f32.mrb[0].mxu0
  %v264 = vadd.f32 %v66, %v263
  %v265 = vpop.f32.mrb[0].mxu0
  %266 = vmatprep.mubr.f32.mxu0 0.0
  %267 = vmatmul.mubr.f32.gmra.mrb[0].mxu0 %v85
  %v268 = vpop.f32.mrb[0].mxu0
  %v269 = vadd.f32 %v66, %v268
  %v270 = vpop.f32.mrb[0].mxu0
  %271 = vmatprep.mubr.f32.mxu0 0.0
  %272 = vmatmul.mubr.f32.gmra.mrb[0].mxu0 %v88
  %v273 = vpop.f32.mrb[0].mxu0
  %v274 = vadd.f32 %v66, %v273
  %v275 = vpop.f32.mrb[0].mxu0
  %276 = vmatprep.mubr.f32.mxu0 0.0
  %277 = vmatmul.mubr.f32.gmra.mrb[0].mxu0 %v91
  %v278 = vpop.f32.mrb[0].mxu0
  %v279 = vadd.f32 %v66, %v278
  %v280 = vpop.f32.mrb[0].mxu0
  %281 = vmatprep.mubr.f32.mxu0 0.0
  %282 = vmatmul.mubr.f32.gmra.mrb[0].mxu0 %v94
  %v283 = vpop.f32.mrb[0].mxu0
  %v284 = vadd.f32 %v66, %v283
  %v285 = vpop.f32.mrb[0].mxu0
  %286 = vmatprep.mubr.f32.mxu0 0.0
  %287 = vmatmul.mubr.f32.gmra.mrb[0].mxu0 %v97
  %v288 = vpop.f32.mrb[0].mxu0
  %v289 = vadd.f32 %v66, %v288
  %v290 = vpop.f32.mrb[0].mxu0
  %291 = vmatprep.mubr.f32.mxu0 0.0
  %292 = vmatmul.mubr.f32.gmra.mrb[0].mxu0 %v100
  %v293 = vpop.f32.mrb[0].mxu0
  %v294 = vadd.f32 %v66, %v293
  %v295 = vpop.f32.mrb[0].mxu0
  %296 = vmatprep.mubr.f32.mxu0 0.0
  %297 = vmatmul.mubr.f32.gmra.mrb[0].mxu0 %v103
  %v298 = vpop.f32.mrb[0].mxu0
  %v299 = vadd.f32 %v66, %v298
  %v300 = vpop.f32.mrb[0].mxu0
  %301 = vmatprep.mubr.f32.mxu0 0.0
  %302 = vmatmul.mubr.f32.gmra.mrb[0].mxu0 %v106
  %v303 = vpop.f32.mrb[0].mxu0
  %v304 = vadd.f32 %v66, %v303
  %v305 = vpop.f32.mrb[0].mxu0
  %306 = vmatprep.mubr.f32.mxu0 0.0
  %307 = vmatmul.mubr.f32.gmra.mrb[0].mxu0 %v109
  %v308 = vpop.f32.mrb[0].mxu0
  %v309 = vadd.f32 %v66, %v308
  %v310 = vpop.f32.mrb[0].mxu0
  %311 = vmatprep.mubr.f32.mxu0 0.0
  %312 = vmatmul.mubr.f32.gmra.mrb[0].mxu0 %v112
  %v313 = vpop.f32.mrb[0].mxu0
  %v314 = vadd.f32 %v66, %v313
  %v315 = vpop.f32.mrb[0].mxu0
  %316 = vmatprep.mubr.f32.mxu0 0.0
  %317 = vmatmul.mubr.f32.gmra.mrb[0].mxu0 %v115
  %v318 = vpop.f32.mrb[0].mxu0
  %v319 = vadd.f32 %v66, %v318
  %v320 = vpop.f32.mrb[0].mxu0
  %321 = vmatprep.mubr.f32.mxu0 0.0
  %322 = vmatmul.mubr.f32.gmra.mrb[0].mxu0 %v118
  %v323 = vpop.f32.mrb[0].mxu0
  %v324 = vadd.f32 %v66, %v323
  %v325 = vpop.f32.mrb[0].mxu0
  %326 = vmatprep.mubr.f32.mxu0 0.0
  %327 = vmatmul.mubr.f32.gmra.mrb[0].mxu0 %v121
  %v328 = vpop.f32.mrb[0].mxu0
  %v329 = vadd.f32 %v66, %v328
  %v330 = vpop.f32.mrb[0].mxu0
  %331 = vmatprep.mubr.f32.mxu0 0.0
  %332 = vmatmul.mubr.f32.gmra.mrb[0].mxu0 %v124
  %v333 = vpop.f32.mrb[0].mxu0
  %v334 = vadd.f32 %v66, %v333
  %v335 = vpop.f32.mrb[0].mxu0
  %336 = vmatprep.mubr.f32.mxu0 0.0
  %337 = vmatmul.mubr.f32.gmra.mrb[0].mxu0 %v127
  %v338 = vpop.f32.mrb[0].mxu0
  %v339 = vadd.f32 %v66, %v338
  %v340 = vpop.f32.mrb[0].mxu0
  %341 = vmatprep.mubr.f32.mxu0 0.0
  %342 = vmatmul.mubr.f32.gmra.mrb[0].mxu0 %v130
  %v343 = vpop.f32.mrb[0].mxu0
  %v344 = vadd.f32 %v66, %v343
  %v345 = vpop.f32.mrb[0].mxu0
  %346 = vmatprep.mubr.f32.mxu0 0.0
  %347 = vmatmul.mubr.f32.gmra.mrb[0].mxu0 %v133
  %v348 = vpop.f32.mrb[0].mxu0
  %v349 = vadd.f32 %v66, %v348
  %v350 = vpop.f32.mrb[0].mxu0
  %351 = vmatprep.mubr.f32.mxu0 0.0
  %352 = vmatmul.mubr.f32.gmra.mrb[0].mxu0 %v136
  %v353 = vpop.f32.mrb[0].mxu0
  %v354 = vadd.f32 %v66, %v353
  %v355 = vpop.f32.mrb[0].mxu0
  %356 = vmatprep.mubr.f32.mxu0 0.0
  %357 = vmatmul.mubr.f32.gmra.mrb[0].mxu0 %v139
  %v358 = vpop.f32.mrb[0].mxu0
  %v359 = vadd.f32 %v66, %v358
  %v360 = vpop.f32.mrb[0].mxu0
  %361 = vdwg.mxu0
  %v362 = vld [vmem:[%s4] sm:$0xff]
  %v363 = vld [vmem:[%s4 + $0x8] sm:$0xff]
  %v364 = vld [vmem:[%s4 + $0x10] sm:$0xff]
  %v365 = vld [vmem:[%s4 + $0x18] sm:$0xff]
  %v366 = vld [vmem:[%s4 + $0x20] sm:$0xff]
  %v367 = vld [vmem:[%s4 + $0x28] sm:$0xff]
  %v368 = vld [vmem:[%s4 + $0x30] sm:$0xff]
  %v369 = vld [vmem:[%s4 + $0x38] sm:$0xff]
  %v370 = vld [vmem:[%s4 + $0x40] sm:$0xff]
  %v371 = vld [vmem:[%s4 + $0x48] sm:$0xff]
  %v372 = vld [vmem:[%s4 + $0x50] sm:$0xff]
  %v373 = vld [vmem:[%s4 + $0x58] sm:$0xff]
  %v374 = vld [vmem:[%s5] sm:$0x1]
  %v375 = vld [vmem:[%s1] sm:$0xff]
  %v376 = vld [vmem:[%s1 + $0x8] sm:$0xff]
  %v377 = vld [vmem:[%s1 + $0x10] sm:$0xff]
  %v379 = vlaneseq
  %v380 = vshrl.u32 %v379, 7
  %v381 = vsub.s32 0, %v380
  %v382 = vrot.slane %v374, %v381
  %v385 = vsel %vm68, 0.0, 0
  %v388 = vsel %vm68, %v362, 0
  %v391 = vsel %vm68, %v363, 0
  %v394 = vsel %vm68, %v364, 0
  %v397 = vsel %vm68, %v365, 0
  %v400 = vsel %vm68, %v366, 0
  %v403 = vsel %vm68, %v367, 0
  %v406 = vsel %vm68, %v368, 0
  %v409 = vsel %vm68, %v369, 0
  %v412 = vsel %vm68, %v370, 0
  %v415 = vsel %vm68, %v371, 0
  %v418 = vsel %vm68, %v372, 0
  %v421 = vsel %vm68, %v373, 0
  %423 = vmatprep.subr.mxu0 0.0
  %424 = vmatpush1.xpose.msra.mxu0 %v388
  %425 = vmatprep.subr.mxu0 0.0
  %426 = vmatpush1.xpose.msra.mxu0 %v391
  %427 = vmatprep.subr.mxu0 0.0
  %428 = vmatpush1.xpose.msra.mxu0 %v394
  %429 = vmatprep.subr.mxu0 0.0
  %430 = vmatpush1.xpose.msra.mxu0 %v397
  %431 = vmatprep.subr.mxu0 0.0
  %432 = vmatpush1.xpose.msra.mxu0 %v400
  %433 = vmatprep.subr.mxu0 0.0
  %434 = vmatpush1.xpose.msra.mxu0 %v403
  %435 = vmatprep.subr.mxu0 0.0
  %436 = vmatpush1.xpose.msra.mxu0 %v406
  %437 = vmatprep.subr.mxu0 0.0
  %438 = vmatpush1.xpose.msra.mxu0 %v409
  %439 = vmatprep.subr.mxu0 0.0
  %440 = vmatpush1.xpose.msra.mxu0 %v412
  %441 = vmatprep.subr.mxu0 0.0
  %442 = vmatpush1.xpose.msra.mxu0 %v415
  %443 = vmatprep.subr.mxu0 0.0
  %444 = vmatpush1.xpose.msra.mxu0 %v418
  %445 = vmatprep.subr.mxu0 0.0
  %446 = vmatpush1.xpose.msra.mxu0 %v421
  %447 = vmatprep.subr.mxu0 0.0
  %448 = vmatpush1.xpose.msra.mxu0 0.0
  %449 = vmatprep.subr.mxu0 0.0
  %450 = vmatpush1.xpose.msra.mxu0 0.0
  %451 = vmatprep.subr.mxu0 0.0
  %452 = vmatpush1.xpose.msra.mxu0 0.0
  %453 = vmatprep.subr.mxu0 0.0
  %454 = vmatpush1.xpose.msra.mxu0 0.0
  %455 = vmatprep.subr.mxu0 0.0
  %456 = vmatpush1.xpose.msra.mxu0 0.0
  %457 = vmatprep.subr.mxu0 0.0
  %458 = vmatpush1.xpose.msra.mxu0 0.0
  %459 = vmatprep.subr.mxu0 0.0
  %460 = vmatpush1.xpose.msra.mxu0 0.0
  %461 = vmatprep.subr.mxu0 0.0
  %462 = vmatpush1.xpose.msra.mxu0 0.0
  %463 = vmatprep.subr.mxu0 0.0
  %464 = vmatpush1.xpose.msra.mxu0 0.0
  %465 = vmatprep.subr.mxu0 0.0
  %466 = vmatpush1.xpose.msra.mxu0 0.0
  %467 = vmatprep.subr.mxu0 0.0
  %468 = vmatpush1.xpose.msra.mxu0 0.0
  %469 = vmatprep.subr.mxu0 0.0
  %470 = vmatpush1.xpose.msra.mxu0 0.0
  %471 = vmatprep.subr.mxu0 0.0
  %472 = vmatpush1.xpose.msra.mxu0 0.0
  %473 = vmatprep.subr.mxu0 0.0
  %474 = vmatpush1.xpose.msra.mxu0 0.0
  %475 = vmatprep.subr.mxu0 0.0
  %476 = vmatpush1.xpose.msra.mxu0 0.0
  %477 = vmatprep.subr.mxu0 0.0
  %478 = vmatpush1.xpose.msra.mxu0 0.0
  %479 = vmatprep.subr.mxu0 0.0
  %480 = vmatpush1.xpose.msra.mxu0 0.0
  %481 = vmatprep.subr.mxu0 0.0
  %482 = vmatpush1.xpose.msra.mxu0 0.0
  %483 = vmatprep.subr.mxu0 0.0
  %484 = vmatpush1.xpose.msra.mxu0 0.0
  %485 = vmatprep.subr.mxu0 0.0
  %486 = vmatpush1.xpose.msra.mxu0 0.0
  %487 = vmatprep.mubr.f32.mxu0 0.0
  %488 = vmatmul.mubr.f32.gmra.mrb[0].mxu0 %v385
  %v489 = vpop.f32.mrb[0].mxu0
  %v490 = vadd.f32 %v382, %v489
  %v491 = vpop.f32.mrb[0].mxu0
  %492 = vmatprep.mubr.f32.mxu0 0.0
  %493 = vmatmul.mubr.f32.gmra.mrb[0].mxu0 %v385
  %v494 = vpop.f32.mrb[0].mxu0
  %v495 = vadd.f32 %v382, %v494
  %v496 = vpop.f32.mrb[0].mxu0
  %497 = vmatprep.mubr.f32.mxu0 0.0
  %498 = vmatmul.mubr.f32.gmra.mrb[0].mxu0 %v385
  %v499 = vpop.f32.mrb[0].mxu0
  %v500 = vadd.f32 %v382, %v499
  %v501 = vpop.f32.mrb[0].mxu0
  %502 = vdwg.mxu0
  %v503 = vadd.f32 %v244, %v490
  %v504 = vadd.f32 %v249, %v495
  %v505 = vadd.f32 %v254, %v500
  %v506 = vxor.u32 %v503, 2147483648
  %v507 = vxor.u32 %v504, 2147483648
  %v508 = vxor.u32 %v505, 2147483648
  %v509 = vmul.f32 %v506, 1.442695
  %v510 = vpow.pop %v509
  %v511 = vmul.f32 %v507, 1.442695
  %v512 = vpow.pop %v511
  %v513 = vmul.f32 %v508, 1.442695
  %v514 = vpow.pop %v513
  %v515 = vadd.f32 %v510, 1.0
  %v516 = vadd.f32 %v512, 1.0
  %v517 = vadd.f32 %v514, 1.0
  %v518 = vrcp.pop %v515
  %v519 = vmul.f32 1.0, %v518
  %v520 = vrcp.pop %v516
  %v521 = vmul.f32 1.0, %v520
  %v522 = vrcp.pop %v517
  %v523 = vmul.f32 1.0, %v522
  %527 = vrot.lane.b32.xlu0 %v490, 64
  %v528 = vpop.permute.xlu0 %527
  %529 = vrot.lane.b32.xlu0 %v495, 64
  %v530 = vpop.permute.xlu0 %529
  %531 = vrot.lane.b32.xlu0 %v500, 64
  %v532 = vpop.permute.xlu0 %531
  %v536 = vmul.f32 %v519, %v528
  %v537 = vmul.f32 %v521, %v530
  %v538 = vmul.f32 %v523, %v532
  %542 = vrot.lane.b32.xlu0 %v536, 64
  %v543 = vpop.permute.xlu0 %542
  %544 = vrot.lane.b32.xlu0 %v537, 64
  %v545 = vpop.permute.xlu0 %544
  %546 = vrot.lane.b32.xlu0 %v538, 64
  %v547 = vpop.permute.xlu0 %546
  %v551 = vadd.f32 %v244, %v543
  %v552 = vadd.f32 %v249, %v545
  %v553 = vadd.f32 %v254, %v547
  %v554 = vtanh.pop %v551
  %v555 = vtanh.pop %v552
  %v556 = vtanh.pop %v553
  %v557 = vsub.f32 1.0, %v519
  %v558 = vsub.f32 1.0, %v521
  %v559 = vsub.f32 1.0, %v523
  %563 = vrot.lane.b32.xlu0 %v554, 96
  %v564 = vpop.permute.xlu0 %563
  %565 = vrot.lane.b32.xlu0 %v555, 96
  %v566 = vpop.permute.xlu0 %565
  %567 = vrot.lane.b32.xlu0 %v556, 96
  %v568 = vpop.permute.xlu0 %567
  %v572 = vmul.f32 %v557, %v564
  %v573 = vmul.f32 %v558, %v566
  %v574 = vmul.f32 %v559, %v568
  %v575 = vmul.f32 %v519, 0.0
  %v576 = vmul.f32 %v521, 0.0
  %v577 = vmul.f32 %v523, 0.0
  %v578 = vadd.f32 %v572, %v575
  %v579 = vadd.f32 %v573, %v576
  %v580 = vadd.f32 %v574, %v577
  %vm581 = vcmp.gt.f32.partialorder %v375, 0.0
  %vm582 = vcmp.gt.f32.partialorder %v376, 0.0
  %vm583 = vcmp.gt.f32.partialorder %v377, 0.0
  %v584 = vsel %vm581, 1, 0
  %v585 = vsel %vm582, 1, 0
  %v586 = vsel %vm583, 1, 0
  %v587 = vcvt.s32.f32 %v584
  %v588 = vcvt.s32.f32 %v585
  %v589 = vcvt.s32.f32 %v586
  %591 = vset.pattern.permute.xlu0 0
  %592 = vperm.xlu0 %591, %v587
  %v593 = vpop.permute.xlu0 %592
  %596 = vset.pattern.permute.xlu0 0
  %597 = vperm.xlu0 %596, %v588
  %v598 = vpop.permute.xlu0 %597
  %601 = vset.pattern.permute.xlu0 0
  %602 = vperm.xlu0 %601, %v589
  %v603 = vpop.permute.xlu0 %602
  %v605 = vmul.f32 %v593, %v578
  %v606 = vmul.f32 %v598, %v579
  %v607 = vmul.f32 %v603, %v580
  %v608 = vsub.f32 1.0, %v587
  %v609 = vsub.f32 1.0, %v588
  %v610 = vsub.f32 1.0, %v589
  %612 = vset.pattern.permute.xlu0 0
  %613 = vperm.xlu0 %612, %v608
  %v614 = vpop.permute.xlu0 %613
  %617 = vset.pattern.permute.xlu0 0
  %618 = vperm.xlu0 %617, %v609
  %v619 = vpop.permute.xlu0 %618
  %622 = vset.pattern.permute.xlu0 0
  %623 = vperm.xlu0 %622, %v610
  %v624 = vpop.permute.xlu0 %623
  %v626 = vmul.f32 %v614, 0.0
  %v627 = vmul.f32 %v619, 0.0
  %v628 = vmul.f32 %v624, 0.0
  %v629 = vadd.f32 %v605, %v626
  %v630 = vadd.f32 %v606, %v627
  %v631 = vadd.f32 %v607, %v628
  %635 = vrot.lane.b32.xlu0 %v605, 96
  %v636 = vpop.permute.xlu0 %635
  %637 = vrot.lane.b32.xlu0 %v606, 96
  %v638 = vpop.permute.xlu0 %637
  %639 = vrot.lane.b32.xlu0 %v607, 96
  %v640 = vpop.permute.xlu0 %639
  %644 = vst.msk [vmem:[%s6] sm:$0xff] %vm68, %v636
  %645 = vst.msk [vmem:[%s6 + $0x10] sm:$0xff] %vm68, %v638
  %646 = vst.msk [vmem:[%s6 + $0x20] sm:$0xff] %vm68, %v640
  %650 = vrot.lane.b32.xlu0 %v629, 96
  %v651 = vpop.permute.xlu0 %650
  %652 = vrot.lane.b32.xlu0 %v630, 96
  %v653 = vpop.permute.xlu0 %652
  %654 = vrot.lane.b32.xlu0 %v631, 96
  %v655 = vpop.permute.xlu0 %654
  %v656 = vsel %vm68, %v651, 0
  %v658 = vsel %vm68, %v653, 0
  %v660 = vsel %vm68, %v655, 0
  %662 = vmatprep.subr.mxu0 0.0
  %663 = vmatpush1.xpose.msra.mxu0 %v388
  %664 = vmatprep.subr.mxu0 0.0
  %665 = vmatpush1.xpose.msra.mxu0 %v391
  %666 = vmatprep.subr.mxu0 0.0
  %667 = vmatpush1.xpose.msra.mxu0 %v394
  %668 = vmatprep.subr.mxu0 0.0
  %669 = vmatpush1.xpose.msra.mxu0 %v397
  %670 = vmatprep.subr.mxu0 0.0
  %671 = vmatpush1.xpose.msra.mxu0 %v400
  %672 = vmatprep.subr.mxu0 0.0
  %673 = vmatpush1.xpose.msra.mxu0 %v403
  %674 = vmatprep.subr.mxu0 0.0
  %675 = vmatpush1.xpose.msra.mxu0 %v406
  %676 = vmatprep.subr.mxu0 0.0
  %677 = vmatpush1.xpose.msra.mxu0 %v409
  %678 = vmatprep.subr.mxu0 0.0
  %679 = vmatpush1.xpose.msra.mxu0 %v412
  %680 = vmatprep.subr.mxu0 0.0
  %681 = vmatpush1.xpose.msra.mxu0 %v415
  %682 = vmatprep.subr.mxu0 0.0
  %683 = vmatpush1.xpose.msra.mxu0 %v418
  %684 = vmatprep.subr.mxu0 0.0
  %685 = vmatpush1.xpose.msra.mxu0 %v421
  %686 = vmatprep.subr.mxu0 0.0
  %687 = vmatpush1.xpose.msra.mxu0 0.0
  %688 = vmatprep.subr.mxu0 0.0
  %689 = vmatpush1.xpose.msra.mxu0 0.0
  %690 = vmatprep.subr.mxu0 0.0
  %691 = vmatpush1.xpose.msra.mxu0 0.0
  %692 = vmatprep.subr.mxu0 0.0
  %693 = vmatpush1.xpose.msra.mxu0 0.0
  %694 = vmatprep.subr.mxu0 0.0
  %695 = vmatpush1.xpose.msra.mxu0 0.0
  %696 = vmatprep.subr.mxu0 0.0
  %697 = vmatpush1.xpose.msra.mxu0 0.0
  %698 = vmatprep.subr.mxu0 0.0
  %699 = vmatpush1.xpose.msra.mxu0 0.0
  %700 = vmatprep.subr.mxu0 0.0
  %701 = vmatpush1.xpose.msra.mxu0 0.0
  %702 = vmatprep.subr.mxu0 0.0
  %703 = vmatpush1.xpose.msra.mxu0 0.0
  %704 = vmatprep.subr.mxu0 0.0
  %705 = vmatpush1.xpose.msra.mxu0 0.0
  %706 = vmatprep.subr.mxu0 0.0
  %707 = vmatpush1.xpose.msra.mxu0 0.0
  %708 = vmatprep.subr.mxu0 0.0
  %709 = vmatpush1.xpose.msra.mxu0 0.0
  %710 = vmatprep.subr.mxu0 0.0
  %711 = vmatpush1.xpose.msra.mxu0 0.0
  %712 = vmatprep.subr.mxu0 0.0
  %713 = vmatpush1.xpose.msra.mxu0 0.0
  %714 = vmatprep.subr.mxu0 0.0
  %715 = vmatpush1.xpose.msra.mxu0 0.0
  %716 = vmatprep.subr.mxu0 0.0
  %717 = vmatpush1.xpose.msra.mxu0 0.0
  %718 = vmatprep.subr.mxu0 0.0
  %719 = vmatpush1.xpose.msra.mxu0 0.0
  %720 = vmatprep.subr.mxu0 0.0
  %721 = vmatpush1.xpose.msra.mxu0 0.0
  %722 = vmatprep.subr.mxu0 0.0
  %723 = vmatpush1.xpose.msra.mxu0 0.0
  %724 = vmatprep.subr.mxu0 0.0
  %725 = vmatpush1.xpose.msra.mxu0 0.0
  %726 = vmatprep.mubr.f32.mxu0 0.0
  %727 = vmatmul.mubr.f32.gmra.mrb[0].mxu0 %v656
  %v728 = vpop.f32.mrb[0].mxu0
  %v729 = vadd.f32 %v382, %v728
  %v730 = vpop.f32.mrb[0].mxu0
  %731 = vmatprep.mubr.f32.mxu0 0.0
  %732 = vmatmul.mubr.f32.gmra.mrb[0].mxu0 %v658
  %v733 = vpop.f32.mrb[0].mxu0
  %v734 = vadd.f32 %v382, %v733
  %v735 = vpop.f32.mrb[0].mxu0
  %736 = vmatprep.mubr.f32.mxu0 0.0
  %737 = vmatmul.mubr.f32.gmra.mrb[0].mxu0 %v660
  %v738 = vpop.f32.mrb[0].mxu0
  %v739 = vadd.f32 %v382, %v738
  %v740 = vpop.f32.mrb[0].mxu0
  %741 = vdwg.mxu0
  %v742 = vadd.f32 %v259, %v729
  %v743 = vadd.f32 %v264, %v734
  %v744 = vadd.f32 %v269, %v739
  %v745 = vxor.u32 %v742, 2147483648
  %v746 = vxor.u32 %v743, 2147483648
  %v747 = vxor.u32 %v744, 2147483648
  %v748 = vmul.f32 %v745, 1.442695
  %v749 = vpow.pop %v748
  %v750 = vmul.f32 %v746, 1.442695
  %v751 = vpow.pop %v750
  %v752 = vmul.f32 %v747, 1.442695
  %v753 = vpow.pop %v752
  %v754 = vadd.f32 %v749, 1.0
  %v755 = vadd.f32 %v751, 1.0
  %v756 = vadd.f32 %v753, 1.0
  %v757 = vrcp.pop %v754
  %v758 = vmul.f32 1.0, %v757
  %v759 = vrcp.pop %v755
  %v760 = vmul.f32 1.0, %v759
  %v761 = vrcp.pop %v756
  %v762 = vmul.f32 1.0, %v761
  %766 = vrot.lane.b32.xlu0 %v729, 64
  %v767 = vpop.permute.xlu0 %766
  %768 = vrot.lane.b32.xlu0 %v734, 64
  %v769 = vpop.permute.xlu0 %768
  %770 = vrot.lane.b32.xlu0 %v739, 64
  %v771 = vpop.permute.xlu0 %770
  %v775 = vmul.f32 %v758, %v767
  %v776 = vmul.f32 %v760, %v769
  %v777 = vmul.f32 %v762, %v771
  %781 = vrot.lane.b32.xlu0 %v775, 64
  %v782 = vpop.permute.xlu0 %781
  %783 = vrot.lane.b32.xlu0 %v776, 64
  %v784 = vpop.permute.xlu0 %783
  %785 = vrot.lane.b32.xlu0 %v777, 64
  %v786 = vpop.permute.xlu0 %785
  %v790 = vadd.f32 %v259, %v782
  %v791 = vadd.f32 %v264, %v784
  %v792 = vadd.f32 %v269, %v786
  %v793 = vtanh.pop %v790
  %v794 = vtanh.pop %v791
  %v795 = vtanh.pop %v792
  %v796 = vsub.f32 1.0, %v758
  %v797 = vsub.f32 1.0, %v760
  %v798 = vsub.f32 1.0, %v762
  %802 = vrot.lane.b32.xlu0 %v793, 96
  %v803 = vpop.permute.xlu0 %802
  %804 = vrot.lane.b32.xlu0 %v794, 96
  %v805 = vpop.permute.xlu0 %804
  %806 = vrot.lane.b32.xlu0 %v795, 96
  %v807 = vpop.permute.xlu0 %806
  %v811 = vmul.f32 %v796, %v803
  %v812 = vmul.f32 %v797, %v805
  %v813 = vmul.f32 %v798, %v807
  %v814 = vmul.f32 %v758, %v629
  %v815 = vmul.f32 %v760, %v630
  %v816 = vmul.f32 %v762, %v631
  %v817 = vadd.f32 %v811, %v814
  %v818 = vadd.f32 %v812, %v815
  %v819 = vadd.f32 %v813, %v816
  %vm820 = vcmp.gt.f32.partialorder %v375, 1.0
  %vm821 = vcmp.gt.f32.partialorder %v376, 1.0
  %vm822 = vcmp.gt.f32.partialorder %v377, 1.0
  %v823 = vsel %vm820, 1, 0
  %v824 = vsel %vm821, 1, 0
  %v825 = vsel %vm822, 1, 0
  %v826 = vcvt.s32.f32 %v823
  %v827 = vcvt.s32.f32 %v824
  %v828 = vcvt.s32.f32 %v825
  %830 = vset.pattern.permute.xlu0 0
  %831 = vperm.xlu0 %830, %v826
  %v832 = vpop.permute.xlu0 %831
  %835 = vset.pattern.permute.xlu0 0
  %836 = vperm.xlu0 %835, %v827
  %v837 = vpop.permute.xlu0 %836
  %840 = vset.pattern.permute.xlu0 0
  %841 = vperm.xlu0 %840, %v828
  %v842 = vpop.permute.xlu0 %841
  %v844 = vmul.f32 %v832, %v817
  %v845 = vmul.f32 %v837, %v818
  %v846 = vmul.f32 %v842, %v819
  %v847 = vsub.f32 1.0, %v826
  %v848 = vsub.f32 1.0, %v827
  %v849 = vsub.f32 1.0, %v828
  %851 = vset.pattern.permute.xlu0 0
  %852 = vperm.xlu0 %851, %v847
  %v853 = vpop.permute.xlu0 %852
  %856 = vset.pattern.permute.xlu0 0
  %857 = vperm.xlu0 %856, %v848
  %v858 = vpop.permute.xlu0 %857
  %861 = vset.pattern.permute.xlu0 0
  %862 = vperm.xlu0 %861, %v849
  %v863 = vpop.permute.xlu0 %862
  %v865 = vmul.f32 %v853, %v629
  %v866 = vmul.f32 %v858, %v630
  %v867 = vmul.f32 %v863, %v631
  %v868 = vadd.f32 %v844, %v865
  %v869 = vadd.f32 %v845, %v866
  %v870 = vadd.f32 %v846, %v867
  %vm871 = vcmask 523520
  %872 = vst.msk [vmem:[%s6] sm:$0xff] %vm871, %v844
  %873 = vst.msk [vmem:[%s6 + $0x10] sm:$0xff] %vm871, %v845
  %874 = vst.msk [vmem:[%s6 + $0x20] sm:$0xff] %vm871, %v846
  %878 = vrot.lane.b32.xlu0 %v868, 96
  %v879 = vpop.permute.xlu0 %878
  %880 = vrot.lane.b32.xlu0 %v869, 96
  %v881 = vpop.permute.xlu0 %880
  %882 = vrot.lane.b32.xlu0 %v870, 96
  %v883 = vpop.permute.xlu0 %882
  %v884 = vsel %vm68, %v879, 0
  %v886 = vsel %vm68, %v881, 0
  %v888 = vsel %vm68, %v883, 0
  %890 = vmatprep.subr.mxu0 0.0
  %891 = vmatpush1.xpose.msra.mxu0 %v388
  %892 = vmatprep.subr.mxu0 0.0
  %893 = vmatpush1.xpose.msra.mxu0 %v391
  %894 = vmatprep.subr.mxu0 0.0
  %895 = vmatpush1.xpose.msra.mxu0 %v394
  %896 = vmatprep.subr.mxu0 0.0
  %897 = vmatpush1.xpose.msra.mxu0 %v397
  %898 = vmatprep.subr.mxu0 0.0
  %899 = vmatpush1.xpose.msra.mxu0 %v400
  %900 = vmatprep.subr.mxu0 0.0
  %901 = vmatpush1.xpose.msra.mxu0 %v403
  %902 = vmatprep.subr.mxu0 0.0
  %903 = vmatpush1.xpose.msra.mxu0 %v406
  %904 = vmatprep.subr.mxu0 0.0
  %905 = vmatpush1.xpose.msra.mxu0 %v409
  %906 = vmatprep.subr.mxu0 0.0
  %907 = vmatpush1.xpose.msra.mxu0 %v412
  %908 = vmatprep.subr.mxu0 0.0
  %909 = vmatpush1.xpose.msra.mxu0 %v415
  %910 = vmatprep.subr.mxu0 0.0
  %911 = vmatpush1.xpose.msra.mxu0 %v418
  %912 = vmatprep.subr.mxu0 0.0
  %913 = vmatpush1.xpose.msra.mxu0 %v421
  %914 = vmatprep.subr.mxu0 0.0
  %915 = vmatpush1.xpose.msra.mxu0 0.0
  %916 = vmatprep.subr.mxu0 0.0
  %917 = vmatpush1.xpose.msra.mxu0 0.0
  %918 = vmatprep.subr.mxu0 0.0
  %919 = vmatpush1.xpose.msra.mxu0 0.0
  %920 = vmatprep.subr.mxu0 0.0
  %921 = vmatpush1.xpose.msra.mxu0 0.0
  %922 = vmatprep.subr.mxu0 0.0
  %923 = vmatpush1.xpose.msra.mxu0 0.0
  %924 = vmatprep.subr.mxu0 0.0
  %925 = vmatpush1.xpose.msra.mxu0 0.0
  %926 = vmatprep.subr.mxu0 0.0
  %927 = vmatpush1.xpose.msra.mxu0 0.0
  %928 = vmatprep.subr.mxu0 0.0
  %929 = vmatpush1.xpose.msra.mxu0 0.0
  %930 = vmatprep.subr.mxu0 0.0
  %931 = vmatpush1.xpose.msra.mxu0 0.0
  %932 = vmatprep.subr.mxu0 0.0
  %933 = vmatpush1.xpose.msra.mxu0 0.0
  %934 = vmatprep.subr.mxu0 0.0
  %935 = vmatpush1.xpose.msra.mxu0 0.0
  %936 = vmatprep.subr.mxu0 0.0
  %937 = vmatpush1.xpose.msra.mxu0 0.0
  %938 = vmatprep.subr.mxu0 0.0
  %939 = vmatpush1.xpose.msra.mxu0 0.0
  %940 = vmatprep.subr.mxu0 0.0
  %941 = vmatpush1.xpose.msra.mxu0 0.0
  %942 = vmatprep.subr.mxu0 0.0
  %943 = vmatpush1.xpose.msra.mxu0 0.0
  %944 = vmatprep.subr.mxu0 0.0
  %945 = vmatpush1.xpose.msra.mxu0 0.0
  %946 = vmatprep.subr.mxu0 0.0
  %947 = vmatpush1.xpose.msra.mxu0 0.0
  %948 = vmatprep.subr.mxu0 0.0
  %949 = vmatpush1.xpose.msra.mxu0 0.0
  %950 = vmatprep.subr.mxu0 0.0
  %951 = vmatpush1.xpose.msra.mxu0 0.0
  %952 = vmatprep.subr.mxu0 0.0
  %953 = vmatpush1.xpose.msra.mxu0 0.0
  %954 = vmatprep.mubr.f32.mxu0 0.0
  %955 = vmatmul.mubr.f32.gmra.mrb[0].mxu0 %v884
  %v956 = vpop.f32.mrb[0].mxu0
  %v957 = vadd.f32 %v382, %v956
  %v958 = vpop.f32.mrb[0].mxu0
  %959 = vmatprep.mubr.f32.mxu0 0.0
  %960 = vmatmul.mubr.f32.gmra.mrb[0].mxu0 %v886
  %v961 = vpop.f32.mrb[0].mxu0
  %v962 = vadd.f32 %v382, %v961
  %v963 = vpop.f32.mrb[0].mxu0
  %964 = vmatprep.mubr.f32.mxu0 0.0
  %965 = vmatmul.mubr.f32.gmra.mrb[0].mxu0 %v888
  %v966 = vpop.f32.mrb[0].mxu0
  %v967 = vadd.f32 %v382, %v966
  %v968 = vpop.f32.mrb[0].mxu0
  %969 = vdwg.mxu0
  %v970 = vadd.f32 %v274, %v957
  %v971 = vadd.f32 %v279, %v962
  %v972 = vadd.f32 %v284, %v967
  %v973 = vxor.u32 %v970, 2147483648
  %v974 = vxor.u32 %v971, 2147483648
  %v975 = vxor.u32 %v972, 2147483648
  %v976 = vmul.f32 %v973, 1.442695
  %v977 = vpow.pop %v976
  %v978 = vmul.f32 %v974, 1.442695
  %v979 = vpow.pop %v978
  %v980 = vmul.f32 %v975, 1.442695
  %v981 = vpow.pop %v980
  %v982 = vadd.f32 %v977, 1.0
  %v983 = vadd.f32 %v979, 1.0
  %v984 = vadd.f32 %v981, 1.0
  %v985 = vrcp.pop %v982
  %v986 = vmul.f32 1.0, %v985
  %v987 = vrcp.pop %v983
  %v988 = vmul.f32 1.0, %v987
  %v989 = vrcp.pop %v984
  %v990 = vmul.f32 1.0, %v989
  %994 = vrot.lane.b32.xlu0 %v957, 64
  %v995 = vpop.permute.xlu0 %994
  %996 = vrot.lane.b32.xlu0 %v962, 64
  %v997 = vpop.permute.xlu0 %996
  %998 = vrot.lane.b32.xlu0 %v967, 64
  %v999 = vpop.permute.xlu0 %998
  %v1003 = vmul.f32 %v986, %v995
  %v1004 = vmul.f32 %v988, %v997
  %v1005 = vmul.f32 %v990, %v999
  %1009 = vrot.lane.b32.xlu0 %v1003, 64
  %v1010 = vpop.permute.xlu0 %1009
  %1011 = vrot.lane.b32.xlu0 %v1004, 64
  %v1012 = vpop.permute.xlu0 %1011
  %1013 = vrot.lane.b32.xlu0 %v1005, 64
  %v1014 = vpop.permute.xlu0 %1013
  %v1018 = vadd.f32 %v274, %v1010
  %v1019 = vadd.f32 %v279, %v1012
  %v1020 = vadd.f32 %v284, %v1014
  %v1021 = vtanh.pop %v1018
  %v1022 = vtanh.pop %v1019
  %v1023 = vtanh.pop %v1020
  %v1024 = vsub.f32 1.0, %v986
  %v1025 = vsub.f32 1.0, %v988
  %v1026 = vsub.f32 1.0, %v990
  %1030 = vrot.lane.b32.xlu0 %v1021, 96
  %v1031 = vpop.permute.xlu0 %1030
  %1032 = vrot.lane.b32.xlu0 %v1022, 96
  %v1033 = vpop.permute.xlu0 %1032
  %1034 = vrot.lane.b32.xlu0 %v1023, 96
  %v1035 = vpop.permute.xlu0 %1034
  %v1039 = vmul.f32 %v1024, %v1031
  %v1040 = vmul.f32 %v1025, %v1033
  %v1041 = vmul.f32 %v1026, %v1035
  %v1042 = vmul.f32 %v986, %v868
  %v1043 = vmul.f32 %v988, %v869
  %v1044 = vmul.f32 %v990, %v870
  %v1045 = vadd.f32 %v1039, %v1042
  %v1046 = vadd.f32 %v1040, %v1043
  %v1047 = vadd.f32 %v1041, %v1044
  %vm1048 = vcmp.gt.f32.partialorder %v375, 2.0
  %vm1049 = vcmp.gt.f32.partialorder %v376, 2.0
  %vm1050 = vcmp.gt.f32.partialorder %v377, 2.0
  %v1051 = vsel %vm1048, 1, 0
  %v1052 = vsel %vm1049, 1, 0
  %v1053 = vsel %vm1050, 1, 0
  %v1054 = vcvt.s32.f32 %v1051
  %v1055 = vcvt.s32.f32 %v1052
  %v1056 = vcvt.s32.f32 %v1053
  %1058 = vset.pattern.permute.xlu0 0
  %1059 = vperm.xlu0 %1058, %v1054
  %v1060 = vpop.permute.xlu0 %1059
  %1063 = vset.pattern.permute.xlu0 0
  %1064 = vperm.xlu0 %1063, %v1055
  %v1065 = vpop.permute.xlu0 %1064
  %1068 = vset.pattern.permute.xlu0 0
  %1069 = vperm.xlu0 %1068, %v1056
  %v1070 = vpop.permute.xlu0 %1069
  %v1072 = vmul.f32 %v1060, %v1045
  %v1073 = vmul.f32 %v1065, %v1046
  %v1074 = vmul.f32 %v1070, %v1047
  %v1075 = vsub.f32 1.0, %v1054
  %v1076 = vsub.f32 1.0, %v1055
  %v1077 = vsub.f32 1.0, %v1056
  %1079 = vset.pattern.permute.xlu0 0
  %1080 = vperm.xlu0 %1079, %v1075
  %v1081 = vpop.permute.xlu0 %1080
  %1084 = vset.pattern.permute.xlu0 0
  %1085 = vperm.xlu0 %1084, %v1076
  %v1086 = vpop.permute.xlu0 %1085
  %1089 = vset.pattern.permute.xlu0 0
  %1090 = vperm.xlu0 %1089, %v1077
  %v1091 = vpop.permute.xlu0 %1090
  %v1093 = vmul.f32 %v1081, %v868
  %v1094 = vmul.f32 %v1086, %v869
  %v1095 = vmul.f32 %v1091, %v870
  %v1096 = vadd.f32 %v1072, %v1093
  %v1097 = vadd.f32 %v1073, %v1094
  %v1098 = vadd.f32 %v1074, %v1095
  %1102 = vrot.lane.b32.xlu0 %v1072, 32
  %v1103 = vpop.permute.xlu0 %1102
  %1104 = vrot.lane.b32.xlu0 %v1073, 32
  %v1105 = vpop.permute.xlu0 %1104
  %1106 = vrot.lane.b32.xlu0 %v1074, 32
  %v1107 = vpop.permute.xlu0 %1106
  %vm1111 = vcmask 785920
  %1112 = vst.msk [vmem:[%s6] sm:$0xff] %vm1111, %v1103
  %1113 = vst.msk [vmem:[%s6 + $0x10] sm:$0xff] %vm1111, %v1105
  %1114 = vst.msk [vmem:[%s6 + $0x20] sm:$0xff] %vm1111, %v1107
  %1118 = vrot.lane.b32.xlu0 %v1096, 96
  %v1119 = vpop.permute.xlu0 %1118
  %1120 = vrot.lane.b32.xlu0 %v1097, 96
  %v1121 = vpop.permute.xlu0 %1120
  %1122 = vrot.lane.b32.xlu0 %v1098, 96
  %v1123 = vpop.permute.xlu0 %1122
  %v1124 = vsel %vm68, %v1119, 0
  %v1126 = vsel %vm68, %v1121, 0
  %v1128 = vsel %vm68, %v1123, 0
  %1130 = vmatprep.subr.mxu0 0.0
  %1131 = vmatpush1.xpose.msra.mxu0 %v388
  %1132 = vmatprep.subr.mxu0 0.0
  %1133 = vmatpush1.xpose.msra.mxu0 %v391
  %1134 = vmatprep.subr.mxu0 0.0
  %1135 = vmatpush1.xpose.msra.mxu0 %v394
  %1136 = vmatprep.subr.mxu0 0.0
  %1137 = vmatpush1.xpose.msra.mxu0 %v397
  %1138 = vmatprep.subr.mxu0 0.0
  %1139 = vmatpush1.xpose.msra.mxu0 %v400
  %1140 = vmatprep.subr.mxu0 0.0
  %1141 = vmatpush1.xpose.msra.mxu0 %v403
  %1142 = vmatprep.subr.mxu0 0.0
  %1143 = vmatpush1.xpose.msra.mxu0 %v406
  %1144 = vmatprep.subr.mxu0 0.0
  %1145 = vmatpush1.xpose.msra.mxu0 %v409
  %1146 = vmatprep.subr.mxu0 0.0
  %1147 = vmatpush1.xpose.msra.mxu0 %v412
  %1148 = vmatprep.subr.mxu0 0.0
  %1149 = vmatpush1.xpose.msra.mxu0 %v415
  %1150 = vmatprep.subr.mxu0 0.0
  %1151 = vmatpush1.xpose.msra.mxu0 %v418
  %1152 = vmatprep.subr.mxu0 0.0
  %1153 = vmatpush1.xpose.msra.mxu0 %v421
  %1154 = vmatprep.subr.mxu0 0.0
  %1155 = vmatpush1.xpose.msra.mxu0 0.0
  %1156 = vmatprep.subr.mxu0 0.0
  %1157 = vmatpush1.xpose.msra.mxu0 0.0
  %1158 = vmatprep.subr.mxu0 0.0
  %1159 = vmatpush1.xpose.msra.mxu0 0.0
  %1160 = vmatprep.subr.mxu0 0.0
  %1161 = vmatpush1.xpose.msra.mxu0 0.0
  %1162 = vmatprep.subr.mxu0 0.0
  %1163 = vmatpush1.xpose.msra.mxu0 0.0
  %1164 = vmatprep.subr.mxu0 0.0
  %1165 = vmatpush1.xpose.msra.mxu0 0.0
  %1166 = vmatprep.subr.mxu0 0.0
  %1167 = vmatpush1.xpose.msra.mxu0 0.0
  %1168 = vmatprep.subr.mxu0 0.0
  %1169 = vmatpush1.xpose.msra.mxu0 0.0
  %1170 = vmatprep.subr.mxu0 0.0
  %1171 = vmatpush1.xpose.msra.mxu0 0.0
  %1172 = vmatprep.subr.mxu0 0.0
  %1173 = vmatpush1.xpose.msra.mxu0 0.0
  %1174 = vmatprep.subr.mxu0 0.0
  %1175 = vmatpush1.xpose.msra.mxu0 0.0
  %1176 = vmatprep.subr.mxu0 0.0
  %1177 = vmatpush1.xpose.msra.mxu0 0.0
  %1178 = vmatprep.subr.mxu0 0.0
  %1179 = vmatpush1.xpose.msra.mxu0 0.0
  %1180 = vmatprep.subr.mxu0 0.0
  %1181 = vmatpush1.xpose.msra.mxu0 0.0
  %1182 = vmatprep.subr.mxu0 0.0
  %1183 = vmatpush1.xpose.msra.mxu0 0.0
  %1184 = vmatprep.subr.mxu0 0.0
  %1185 = vmatpush1.xpose.msra.mxu0 0.0
  %1186 = vmatprep.subr.mxu0 0.0
  %1187 = vmatpush1.xpose.msra.mxu0 0.0
  %1188 = vmatprep.subr.mxu0 0.0
  %1189 = vmatpush1.xpose.msra.mxu0 0.0
  %1190 = vmatprep.subr.mxu0 0.0
  %1191 = vmatpush1.xpose.msra.mxu0 0.0
  %1192 = vmatprep.subr.mxu0 0.0
  %1193 = vmatpush1.xpose.msra.mxu0 0.0
  %1194 = vmatprep.mubr.f32.mxu0 0.0
  %1195 = vmatmul.mubr.f32.gmra.mrb[0].mxu0 %v1124
  %v1196 = vpop.f32.mrb[0].mxu0
  %v1197 = vadd.f32 %v382, %v1196
  %v1198 = vpop.f32.mrb[0].mxu0
  %1199 = vmatprep.mubr.f32.mxu0 0.0
  %1200 = vmatmul.mubr.f32.gmra.mrb[0].mxu0 %v1126
  %v1201 = vpop.f32.mrb[0].mxu0
  %v1202 = vadd.f32 %v382, %v1201
  %v1203 = vpop.f32.mrb[0].mxu0
  %1204 = vmatprep.mubr.f32.mxu0 0.0
  %1205 = vmatmul.mubr.f32.gmra.mrb[0].mxu0 %v1128
  %v1206 = vpop.f32.mrb[0].mxu0
  %v1207 = vadd.f32 %v382, %v1206
  %v1208 = vpop.f32.mrb[0].mxu0
  %1209 = vdwg.mxu0
  %v1210 = vadd.f32 %v289, %v1197
  %v1211 = vadd.f32 %v294, %v1202
  %v1212 = vadd.f32 %v299, %v1207
  %v1213 = vxor.u32 %v1210, 2147483648
  %v1214 = vxor.u32 %v1211, 2147483648
  %v1215 = vxor.u32 %v1212, 2147483648
  %v1216 = vmul.f32 %v1213, 1.442695
  %v1217 = vpow.pop %v1216
  %v1218 = vmul.f32 %v1214, 1.442695
  %v1219 = vpow.pop %v1218
  %v1220 = vmul.f32 %v1215, 1.442695
  %v1221 = vpow.pop %v1220
  %v1222 = vadd.f32 %v1217, 1.0
  %v1223 = vadd.f32 %v1219, 1.0
  %v1224 = vadd.f32 %v1221, 1.0
  %v1225 = vrcp.pop %v1222
  %v1226 = vmul.f32 1.0, %v1225
  %v1227 = vrcp.pop %v1223
  %v1228 = vmul.f32 1.0, %v1227
  %v1229 = vrcp.pop %v1224
  %v1230 = vmul.f32 1.0, %v1229
  %1234 = vrot.lane.b32.xlu0 %v1197, 64
  %v1235 = vpop.permute.xlu0 %1234
  %1236 = vrot.lane.b32.xlu0 %v1202, 64
  %v1237 = vpop.permute.xlu0 %1236
  %1238 = vrot.lane.b32.xlu0 %v1207, 64
  %v1239 = vpop.permute.xlu0 %1238
  %v1243 = vmul.f32 %v1226, %v1235
  %v1244 = vmul.f32 %v1228, %v1237
  %v1245 = vmul.f32 %v1230, %v1239
  %1249 = vrot.lane.b32.xlu0 %v1243, 64
  %v1250 = vpop.permute.xlu0 %1249
  %1251 = vrot.lane.b32.xlu0 %v1244, 64
  %v1252 = vpop.permute.xlu0 %1251
  %1253 = vrot.lane.b32.xlu0 %v1245, 64
  %v1254 = vpop.permute.xlu0 %1253
  %v1258 = vadd.f32 %v289, %v1250
  %v1259 = vadd.f32 %v294, %v1252
  %v1260 = vadd.f32 %v299, %v1254
  %v1261 = vtanh.pop %v1258
  %v1262 = vtanh.pop %v1259
  %v1263 = vtanh.pop %v1260
  %v1264 = vsub.f32 1.0, %v1226
  %v1265 = vsub.f32 1.0, %v1228
  %v1266 = vsub.f32 1.0, %v1230
  %1270 = vrot.lane.b32.xlu0 %v1261, 96
  %v1271 = vpop.permute.xlu0 %1270
  %1272 = vrot.lane.b32.xlu0 %v1262, 96
  %v1273 = vpop.permute.xlu0 %1272
  %1274 = vrot.lane.b32.xlu0 %v1263, 96
  %v1275 = vpop.permute.xlu0 %1274
  %v1279 = vmul.f32 %v1264, %v1271
  %v1280 = vmul.f32 %v1265, %v1273
  %v1281 = vmul.f32 %v1266, %v1275
  %v1282 = vmul.f32 %v1226, %v1096
  %v1283 = vmul.f32 %v1228, %v1097
  %v1284 = vmul.f32 %v1230, %v1098
  %v1285 = vadd.f32 %v1279, %v1282
  %v1286 = vadd.f32 %v1280, %v1283
  %v1287 = vadd.f32 %v1281, %v1284
  %vm1288 = vcmp.gt.f32.partialorder %v375, 3.0
  %vm1289 = vcmp.gt.f32.partialorder %v376, 3.0
  %vm1290 = vcmp.gt.f32.partialorder %v377, 3.0
  %v1291 = vsel %vm1288, 1, 0
  %v1292 = vsel %vm1289, 1, 0
  %v1293 = vsel %vm1290, 1, 0
  %v1294 = vcvt.s32.f32 %v1291
  %v1295 = vcvt.s32.f32 %v1292
  %v1296 = vcvt.s32.f32 %v1293
  %1298 = vset.pattern.permute.xlu0 0
  %1299 = vperm.xlu0 %1298, %v1294
  %v1300 = vpop.permute.xlu0 %1299
  %1303 = vset.pattern.permute.xlu0 0
  %1304 = vperm.xlu0 %1303, %v1295
  %v1305 = vpop.permute.xlu0 %1304
  %1308 = vset.pattern.permute.xlu0 0
  %1309 = vperm.xlu0 %1308, %v1296
  %v1310 = vpop.permute.xlu0 %1309
  %v1312 = vmul.f32 %v1300, %v1285
  %v1313 = vmul.f32 %v1305, %v1286
  %v1314 = vmul.f32 %v1310, %v1287
  %v1315 = vsub.f32 1.0, %v1294
  %v1316 = vsub.f32 1.0, %v1295
  %v1317 = vsub.f32 1.0, %v1296
  %1319 = vset.pattern.permute.xlu0 0
  %1320 = vperm.xlu0 %1319, %v1315
  %v1321 = vpop.permute.xlu0 %1320
  %1324 = vset.pattern.permute.xlu0 0
  %1325 = vperm.xlu0 %1324, %v1316
  %v1326 = vpop.permute.xlu0 %1325
  %1329 = vset.pattern.permute.xlu0 0
  %1330 = vperm.xlu0 %1329, %v1317
  %v1331 = vpop.permute.xlu0 %1330
  %v1333 = vmul.f32 %v1321, %v1096
  %v1334 = vmul.f32 %v1326, %v1097
  %v1335 = vmul.f32 %v1331, %v1098
  %v1336 = vadd.f32 %v1312, %v1333
  %v1337 = vadd.f32 %v1313, %v1334
  %v1338 = vadd.f32 %v1314, %v1335
  %1342 = vrot.lane.b32.xlu0 %v1312, 64
  %v1343 = vpop.permute.xlu0 %1342
  %1344 = vrot.lane.b32.xlu0 %v1313, 64
  %v1345 = vpop.permute.xlu0 %1344
  %1346 = vrot.lane.b32.xlu0 %v1314, 64
  %v1347 = vpop.permute.xlu0 %1346
  %vm1351 = vcmask 1048320
  %1352 = vst.msk [vmem:[%s6] sm:$0xff] %vm1351, %v1343
  %1353 = vst.msk [vmem:[%s6 + $0x10] sm:$0xff] %vm1351, %v1345
  %1354 = vst.msk [vmem:[%s6 + $0x20] sm:$0xff] %vm1351, %v1347
  %1358 = vrot.lane.b32.xlu0 %v1336, 96
  %v1359 = vpop.permute.xlu0 %1358
  %1360 = vrot.lane.b32.xlu0 %v1337, 96
  %v1361 = vpop.permute.xlu0 %1360
  %1362 = vrot.lane.b32.xlu0 %v1338, 96
  %v1363 = vpop.permute.xlu0 %1362
  %v1364 = vsel %vm68, %v1359, 0
  %v1366 = vsel %vm68, %v1361, 0
  %v1368 = vsel %vm68, %v1363, 0
  %1370 = vmatprep.subr.mxu0 0.0
  %1371 = vmatpush1.xpose.msra.mxu0 %v388
  %1372 = vmatprep.subr.mxu0 0.0
  %1373 = vmatpush1.xpose.msra.mxu0 %v391
  %1374 = vmatprep.subr.mxu0 0.0
  %1375 = vmatpush1.xpose.msra.mxu0 %v394
  %1376 = vmatprep.subr.mxu0 0.0
  %1377 = vmatpush1.xpose.msra.mxu0 %v397
  %1378 = vmatprep.subr.mxu0 0.0
  %1379 = vmatpush1.xpose.msra.mxu0 %v400
  %1380 = vmatprep.subr.mxu0 0.0
  %1381 = vmatpush1.xpose.msra.mxu0 %v403
  %1382 = vmatprep.subr.mxu0 0.0
  %1383 = vmatpush1.xpose.msra.mxu0 %v406
  %1384 = vmatprep.subr.mxu0 0.0
  %1385 = vmatpush1.xpose.msra.mxu0 %v409
  %1386 = vmatprep.subr.mxu0 0.0
  %1387 = vmatpush1.xpose.msra.mxu0 %v412
  %1388 = vmatprep.subr.mxu0 0.0
  %1389 = vmatpush1.xpose.msra.mxu0 %v415
  %1390 = vmatprep.subr.mxu0 0.0
  %1391 = vmatpush1.xpose.msra.mxu0 %v418
  %1392 = vmatprep.subr.mxu0 0.0
  %1393 = vmatpush1.xpose.msra.mxu0 %v421
  %1394 = vmatprep.subr.mxu0 0.0
  %1395 = vmatpush1.xpose.msra.mxu0 0.0
  %1396 = vmatprep.subr.mxu0 0.0
  %1397 = vmatpush1.xpose.msra.mxu0 0.0
  %1398 = vmatprep.subr.mxu0 0.0
  %1399 = vmatpush1.xpose.msra.mxu0 0.0
  %1400 = vmatprep.subr.mxu0 0.0
  %1401 = vmatpush1.xpose.msra.mxu0 0.0
  %1402 = vmatprep.subr.mxu0 0.0
  %1403 = vmatpush1.xpose.msra.mxu0 0.0
  %1404 = vmatprep.subr.mxu0 0.0
  %1405 = vmatpush1.xpose.msra.mxu0 0.0
  %1406 = vmatprep.subr.mxu0 0.0
  %1407 = vmatpush1.xpose.msra.mxu0 0.0
  %1408 = vmatprep.subr.mxu0 0.0
  %1409 = vmatpush1.xpose.msra.mxu0 0.0
  %1410 = vmatprep.subr.mxu0 0.0
  %1411 = vmatpush1.xpose.msra.mxu0 0.0
  %1412 = vmatprep.subr.mxu0 0.0
  %1413 = vmatpush1.xpose.msra.mxu0 0.0
  %1414 = vmatprep.subr.mxu0 0.0
  %1415 = vmatpush1.xpose.msra.mxu0 0.0
  %1416 = vmatprep.subr.mxu0 0.0
  %1417 = vmatpush1.xpose.msra.mxu0 0.0
  %1418 = vmatprep.subr.mxu0 0.0
  %1419 = vmatpush1.xpose.msra.mxu0 0.0
  %1420 = vmatprep.subr.mxu0 0.0
  %1421 = vmatpush1.xpose.msra.mxu0 0.0
  %1422 = vmatprep.subr.mxu0 0.0
  %1423 = vmatpush1.xpose.msra.mxu0 0.0
  %1424 = vmatprep.subr.mxu0 0.0
  %1425 = vmatpush1.xpose.msra.mxu0 0.0
  %1426 = vmatprep.subr.mxu0 0.0
  %1427 = vmatpush1.xpose.msra.mxu0 0.0
  %1428 = vmatprep.subr.mxu0 0.0
  %1429 = vmatpush1.xpose.msra.mxu0 0.0
  %1430 = vmatprep.subr.mxu0 0.0
  %1431 = vmatpush1.xpose.msra.mxu0 0.0
  %1432 = vmatprep.subr.mxu0 0.0
  %1433 = vmatpush1.xpose.msra.mxu0 0.0
  %1434 = vmatprep.mubr.f32.mxu0 0.0
  %1435 = vmatmul.mubr.f32.gmra.mrb[0].mxu0 %v1364
  %v1436 = vpop.f32.mrb[0].mxu0
  %v1437 = vadd.f32 %v382, %v1436
  %v1438 = vpop.f32.mrb[0].mxu0
  %1439 = vmatprep.mubr.f32.mxu0 0.0
  %1440 = vmatmul.mubr.f32.gmra.mrb[0].mxu0 %v1366
  %v1441 = vpop.f32.mrb[0].mxu0
  %v1442 = vadd.f32 %v382, %v1441
  %v1443 = vpop.f32.mrb[0].mxu0
  %1444 = vmatprep.mubr.f32.mxu0 0.0
  %1445 = vmatmul.mubr.f32.gmra.mrb[0].mxu0 %v1368
  %v1446 = vpop.f32.mrb[0].mxu0
  %v1447 = vadd.f32 %v382, %v1446
  %v1448 = vpop.f32.mrb[0].mxu0
  %1449 = vdwg.mxu0
  %v1450 = vadd.f32 %v304, %v1437
  %v1451 = vadd.f32 %v309, %v1442
  %v1452 = vadd.f32 %v314, %v1447
  %v1453 = vxor.u32 %v1450, 2147483648
  %v1454 = vxor.u32 %v1451, 2147483648
  %v1455 = vxor.u32 %v1452, 2147483648
  %v1456 = vmul.f32 %v1453, 1.442695
  %v1457 = vpow.pop %v1456
  %v1458 = vmul.f32 %v1454, 1.442695
  %v1459 = vpow.pop %v1458
  %v1460 = vmul.f32 %v1455, 1.442695
  %v1461 = vpow.pop %v1460
  %v1462 = vadd.f32 %v1457, 1.0
  %v1463 = vadd.f32 %v1459, 1.0
  %v1464 = vadd.f32 %v1461, 1.0
  %v1465 = vrcp.pop %v1462
  %v1466 = vmul.f32 1.0, %v1465
  %v1467 = vrcp.pop %v1463
  %v1468 = vmul.f32 1.0, %v1467
  %v1469 = vrcp.pop %v1464
  %v1470 = vmul.f32 1.0, %v1469
  %1474 = vrot.lane.b32.xlu0 %v1437, 64
  %v1475 = vpop.permute.xlu0 %1474
  %1476 = vrot.lane.b32.xlu0 %v1442, 64
  %v1477 = vpop.permute.xlu0 %1476
  %1478 = vrot.lane.b32.xlu0 %v1447, 64
  %v1479 = vpop.permute.xlu0 %1478
  %v1483 = vmul.f32 %v1466, %v1475
  %v1484 = vmul.f32 %v1468, %v1477
  %v1485 = vmul.f32 %v1470, %v1479
  %1489 = vrot.lane.b32.xlu0 %v1483, 64
  %v1490 = vpop.permute.xlu0 %1489
  %1491 = vrot.lane.b32.xlu0 %v1484, 64
  %v1492 = vpop.permute.xlu0 %1491
  %1493 = vrot.lane.b32.xlu0 %v1485, 64
  %v1494 = vpop.permute.xlu0 %1493
  %v1498 = vadd.f32 %v304, %v1490
  %v1499 = vadd.f32 %v309, %v1492
  %v1500 = vadd.f32 %v314, %v1494
  %v1501 = vtanh.pop %v1498
  %v1502 = vtanh.pop %v1499
  %v1503 = vtanh.pop %v1500
  %v1504 = vsub.f32 1.0, %v1466
  %v1505 = vsub.f32 1.0, %v1468
  %v1506 = vsub.f32 1.0, %v1470
  %1510 = vrot.lane.b32.xlu0 %v1501, 96
  %v1511 = vpop.permute.xlu0 %1510
  %1512 = vrot.lane.b32.xlu0 %v1502, 96
  %v1513 = vpop.permute.xlu0 %1512
  %1514 = vrot.lane.b32.xlu0 %v1503, 96
  %v1515 = vpop.permute.xlu0 %1514
  %v1519 = vmul.f32 %v1504, %v1511
  %v1520 = vmul.f32 %v1505, %v1513
  %v1521 = vmul.f32 %v1506, %v1515
  %v1522 = vmul.f32 %v1466, %v1336
  %v1523 = vmul.f32 %v1468, %v1337
  %v1524 = vmul.f32 %v1470, %v1338
  %v1525 = vadd.f32 %v1519, %v1522
  %v1526 = vadd.f32 %v1520, %v1523
  %v1527 = vadd.f32 %v1521, %v1524
  %vm1528 = vcmp.gt.f32.partialorder %v375, 4.0
  %vm1529 = vcmp.gt.f32.partialorder %v376, 4.0
  %vm1530 = vcmp.gt.f32.partialorder %v377, 4.0
  %v1531 = vsel %vm1528, 1, 0
  %v1532 = vsel %vm1529, 1, 0
  %v1533 = vsel %vm1530, 1, 0
  %v1534 = vcvt.s32.f32 %v1531
  %v1535 = vcvt.s32.f32 %v1532
  %v1536 = vcvt.s32.f32 %v1533
  %1538 = vset.pattern.permute.xlu0 0
  %1539 = vperm.xlu0 %1538, %v1534
  %v1540 = vpop.permute.xlu0 %1539
  %1543 = vset.pattern.permute.xlu0 0
  %1544 = vperm.xlu0 %1543, %v1535
  %v1545 = vpop.permute.xlu0 %1544
  %1548 = vset.pattern.permute.xlu0 0
  %1549 = vperm.xlu0 %1548, %v1536
  %v1550 = vpop.permute.xlu0 %1549
  %v1552 = vmul.f32 %v1540, %v1525
  %v1553 = vmul.f32 %v1545, %v1526
  %v1554 = vmul.f32 %v1550, %v1527
  %v1555 = vsub.f32 1.0, %v1534
  %v1556 = vsub.f32 1.0, %v1535
  %v1557 = vsub.f32 1.0, %v1536
  %1559 = vset.pattern.permute.xlu0 0
  %1560 = vperm.xlu0 %1559, %v1555
  %v1561 = vpop.permute.xlu0 %1560
  %1564 = vset.pattern.permute.xlu0 0
  %1565 = vperm.xlu0 %1564, %v1556
  %v1566 = vpop.permute.xlu0 %1565
  %1569 = vset.pattern.permute.xlu0 0
  %1570 = vperm.xlu0 %1569, %v1557
  %v1571 = vpop.permute.xlu0 %1570
  %v1573 = vmul.f32 %v1561, %v1336
  %v1574 = vmul.f32 %v1566, %v1337
  %v1575 = vmul.f32 %v1571, %v1338
  %v1576 = vadd.f32 %v1552, %v1573
  %v1577 = vadd.f32 %v1553, %v1574
  %v1578 = vadd.f32 %v1554, %v1575
  %1582 = vrot.lane.b32.xlu0 %v1552, 96
  %v1583 = vpop.permute.xlu0 %1582
  %1584 = vrot.lane.b32.xlu0 %v1553, 96
  %v1585 = vpop.permute.xlu0 %1584
  %1586 = vrot.lane.b32.xlu0 %v1554, 96
  %v1587 = vpop.permute.xlu0 %1586
  %1591 = vst.msk [vmem:[%s6 + $0x8] sm:$0xff] %vm68, %v1583
  %1592 = vst.msk [vmem:[%s6 + $0x18] sm:$0xff] %vm68, %v1585
  %1593 = vst.msk [vmem:[%s6 + $0x28] sm:$0xff] %vm68, %v1587
  %1597 = vrot.lane.b32.xlu0 %v1576, 96
  %v1598 = vpop.permute.xlu0 %1597
  %1599 = vrot.lane.b32.xlu0 %v1577, 96
  %v1600 = vpop.permute.xlu0 %1599
  %1601 = vrot.lane.b32.xlu0 %v1578, 96
  %v1602 = vpop.permute.xlu0 %1601
  %v1603 = vsel %vm68, %v1598, 0
  %v1605 = vsel %vm68, %v1600, 0
  %v1607 = vsel %vm68, %v1602, 0
  %1609 = vmatprep.subr.mxu0 0.0
  %1610 = vmatpush1.xpose.msra.mxu0 %v388
  %1611 = vmatprep.subr.mxu0 0.0
  %1612 = vmatpush1.xpose.msra.mxu0 %v391
  %1613 = vmatprep.subr.mxu0 0.0
  %1614 = vmatpush1.xpose.msra.mxu0 %v394
  %1615 = vmatprep.subr.mxu0 0.0
  %1616 = vmatpush1.xpose.msra.mxu0 %v397
  %1617 = vmatprep.subr.mxu0 0.0
  %1618 = vmatpush1.xpose.msra.mxu0 %v400
  %1619 = vmatprep.subr.mxu0 0.0
  %1620 = vmatpush1.xpose.msra.mxu0 %v403
  %1621 = vmatprep.subr.mxu0 0.0
  %1622 = vmatpush1.xpose.msra.mxu0 %v406
  %1623 = vmatprep.subr.mxu0 0.0
  %1624 = vmatpush1.xpose.msra.mxu0 %v409
  %1625 = vmatprep.subr.mxu0 0.0
  %1626 = vmatpush1.xpose.msra.mxu0 %v412
  %1627 = vmatprep.subr.mxu0 0.0
  %1628 = vmatpush1.xpose.msra.mxu0 %v415
  %1629 = vmatprep.subr.mxu0 0.0
  %1630 = vmatpush1.xpose.msra.mxu0 %v418
  %1631 = vmatprep.subr.mxu0 0.0
  %1632 = vmatpush1.xpose.msra.mxu0 %v421
  %1633 = vmatprep.subr.mxu0 0.0
  %1634 = vmatpush1.xpose.msra.mxu0 0.0
  %1635 = vmatprep.subr.mxu0 0.0
  %1636 = vmatpush1.xpose.msra.mxu0 0.0
  %1637 = vmatprep.subr.mxu0 0.0
  %1638 = vmatpush1.xpose.msra.mxu0 0.0
  %1639 = vmatprep.subr.mxu0 0.0
  %1640 = vmatpush1.xpose.msra.mxu0 0.0
  %1641 = vmatprep.subr.mxu0 0.0
  %1642 = vmatpush1.xpose.msra.mxu0 0.0
  %1643 = vmatprep.subr.mxu0 0.0
  %1644 = vmatpush1.xpose.msra.mxu0 0.0
  %1645 = vmatprep.subr.mxu0 0.0
  %1646 = vmatpush1.xpose.msra.mxu0 0.0
  %1647 = vmatprep.subr.mxu0 0.0
  %1648 = vmatpush1.xpose.msra.mxu0 0.0
  %1649 = vmatprep.subr.mxu0 0.0
  %1650 = vmatpush1.xpose.msra.mxu0 0.0
  %1651 = vmatprep.subr.mxu0 0.0
  %1652 = vmatpush1.xpose.msra.mxu0 0.0
  %1653 = vmatprep.subr.mxu0 0.0
  %1654 = vmatpush1.xpose.msra.mxu0 0.0
  %1655 = vmatprep.subr.mxu0 0.0
  %1656 = vmatpush1.xpose.msra.mxu0 0.0
  %1657 = vmatprep.subr.mxu0 0.0
  %1658 = vmatpush1.xpose.msra.mxu0 0.0
  %1659 = vmatprep.subr.mxu0 0.0
  %1660 = vmatpush1.xpose.msra.mxu0 0.0
  %1661 = vmatprep.subr.mxu0 0.0
  %1662 = vmatpush1.xpose.msra.mxu0 0.0
  %1663 = vmatprep.subr.mxu0 0.0
  %1664 = vmatpush1.xpose.msra.mxu0 0.0
  %1665 = vmatprep.subr.mxu0 0.0
  %1666 = vmatpush1.xpose.msra.mxu0 0.0
  %1667 = vmatprep.subr.mxu0 0.0
  %1668 = vmatpush1.xpose.msra.mxu0 0.0
  %1669 = vmatprep.subr.mxu0 0.0
  %1670 = vmatpush1.xpose.msra.mxu0 0.0
  %1671 = vmatprep.subr.mxu0 0.0
  %1672 = vmatpush1.xpose.msra.mxu0 0.0
  %1673 = vmatprep.mubr.f32.mxu0 0.0
  %1674 = vmatmul.mubr.f32.gmra.mrb[0].mxu0 %v1603
  %v1675 = vpop.f32.mrb[0].mxu0
  %v1676 = vadd.f32 %v382, %v1675
  %v1677 = vpop.f32.mrb[0].mxu0
  %1678 = vmatprep.mubr.f32.mxu0 0.0
  %1679 = vmatmul.mubr.f32.gmra.mrb[0].mxu0 %v1605
  %v1680 = vpop.f32.mrb[0].mxu0
  %v1681 = vadd.f32 %v382, %v1680
  %v1682 = vpop.f32.mrb[0].mxu0
  %1683 = vmatprep.mubr.f32.mxu0 0.0
  %1684 = vmatmul.mubr.f32.gmra.mrb[0].mxu0 %v1607
  %v1685 = vpop.f32.mrb[0].mxu0
  %v1686 = vadd.f32 %v382, %v1685
  %v1687 = vpop.f32.mrb[0].mxu0
  %1688 = vdwg.mxu0
  %v1689 = vadd.f32 %v319, %v1676
  %v1690 = vadd.f32 %v324, %v1681
  %v1691 = vadd.f32 %v329, %v1686
  %v1692 = vxor.u32 %v1689, 2147483648
  %v1693 = vxor.u32 %v1690, 2147483648
  %v1694 = vxor.u32 %v1691, 2147483648
  %v1695 = vmul.f32 %v1692, 1.442695
  %v1696 = vpow.pop %v1695
  %v1697 = vmul.f32 %v1693, 1.442695
  %v1698 = vpow.pop %v1697
  %v1699 = vmul.f32 %v1694, 1.442695
  %v1700 = vpow.pop %v1699
  %v1701 = vadd.f32 %v1696, 1.0
  %v1702 = vadd.f32 %v1698, 1.0
  %v1703 = vadd.f32 %v1700, 1.0
  %v1704 = vrcp.pop %v1701
  %v1705 = vmul.f32 1.0, %v1704
  %v1706 = vrcp.pop %v1702
  %v1707 = vmul.f32 1.0, %v1706
  %v1708 = vrcp.pop %v1703
  %v1709 = vmul.f32 1.0, %v1708
  %1713 = vrot.lane.b32.xlu0 %v1676, 64
  %v1714 = vpop.permute.xlu0 %1713
  %1715 = vrot.lane.b32.xlu0 %v1681, 64
  %v1716 = vpop.permute.xlu0 %1715
  %1717 = vrot.lane.b32.xlu0 %v1686, 64
  %v1718 = vpop.permute.xlu0 %1717
  %v1722 = vmul.f32 %v1705, %v1714
  %v1723 = vmul.f32 %v1707, %v1716
  %v1724 = vmul.f32 %v1709, %v1718
  %1728 = vrot.lane.b32.xlu0 %v1722, 64
  %v1729 = vpop.permute.xlu0 %1728
  %1730 = vrot.lane.b32.xlu0 %v1723, 64
  %v1731 = vpop.permute.xlu0 %1730
  %1732 = vrot.lane.b32.xlu0 %v1724, 64
  %v1733 = vpop.permute.xlu0 %1732
  %v1737 = vadd.f32 %v319, %v1729
  %v1738 = vadd.f32 %v324, %v1731
  %v1739 = vadd.f32 %v329, %v1733
  %v1740 = vtanh.pop %v1737
  %v1741 = vtanh.pop %v1738
  %v1742 = vtanh.pop %v1739
  %v1743 = vsub.f32 1.0, %v1705
  %v1744 = vsub.f32 1.0, %v1707
  %v1745 = vsub.f32 1.0, %v1709
  %1749 = vrot.lane.b32.xlu0 %v1740, 96
  %v1750 = vpop.permute.xlu0 %1749
  %1751 = vrot.lane.b32.xlu0 %v1741, 96
  %v1752 = vpop.permute.xlu0 %1751
  %1753 = vrot.lane.b32.xlu0 %v1742, 96
  %v1754 = vpop.permute.xlu0 %1753
  %v1758 = vmul.f32 %v1743, %v1750
  %v1759 = vmul.f32 %v1744, %v1752
  %v1760 = vmul.f32 %v1745, %v1754
  %v1761 = vmul.f32 %v1705, %v1576
  %v1762 = vmul.f32 %v1707, %v1577
  %v1763 = vmul.f32 %v1709, %v1578
  %v1764 = vadd.f32 %v1758, %v1761
  %v1765 = vadd.f32 %v1759, %v1762
  %v1766 = vadd.f32 %v1760, %v1763
  %vm1767 = vcmp.gt.f32.partialorder %v375, 5.0
  %vm1768 = vcmp.gt.f32.partialorder %v376, 5.0
  %vm1769 = vcmp.gt.f32.partialorder %v377, 5.0
  %v1770 = vsel %vm1767, 1, 0
  %v1771 = vsel %vm1768, 1, 0
  %v1772 = vsel %vm1769, 1, 0
  %v1773 = vcvt.s32.f32 %v1770
  %v1774 = vcvt.s32.f32 %v1771
  %v1775 = vcvt.s32.f32 %v1772
  %1777 = vset.pattern.permute.xlu0 0
  %1778 = vperm.xlu0 %1777, %v1773
  %v1779 = vpop.permute.xlu0 %1778
  %1782 = vset.pattern.permute.xlu0 0
  %1783 = vperm.xlu0 %1782, %v1774
  %v1784 = vpop.permute.xlu0 %1783
  %1787 = vset.pattern.permute.xlu0 0
  %1788 = vperm.xlu0 %1787, %v1775
  %v1789 = vpop.permute.xlu0 %1788
  %v1791 = vmul.f32 %v1779, %v1764
  %v1792 = vmul.f32 %v1784, %v1765
  %v1793 = vmul.f32 %v1789, %v1766
  %v1794 = vsub.f32 1.0, %v1773
  %v1795 = vsub.f32 1.0, %v1774
  %v1796 = vsub.f32 1.0, %v1775
  %1798 = vset.pattern.permute.xlu0 0
  %1799 = vperm.xlu0 %1798, %v1794
  %v1800 = vpop.permute.xlu0 %1799
  %1803 = vset.pattern.permute.xlu0 0
  %1804 = vperm.xlu0 %1803, %v1795
  %v1805 = vpop.permute.xlu0 %1804
  %1808 = vset.pattern.permute.xlu0 0
  %1809 = vperm.xlu0 %1808, %v1796
  %v1810 = vpop.permute.xlu0 %1809
  %v1812 = vmul.f32 %v1800, %v1576
  %v1813 = vmul.f32 %v1805, %v1577
  %v1814 = vmul.f32 %v1810, %v1578
  %v1815 = vadd.f32 %v1791, %v1812
  %v1816 = vadd.f32 %v1792, %v1813
  %v1817 = vadd.f32 %v1793, %v1814
  %1818 = vst.msk [vmem:[%s6 + $0x8] sm:$0xff] %vm871, %v1791
  %1819 = vst.msk [vmem:[%s6 + $0x18] sm:$0xff] %vm871, %v1792
  %1820 = vst.msk [vmem:[%s6 + $0x28] sm:$0xff] %vm871, %v1793
  %1824 = vrot.lane.b32.xlu0 %v1815, 96
  %v1825 = vpop.permute.xlu0 %1824
  %1826 = vrot.lane.b32.xlu0 %v1816, 96
  %v1827 = vpop.permute.xlu0 %1826
  %1828 = vrot.lane.b32.xlu0 %v1817, 96
  %v1829 = vpop.permute.xlu0 %1828
  %v1830 = vsel %vm68, %v1825, 0
  %v1832 = vsel %vm68, %v1827, 0
  %v1834 = vsel %vm68, %v1829, 0
  %1836 = vmatprep.subr.mxu0 0.0
  %1837 = vmatpush1.xpose.msra.mxu0 %v388
  %1838 = vmatprep.subr.mxu0 0.0
  %1839 = vmatpush1.xpose.msra.mxu0 %v391
  %1840 = vmatprep.subr.mxu0 0.0
  %1841 = vmatpush1.xpose.msra.mxu0 %v394
  %1842 = vmatprep.subr.mxu0 0.0
  %1843 = vmatpush1.xpose.msra.mxu0 %v397
  %1844 = vmatprep.subr.mxu0 0.0
  %1845 = vmatpush1.xpose.msra.mxu0 %v400
  %1846 = vmatprep.subr.mxu0 0.0
  %1847 = vmatpush1.xpose.msra.mxu0 %v403
  %1848 = vmatprep.subr.mxu0 0.0
  %1849 = vmatpush1.xpose.msra.mxu0 %v406
  %1850 = vmatprep.subr.mxu0 0.0
  %1851 = vmatpush1.xpose.msra.mxu0 %v409
  %1852 = vmatprep.subr.mxu0 0.0
  %1853 = vmatpush1.xpose.msra.mxu0 %v412
  %1854 = vmatprep.subr.mxu0 0.0
  %1855 = vmatpush1.xpose.msra.mxu0 %v415
  %1856 = vmatprep.subr.mxu0 0.0
  %1857 = vmatpush1.xpose.msra.mxu0 %v418
  %1858 = vmatprep.subr.mxu0 0.0
  %1859 = vmatpush1.xpose.msra.mxu0 %v421
  %1860 = vmatprep.subr.mxu0 0.0
  %1861 = vmatpush1.xpose.msra.mxu0 0.0
  %1862 = vmatprep.subr.mxu0 0.0
  %1863 = vmatpush1.xpose.msra.mxu0 0.0
  %1864 = vmatprep.subr.mxu0 0.0
  %1865 = vmatpush1.xpose.msra.mxu0 0.0
  %1866 = vmatprep.subr.mxu0 0.0
  %1867 = vmatpush1.xpose.msra.mxu0 0.0
  %1868 = vmatprep.subr.mxu0 0.0
  %1869 = vmatpush1.xpose.msra.mxu0 0.0
  %1870 = vmatprep.subr.mxu0 0.0
  %1871 = vmatpush1.xpose.msra.mxu0 0.0
  %1872 = vmatprep.subr.mxu0 0.0
  %1873 = vmatpush1.xpose.msra.mxu0 0.0
  %1874 = vmatprep.subr.mxu0 0.0
  %1875 = vmatpush1.xpose.msra.mxu0 0.0
  %1876 = vmatprep.subr.mxu0 0.0
  %1877 = vmatpush1.xpose.msra.mxu0 0.0
  %1878 = vmatprep.subr.mxu0 0.0
  %1879 = vmatpush1.xpose.msra.mxu0 0.0
  %1880 = vmatprep.subr.mxu0 0.0
  %1881 = vmatpush1.xpose.msra.mxu0 0.0
  %1882 = vmatprep.subr.mxu0 0.0
  %1883 = vmatpush1.xpose.msra.mxu0 0.0
  %1884 = vmatprep.subr.mxu0 0.0
  %1885 = vmatpush1.xpose.msra.mxu0 0.0
  %1886 = vmatprep.subr.mxu0 0.0
  %1887 = vmatpush1.xpose.msra.mxu0 0.0
  %1888 = vmatprep.subr.mxu0 0.0
  %1889 = vmatpush1.xpose.msra.mxu0 0.0
  %1890 = vmatprep.subr.mxu0 0.0
  %1891 = vmatpush1.xpose.msra.mxu0 0.0
  %1892 = vmatprep.subr.mxu0 0.0
  %1893 = vmatpush1.xpose.msra.mxu0 0.0
  %1894 = vmatprep.subr.mxu0 0.0
  %1895 = vmatpush1.xpose.msra.mxu0 0.0
  %1896 = vmatprep.subr.mxu0 0.0
  %1897 = vmatpush1.xpose.msra.mxu0 0.0
  %1898 = vmatprep.subr.mxu0 0.0
  %1899 = vmatpush1.xpose.msra.mxu0 0.0
  %1900 = vmatprep.mubr.f32.mxu0 0.0
  %1901 = vmatmul.mubr.f32.gmra.mrb[0].mxu0 %v1830
  %v1902 = vpop.f32.mrb[0].mxu0
  %v1903 = vadd.f32 %v382, %v1902
  %v1904 = vpop.f32.mrb[0].mxu0
  %1905 = vmatprep.mubr.f32.mxu0 0.0
  %1906 = vmatmul.mubr.f32.gmra.mrb[0].mxu0 %v1832
  %v1907 = vpop.f32.mrb[0].mxu0
  %v1908 = vadd.f32 %v382, %v1907
  %v1909 = vpop.f32.mrb[0].mxu0
  %1910 = vmatprep.mubr.f32.mxu0 0.0
  %1911 = vmatmul.mubr.f32.gmra.mrb[0].mxu0 %v1834
  %v1912 = vpop.f32.mrb[0].mxu0
  %v1913 = vadd.f32 %v382, %v1912
  %v1914 = vpop.f32.mrb[0].mxu0
  %1915 = vdwg.mxu0
  %v1916 = vadd.f32 %v334, %v1903
  %v1917 = vadd.f32 %v339, %v1908
  %v1918 = vadd.f32 %v344, %v1913
  %v1919 = vxor.u32 %v1916, 2147483648
  %v1920 = vxor.u32 %v1917, 2147483648
  %v1921 = vxor.u32 %v1918, 2147483648
  %v1922 = vmul.f32 %v1919, 1.442695
  %v1923 = vpow.pop %v1922
  %v1924 = vmul.f32 %v1920, 1.442695
  %v1925 = vpow.pop %v1924
  %v1926 = vmul.f32 %v1921, 1.442695
  %v1927 = vpow.pop %v1926
  %v1928 = vadd.f32 %v1923, 1.0
  %v1929 = vadd.f32 %v1925, 1.0
  %v1930 = vadd.f32 %v1927, 1.0
  %v1931 = vrcp.pop %v1928
  %v1932 = vmul.f32 1.0, %v1931
  %v1933 = vrcp.pop %v1929
  %v1934 = vmul.f32 1.0, %v1933
  %v1935 = vrcp.pop %v1930
  %v1936 = vmul.f32 1.0, %v1935
  %1940 = vrot.lane.b32.xlu0 %v1903, 64
  %v1941 = vpop.permute.xlu0 %1940
  %1942 = vrot.lane.b32.xlu0 %v1908, 64
  %v1943 = vpop.permute.xlu0 %1942
  %1944 = vrot.lane.b32.xlu0 %v1913, 64
  %v1945 = vpop.permute.xlu0 %1944
  %v1949 = vmul.f32 %v1932, %v1941
  %v1950 = vmul.f32 %v1934, %v1943
  %v1951 = vmul.f32 %v1936, %v1945
  %1955 = vrot.lane.b32.xlu0 %v1949, 64
  %v1956 = vpop.permute.xlu0 %1955
  %1957 = vrot.lane.b32.xlu0 %v1950, 64
  %v1958 = vpop.permute.xlu0 %1957
  %1959 = vrot.lane.b32.xlu0 %v1951, 64
  %v1960 = vpop.permute.xlu0 %1959
  %v1964 = vadd.f32 %v334, %v1956
  %v1965 = vadd.f32 %v339, %v1958
  %v1966 = vadd.f32 %v344, %v1960
  %v1967 = vtanh.pop %v1964
  %v1968 = vtanh.pop %v1965
  %v1969 = vtanh.pop %v1966
  %v1970 = vsub.f32 1.0, %v1932
  %v1971 = vsub.f32 1.0, %v1934
  %v1972 = vsub.f32 1.0, %v1936
  %1976 = vrot.lane.b32.xlu0 %v1967, 96
  %v1977 = vpop.permute.xlu0 %1976
  %1978 = vrot.lane.b32.xlu0 %v1968, 96
  %v1979 = vpop.permute.xlu0 %1978
  %1980 = vrot.lane.b32.xlu0 %v1969, 96
  %v1981 = vpop.permute.xlu0 %1980
  %v1985 = vmul.f32 %v1970, %v1977
  %v1986 = vmul.f32 %v1971, %v1979
  %v1987 = vmul.f32 %v1972, %v1981
  %v1988 = vmul.f32 %v1932, %v1815
  %v1989 = vmul.f32 %v1934, %v1816
  %v1990 = vmul.f32 %v1936, %v1817
  %v1991 = vadd.f32 %v1985, %v1988
  %v1992 = vadd.f32 %v1986, %v1989
  %v1993 = vadd.f32 %v1987, %v1990
  %vm1994 = vcmp.gt.f32.partialorder %v375, 6.0
  %vm1995 = vcmp.gt.f32.partialorder %v376, 6.0
  %vm1996 = vcmp.gt.f32.partialorder %v377, 6.0
  %v1997 = vsel %vm1994, 1, 0
  %v1998 = vsel %vm1995, 1, 0
  %v1999 = vsel %vm1996, 1, 0
  %v2000 = vcvt.s32.f32 %v1997
  %v2001 = vcvt.s32.f32 %v1998
  %v2002 = vcvt.s32.f32 %v1999
  %2004 = vset.pattern.permute.xlu0 0
  %2005 = vperm.xlu0 %2004, %v2000
  %v2006 = vpop.permute.xlu0 %2005
  %2009 = vset.pattern.permute.xlu0 0
  %2010 = vperm.xlu0 %2009, %v2001
  %v2011 = vpop.permute.xlu0 %2010
  %2014 = vset.pattern.permute.xlu0 0
  %2015 = vperm.xlu0 %2014, %v2002
  %v2016 = vpop.permute.xlu0 %2015
  %v2018 = vmul.f32 %v2006, %v1991
  %v2019 = vmul.f32 %v2011, %v1992
  %v2020 = vmul.f32 %v2016, %v1993
  %v2021 = vsub.f32 1.0, %v2000
  %v2022 = vsub.f32 1.0, %v2001
  %v2023 = vsub.f32 1.0, %v2002
  %2025 = vset.pattern.permute.xlu0 0
  %2026 = vperm.xlu0 %2025, %v2021
  %v2027 = vpop.permute.xlu0 %2026
  %2030 = vset.pattern.permute.xlu0 0
  %2031 = vperm.xlu0 %2030, %v2022
  %v2032 = vpop.permute.xlu0 %2031
  %2035 = vset.pattern.permute.xlu0 0
  %2036 = vperm.xlu0 %2035, %v2023
  %v2037 = vpop.permute.xlu0 %2036
  %v2039 = vmul.f32 %v2027, %v1815
  %v2040 = vmul.f32 %v2032, %v1816
  %v2041 = vmul.f32 %v2037, %v1817
  %v2042 = vadd.f32 %v2018, %v2039
  %v2043 = vadd.f32 %v2019, %v2040
  %v2044 = vadd.f32 %v2020, %v2041
  %2048 = vrot.lane.b32.xlu0 %v2018, 32
  %v2049 = vpop.permute.xlu0 %2048
  %2050 = vrot.lane.b32.xlu0 %v2019, 32
  %v2051 = vpop.permute.xlu0 %2050
  %2052 = vrot.lane.b32.xlu0 %v2020, 32
  %v2053 = vpop.permute.xlu0 %2052
  %2057 = vst.msk [vmem:[%s6 + $0x8] sm:$0xff] %vm1111, %v2049
  %2058 = vst.msk [vmem:[%s6 + $0x18] sm:$0xff] %vm1111, %v2051
  %2059 = vst.msk [vmem:[%s6 + $0x28] sm:$0xff] %vm1111, %v2053
  %2063 = vrot.lane.b32.xlu0 %v2042, 96
  %v2064 = vpop.permute.xlu0 %2063
  %2065 = vrot.lane.b32.xlu0 %v2043, 96
  %v2066 = vpop.permute.xlu0 %2065
  %2067 = vrot.lane.b32.xlu0 %v2044, 96
  %v2068 = vpop.permute.xlu0 %2067
  %v2069 = vsel %vm68, %v2064, 0
  %v2071 = vsel %vm68, %v2066, 0
  %v2073 = vsel %vm68, %v2068, 0
  %2075 = vmatprep.subr.mxu0 0.0
  %2076 = vmatpush1.xpose.msra.mxu0 %v388
  %2077 = vmatprep.subr.mxu0 0.0
  %2078 = vmatpush1.xpose.msra.mxu0 %v391
  %2079 = vmatprep.subr.mxu0 0.0
  %2080 = vmatpush1.xpose.msra.mxu0 %v394
  %2081 = vmatprep.subr.mxu0 0.0
  %2082 = vmatpush1.xpose.msra.mxu0 %v397
  %2083 = vmatprep.subr.mxu0 0.0
  %2084 = vmatpush1.xpose.msra.mxu0 %v400
  %2085 = vmatprep.subr.mxu0 0.0
  %2086 = vmatpush1.xpose.msra.mxu0 %v403
  %2087 = vmatprep.subr.mxu0 0.0
  %2088 = vmatpush1.xpose.msra.mxu0 %v406
  %2089 = vmatprep.subr.mxu0 0.0
  %2090 = vmatpush1.xpose.msra.mxu0 %v409
  %2091 = vmatprep.subr.mxu0 0.0
  %2092 = vmatpush1.xpose.msra.mxu0 %v412
  %2093 = vmatprep.subr.mxu0 0.0
  %2094 = vmatpush1.xpose.msra.mxu0 %v415
  %2095 = vmatprep.subr.mxu0 0.0
  %2096 = vmatpush1.xpose.msra.mxu0 %v418
  %2097 = vmatprep.subr.mxu0 0.0
  %2098 = vmatpush1.xpose.msra.mxu0 %v421
  %2099 = vmatprep.subr.mxu0 0.0
  %2100 = vmatpush1.xpose.msra.mxu0 0.0
  %2101 = vmatprep.subr.mxu0 0.0
  %2102 = vmatpush1.xpose.msra.mxu0 0.0
  %2103 = vmatprep.subr.mxu0 0.0
  %2104 = vmatpush1.xpose.msra.mxu0 0.0
  %2105 = vmatprep.subr.mxu0 0.0
  %2106 = vmatpush1.xpose.msra.mxu0 0.0
  %2107 = vmatprep.subr.mxu0 0.0
  %2108 = vmatpush1.xpose.msra.mxu0 0.0
  %2109 = vmatprep.subr.mxu0 0.0
  %2110 = vmatpush1.xpose.msra.mxu0 0.0
  %2111 = vmatprep.subr.mxu0 0.0
  %2112 = vmatpush1.xpose.msra.mxu0 0.0
  %2113 = vmatprep.subr.mxu0 0.0
  %2114 = vmatpush1.xpose.msra.mxu0 0.0
  %2115 = vmatprep.subr.mxu0 0.0
  %2116 = vmatpush1.xpose.msra.mxu0 0.0
  %2117 = vmatprep.subr.mxu0 0.0
  %2118 = vmatpush1.xpose.msra.mxu0 0.0
  %2119 = vmatprep.subr.mxu0 0.0
  %2120 = vmatpush1.xpose.msra.mxu0 0.0
  %2121 = vmatprep.subr.mxu0 0.0
  %2122 = vmatpush1.xpose.msra.mxu0 0.0
  %2123 = vmatprep.subr.mxu0 0.0
  %2124 = vmatpush1.xpose.msra.mxu0 0.0
  %2125 = vmatprep.subr.mxu0 0.0
  %2126 = vmatpush1.xpose.msra.mxu0 0.0
  %2127 = vmatprep.subr.mxu0 0.0
  %2128 = vmatpush1.xpose.msra.mxu0 0.0
  %2129 = vmatprep.subr.mxu0 0.0
  %2130 = vmatpush1.xpose.msra.mxu0 0.0
  %2131 = vmatprep.subr.mxu0 0.0
  %2132 = vmatpush1.xpose.msra.mxu0 0.0
  %2133 = vmatprep.subr.mxu0 0.0
  %2134 = vmatpush1.xpose.msra.mxu0 0.0
  %2135 = vmatprep.subr.mxu0 0.0
  %2136 = vmatpush1.xpose.msra.mxu0 0.0
  %2137 = vmatprep.subr.mxu0 0.0
  %2138 = vmatpush1.xpose.msra.mxu0 0.0
  %2139 = vmatprep.mubr.f32.mxu0 0.0
  %2140 = vmatmul.mubr.f32.gmra.mrb[0].mxu0 %v2069
  %v2141 = vpop.f32.mrb[0].mxu0
  %v2142 = vadd.f32 %v382, %v2141
  %v2143 = vpop.f32.mrb[0].mxu0
  %2144 = vmatprep.mubr.f32.mxu0 0.0
  %2145 = vmatmul.mubr.f32.gmra.mrb[0].mxu0 %v2071
  %v2146 = vpop.f32.mrb[0].mxu0
  %v2147 = vadd.f32 %v382, %v2146
  %v2148 = vpop.f32.mrb[0].mxu0
  %2149 = vmatprep.mubr.f32.mxu0 0.0
  %2150 = vmatmul.mubr.f32.gmra.mrb[0].mxu0 %v2073
  %v2151 = vpop.f32.mrb[0].mxu0
  %v2152 = vadd.f32 %v382, %v2151
  %v2153 = vpop.f32.mrb[0].mxu0
  %2154 = vdwg.mxu0
  %v2155 = vadd.f32 %v349, %v2142
  %v2156 = vadd.f32 %v354, %v2147
  %v2157 = vadd.f32 %v359, %v2152
  %v2158 = vxor.u32 %v2155, 2147483648
  %v2159 = vxor.u32 %v2156, 2147483648
  %v2160 = vxor.u32 %v2157, 2147483648
  %v2161 = vmul.f32 %v2158, 1.442695
  %v2162 = vpow.pop %v2161
  %v2163 = vmul.f32 %v2159, 1.442695
  %v2164 = vpow.pop %v2163
  %v2165 = vmul.f32 %v2160, 1.442695
  %v2166 = vpow.pop %v2165
  %v2167 = vadd.f32 %v2162, 1.0
  %v2168 = vadd.f32 %v2164, 1.0
  %v2169 = vadd.f32 %v2166, 1.0
  %v2170 = vrcp.pop %v2167
  %v2171 = vmul.f32 1.0, %v2170
  %v2172 = vrcp.pop %v2168
  %v2173 = vmul.f32 1.0, %v2172
  %v2174 = vrcp.pop %v2169
  %v2175 = vmul.f32 1.0, %v2174
  %2179 = vrot.lane.b32.xlu0 %v2142, 64
  %v2180 = vpop.permute.xlu0 %2179
  %2181 = vrot.lane.b32.xlu0 %v2147, 64
  %v2182 = vpop.permute.xlu0 %2181
  %2183 = vrot.lane.b32.xlu0 %v2152, 64
  %v2184 = vpop.permute.xlu0 %2183
  %v2188 = vmul.f32 %v2171, %v2180
  %v2189 = vmul.f32 %v2173, %v2182
  %v2190 = vmul.f32 %v2175, %v2184
  %2194 = vrot.lane.b32.xlu0 %v2188, 64
  %v2195 = vpop.permute.xlu0 %2194
  %2196 = vrot.lane.b32.xlu0 %v2189, 64
  %v2197 = vpop.permute.xlu0 %2196
  %2198 = vrot.lane.b32.xlu0 %v2190, 64
  %v2199 = vpop.permute.xlu0 %2198
  %v2203 = vadd.f32 %v349, %v2195
  %v2204 = vadd.f32 %v354, %v2197
  %v2205 = vadd.f32 %v359, %v2199
  %v2206 = vtanh.pop %v2203
  %v2207 = vtanh.pop %v2204
  %v2208 = vtanh.pop %v2205
  %v2209 = vsub.f32 1.0, %v2171
  %v2210 = vsub.f32 1.0, %v2173
  %v2211 = vsub.f32 1.0, %v2175
  %2215 = vrot.lane.b32.xlu0 %v2206, 96
  %v2216 = vpop.permute.xlu0 %2215
  %2217 = vrot.lane.b32.xlu0 %v2207, 96
  %v2218 = vpop.permute.xlu0 %2217
  %2219 = vrot.lane.b32.xlu0 %v2208, 96
  %v2220 = vpop.permute.xlu0 %2219
  %v2224 = vmul.f32 %v2209, %v2216
  %v2225 = vmul.f32 %v2210, %v2218
  %v2226 = vmul.f32 %v2211, %v2220
  %v2227 = vmul.f32 %v2171, %v2042
  %v2228 = vmul.f32 %v2173, %v2043
  %v2229 = vmul.f32 %v2175, %v2044
  %v2230 = vadd.f32 %v2224, %v2227
  %v2231 = vadd.f32 %v2225, %v2228
  %v2232 = vadd.f32 %v2226, %v2229
  %vm2233 = vcmp.gt.f32.partialorder %v375, 7.0
  %vm2234 = vcmp.gt.f32.partialorder %v376, 7.0
  %vm2235 = vcmp.gt.f32.partialorder %v377, 7.0
  %v2236 = vsel %vm2233, 1, 0
  %v2237 = vsel %vm2234, 1, 0
  %v2238 = vsel %vm2235, 1, 0
  %v2239 = vcvt.s32.f32 %v2236
  %v2240 = vcvt.s32.f32 %v2237
  %v2241 = vcvt.s32.f32 %v2238
  %2243 = vset.pattern.permute.xlu0 0
  %2244 = vperm.xlu0 %2243, %v2239
  %v2245 = vpop.permute.xlu0 %2244
  %2248 = vset.pattern.permute.xlu0 0
  %2249 = vperm.xlu0 %2248, %v2240
  %v2250 = vpop.permute.xlu0 %2249
  %2253 = vset.pattern.permute.xlu0 0
  %2254 = vperm.xlu0 %2253, %v2241
  %v2255 = vpop.permute.xlu0 %2254
  %v2257 = vmul.f32 %v2245, %v2230
  %v2258 = vmul.f32 %v2250, %v2231
  %v2259 = vmul.f32 %v2255, %v2232
  %v2260 = vsub.f32 1.0, %v2239
  %v2261 = vsub.f32 1.0, %v2240
  %v2262 = vsub.f32 1.0, %v2241
  %2264 = vset.pattern.permute.xlu0 0
  %2265 = vperm.xlu0 %2264, %v2260
  %v2266 = vpop.permute.xlu0 %2265
  %2269 = vset.pattern.permute.xlu0 0
  %2270 = vperm.xlu0 %2269, %v2261
  %v2271 = vpop.permute.xlu0 %2270
  %2274 = vset.pattern.permute.xlu0 0
  %2275 = vperm.xlu0 %2274, %v2262
  %v2276 = vpop.permute.xlu0 %2275
  %v2278 = vmul.f32 %v2266, %v2042
  %v2279 = vmul.f32 %v2271, %v2043
  %v2280 = vmul.f32 %v2276, %v2044
  %v2281 = vadd.f32 %v2257, %v2278
  %v2282 = vadd.f32 %v2258, %v2279
  %v2283 = vadd.f32 %v2259, %v2280
  %2287 = vrot.lane.b32.xlu0 %v2257, 64
  %v2288 = vpop.permute.xlu0 %2287
  %2289 = vrot.lane.b32.xlu0 %v2258, 64
  %v2290 = vpop.permute.xlu0 %2289
  %2291 = vrot.lane.b32.xlu0 %v2259, 64
  %v2292 = vpop.permute.xlu0 %2291
  %2296 = vst.msk [vmem:[%s6 + $0x8] sm:$0xff] %vm1351, %v2288
  %2297 = vst.msk [vmem:[%s6 + $0x18] sm:$0xff] %vm1351, %v2290
  %2298 = vst.msk [vmem:[%s6 + $0x28] sm:$0xff] %vm1351, %v2292
  %2302 = vrot.lane.b32.xlu0 %v2281, 96
  %v2303 = vpop.permute.xlu0 %2302
  %2304 = vrot.lane.b32.xlu0 %v2282, 96
  %v2305 = vpop.permute.xlu0 %2304
  %2306 = vrot.lane.b32.xlu0 %v2283, 96
  %v2307 = vpop.permute.xlu0 %2306
  %2311 = vst.msk [vmem:[%s7] sm:$0xff] %vm68, %v2303
  %2312 = vst.msk [vmem:[%s7 + $0x8] sm:$0xff] %vm68, %v2305
  %2313 = vst.msk [vmem:[%s7 + $0x10] sm:$0xff] %vm68, %v2307
  // Predicated region
  $region26: #{disen_paper_encoder_forward.4} parent=0 // pred_check
    _
  $region27: #{disen_paper_encoder_forward.4} parent=0 // pred_check_branch
    %2315 = sbr.rel (0) target = $region29
  $region28: #{disen_paper_encoder_forward.4} parent=0 // pred_region
    _
  $region29: #{disen_paper_encoder_forward.4} parent=0 // pred_fallthru
    _
  // Predicated region
  $region30: #{disen_paper_encoder_forward.4} parent=0 // pred_check
    _
  $region31: #{disen_paper_encoder_forward.4} parent=0 // pred_check_branch
    %2317 = sbr.rel (0) target = $region33
  $region32: #{disen_paper_encoder_forward.4} parent=0 // pred_region
    _
  $region33: #{disen_paper_encoder_forward.4} parent=0 // pred_fallthru
    _
  // Predicated region
  $region34: #{disen_paper_encoder_forward.4} parent=0 // pred_check
    _
  $region35: #{disen_paper_encoder_forward.4} parent=0 // pred_check_branch
    %2319 = sbr.rel (0) target = $region37
  $region36: #{disen_paper_encoder_forward.4} parent=0 // pred_region
    _
  $region37: #{disen_paper_encoder_forward.4} parent=0 // pred_fallthru
    _
  // Predicated region
  $region38: #{disen_paper_encoder_forward.4} parent=0 // pred_check
    _
  $region39: #{disen_paper_encoder_forward.4} parent=0 // pred_check_branch
    %2321 = sbr.rel (0) target = $region41
  $region40: #{disen_paper_encoder_forward.4} parent=0 // pred_region
    _
  $region41: #{disen_paper_encoder_forward.4} parent=0 // pred_fallthru
    _

</llo_original>
